<compile_context>
chip_gen: v5e
topology: v5e:2x2
jax: 0.10.0
libtpu: 0.0.40
codegen_flags: <defaults>
</compile_context>

<pallas_src>
import functools

import jax
import jax.numpy as jnp
from jax.experimental import pallas as pl
from jax.experimental.pallas import tpu as pltpu

OUT_DIM = 4


def _has_bf16_vpu():
    """bf16 VALU epilogue only where the VPU supports it (v6e / v7x and newer)."""
    try:
        kind = jax.devices()[0].device_kind.lower()
    except Exception:
        return False
    return any(tag in kind for tag in ("v6", "v7", "7x"))


def _nerf_mlp_kernel(x_ref,
                     w1_ref, b1_ref,
                     w2_ref, b2_ref,
                     w3_ref, b3_ref,
                     w4_ref, b4_ref,
                     o_ref, *, ep_dtype):
    # bf16 matmul operands (full-rate MXU on v5e/v6e/v7x), f32 accumulation.
    # Bias + ReLU epilogue runs in `ep_dtype` (bf16 on v6e/v7x, f32 on v5e).
    h = x_ref[...].astype(jnp.bfloat16)                     # in-kernel cast of the row tile
    for w_ref, b_ref in ((w1_ref, b1_ref), (w2_ref, b2_ref), (w3_ref, b3_ref)):
        acc = jnp.dot(h, w_ref[...], preferred_element_type=jnp.float32)
        h = jnp.maximum(acc.astype(ep_dtype) + b_ref[...], 0).astype(jnp.bfloat16)
    out = jnp.dot(h, w4_ref[...], preferred_element_type=jnp.float32) + b4_ref[...]
    o_ref[...] = out.astype(o_ref.dtype)                    # narrow (block_rows, 4) store


def nerf_forward(x, params, *, block_n=4096, bf16_epilogue=None):
    """x: [N, D_in] float32. params: dict of f32 weights/biases. Returns [N, 4] f32."""
    N, D_in = x.shape
    H = params["w1"].shape[1]

    if bf16_epilogue is None:
        bf16_epilogue = _has_bf16_vpu()
    ep_dtype = jnp.bfloat16 if bf16_epilogue else jnp.float32

    # --- row tile -------------------------------------------------------------
    # Small N: one tile covering all rows (rounded to the 8-row sublane grain).
    # Large N: `block_n` rows (multiple of 128) per grid step.
    if N <= block_n:
        block_rows = max(8, ((N + 7) // 8) * 8)
    else:
        block_rows = block_n

    n_pad = (-N) % block_rows
    if n_pad:
        # Padded rows produce garbage output rows that are sliced off below; the
        # MLP is row-wise independent so they never contaminate real rows.
        x = jnp.pad(x, ((0, n_pad), (0, 0)))
    n_padded = N + n_pad
    grid = (n_padded // block_rows,)

    # --- operands: bf16 matmul weights, epilogue-dtype hidden biases ----------
    w1 = params["w1"].astype(jnp.bfloat16)
    w2 = params["w2"].astype(jnp.bfloat16)
    w3 = params["w3"].astype(jnp.bfloat16)
    w4 = params["w4"].astype(jnp.bfloat16)
    b1 = params["b1"].astype(ep_dtype)
    b2 = params["b2"].astype(ep_dtype)
    b3 = params["b3"].astype(ep_dtype)
    b4 = params["b4"].astype(jnp.float32)    # final bias add stays f32

    # Grid-invariant operands: constant index_map -> fetched once, resident in
    # VMEM across grid steps (weights total < 400 KiB).
    full = lambda shape: pl.BlockSpec(shape, lambda i: (0, 0))

    kernel = functools.partial(_nerf_mlp_kernel, ep_dtype=ep_dtype)

    out = pl.pallas_call(
        kernel,
        out_shape=jax.ShapeDtypeStruct((n_padded, OUT_DIM), jnp.float32),
        grid_spec=pltpu.PrefetchScalarGridSpec(
            num_scalar_prefetch=0,
            grid=grid,
            in_specs=[
                pl.BlockSpec((block_rows, D_in), lambda i: (i, 0)),   # x row tile (f32)
                full((D_in, H)), full((1, H)),                        # layer 1
                full((H, H)),    full((1, H)),                        # layer 2
                full((H, H)),    full((1, H)),                        # layer 3
                full((H, OUT_DIM)), full((1, OUT_DIM)),               # layer 4 (narrow)
            ],
            out_specs=pl.BlockSpec((block_rows, OUT_DIM), lambda i: (i, 0)),
        ),
        compiler_params=pltpu.CompilerParams(
            dimension_semantics=("parallel",),
            vmem_limit_bytes=32 * 1024 * 1024),
    )(x, w1, b1, w2, b2, w3, b3, w4, b4)

    return out[:N] if n_pad else out


def init_params(key, input_dim, hidden_dim):
    """Deterministic PyTorch-style init: U(-1/sqrt(fan_in), 1/sqrt(fan_in))."""
    dims = [(input_dim, hidden_dim),
            (hidden_dim, hidden_dim),
            (hidden_dim, hidden_dim),
            (hidden_dim, OUT_DIM)]
    params = {}
    keys = jax.random.split(key, 2 * len(dims))
    for idx, (fan_in, fan_out) in enumerate(dims):
        bound = 1.0 / jnp.sqrt(jnp.float32(fan_in))
        w = jax.random.uniform(keys[2 * idx], (fan_in, fan_out),
                               minval=-bound, maxval=bound, dtype=jnp.float32)
        b = jax.random.uniform(keys[2 * idx + 1], (1, fan_out),
                               minval=-bound, maxval=bound, dtype=jnp.float32)
        params[f"w{idx + 1}"] = w
        params[f"b{idx + 1}"] = b
    return params


def reference_forward(x, params, *, bf16_epilogue):
    """Plain-JAX forward with the same bf16-operand / epilogue numerics as the kernel."""
    bf = jnp.bfloat16
    ep = bf if bf16_epilogue else jnp.float32
    h = x.astype(bf)
    for i in (1, 2, 3):
        acc = jnp.dot(h, params[f"w{i}"].astype(bf),
                      preferred_element_type=jnp.float32)
        h = jnp.maximum(acc.astype(ep) + params[f"b{i}"].astype(ep), 0).astype(bf)
    return (jnp.dot(h, params["w4"].astype(bf), preferred_element_type=jnp.float32)
            + params["b4"].astype(jnp.float32))


if __name__ == "__main__":
    key = jax.random.PRNGKey(0)
    k_x, k_p = jax.random.split(key)

    # Small shapes consistent with the module (hidden_dim default 256).
    N, D_IN, HIDDEN = 600, 64, 256
    x = jax.random.normal(k_x, (N, D_IN), dtype=jnp.float32)
    params = init_params(k_p, D_IN, HIDDEN)

    bf16_ep = _has_bf16_vpu()
    out = nerf_forward(x, params, bf16_epilogue=bf16_ep)
    out = jax.block_until_ready(out)

    ref = reference_forward(x, params, bf16_epilogue=bf16_ep)
    assert out.shape == (N, OUT_DIM)
    max_err = float(jnp.max(jnp.abs(out - ref)))
    assert jnp.allclose(out, ref, atol=1e-2, rtol=1e-2), max_err

    print("KERNEL_OK")
</pallas_src>

<mosaic_0001>
module attributes {stable_mosaic.version = 11 : i64} {
  func.func @_nerf_mlp_kernel(%arg0: i32, %arg1: memref<600x64xf32, #tpu.memory_space<vmem>>, %arg2: memref<64x256xbf16, #tpu.memory_space<vmem>>, %arg3: memref<1x256xf32, #tpu.memory_space<vmem>>, %arg4: memref<256x256xbf16, #tpu.memory_space<vmem>>, %arg5: memref<1x256xf32, #tpu.memory_space<vmem>>, %arg6: memref<256x256xbf16, #tpu.memory_space<vmem>>, %arg7: memref<1x256xf32, #tpu.memory_space<vmem>>, %arg8: memref<256x4xbf16, #tpu.memory_space<vmem>>, %arg9: memref<1x4xf32, #tpu.memory_space<vmem>>, %arg10: memref<600x4xf32, #tpu.memory_space<vmem>>) attributes {dimension_semantics = [#tpu.dimension_semantics<parallel>], iteration_bounds = array<i64: 1>, scalar_prefetch = 0 : i64, scratch_operands = 0 : i64, tpu.core_type = #tpu.core_type<tc>, window_params = [{transform_indices = @transform_0, window_bounds = array<i64: 600, 64>}, {pipeline_mode = #tpu.pipeline_mode<synchronous>, transform_indices = @transform_1, window_bounds = array<i64: 64, 256>}, {pipeline_mode = #tpu.pipeline_mode<synchronous>, transform_indices = @transform_2, window_bounds = array<i64: 1, 256>}, {pipeline_mode = #tpu.pipeline_mode<synchronous>, transform_indices = @transform_3, window_bounds = array<i64: 256, 256>}, {pipeline_mode = #tpu.pipeline_mode<synchronous>, transform_indices = @transform_4, window_bounds = array<i64: 1, 256>}, {pipeline_mode = #tpu.pipeline_mode<synchronous>, transform_indices = @transform_5, window_bounds = array<i64: 256, 256>}, {pipeline_mode = #tpu.pipeline_mode<synchronous>, transform_indices = @transform_6, window_bounds = array<i64: 1, 256>}, {pipeline_mode = #tpu.pipeline_mode<synchronous>, transform_indices = @transform_7, window_bounds = array<i64: 256, 4>}, {pipeline_mode = #tpu.pipeline_mode<synchronous>, transform_indices = @transform_8, window_bounds = array<i64: 1, 4>}, {transform_indices = @transform_9, window_bounds = array<i64: 600, 4>}]} {
    %c0 = arith.constant 0 : index
    %c0_0 = arith.constant 0 : index
    %0 = vector.load %arg1[%c0, %c0_0] : memref<600x64xf32, #tpu.memory_space<vmem>>, vector<600x64xf32>
    %1 = arith.truncf %0 : vector<600x64xf32> to vector<600x64xbf16>
    %c0_1 = arith.constant 0 : index
    %c0_2 = arith.constant 0 : index
    %2 = vector.load %arg2[%c0_1, %c0_2] : memref<64x256xbf16, #tpu.memory_space<vmem>>, vector<64x256xbf16>
    %cst = arith.constant dense<0.000000e+00> : vector<600x256xf32>
    %3 = tpu.matmul %1, %2, %cst {dimension_numbers = #tpu.dot_dimension_numbers<[1], [0], [0], [1], [0, 0, 1, 1], [], []>} : vector<600x64xbf16>, vector<64x256xbf16>, vector<600x256xf32> -> vector<600x256xf32>
    %c0_3 = arith.constant 0 : index
    %c0_4 = arith.constant 0 : index
    %4 = vector.load %arg3[%c0_3, %c0_4] : memref<1x256xf32, #tpu.memory_space<vmem>>, vector<1x256xf32>
    %5 = vector.broadcast %4 : vector<1x256xf32> to vector<600x256xf32>
    %6 = arith.addf %3, %5 : vector<600x256xf32>
    %cst_5 = arith.constant 0.000000e+00 : f32
    %7 = vector.broadcast %cst_5 : f32 to vector<600x256xf32>
    %8 = arith.maximumf %6, %7 : vector<600x256xf32>
    %9 = arith.truncf %8 : vector<600x256xf32> to vector<600x256xbf16>
    %c0_6 = arith.constant 0 : index
    %c0_7 = arith.constant 0 : index
    %10 = vector.load %arg4[%c0_6, %c0_7] : memref<256x256xbf16, #tpu.memory_space<vmem>>, vector<256x256xbf16>
    %cst_8 = arith.constant dense<0.000000e+00> : vector<600x256xf32>
    %11 = tpu.matmul %9, %10, %cst_8 {dimension_numbers = #tpu.dot_dimension_numbers<[1], [0], [0], [1], [0, 0, 1, 1], [], []>} : vector<600x256xbf16>, vector<256x256xbf16>, vector<600x256xf32> -> vector<600x256xf32>
    %c0_9 = arith.constant 0 : index
    %c0_10 = arith.constant 0 : index
    %12 = vector.load %arg5[%c0_9, %c0_10] : memref<1x256xf32, #tpu.memory_space<vmem>>, vector<1x256xf32>
    %13 = vector.broadcast %12 : vector<1x256xf32> to vector<600x256xf32>
    %14 = arith.addf %11, %13 : vector<600x256xf32>
    %cst_11 = arith.constant 0.000000e+00 : f32
    %15 = vector.broadcast %cst_11 : f32 to vector<600x256xf32>
    %16 = arith.maximumf %14, %15 : vector<600x256xf32>
    %17 = arith.truncf %16 : vector<600x256xf32> to vector<600x256xbf16>
    %c0_12 = arith.constant 0 : index
    %c0_13 = arith.constant 0 : index
    %18 = vector.load %arg6[%c0_12, %c0_13] : memref<256x256xbf16, #tpu.memory_space<vmem>>, vector<256x256xbf16>
    %cst_14 = arith.constant dense<0.000000e+00> : vector<600x256xf32>
    %19 = tpu.matmul %17, %18, %cst_14 {dimension_numbers = #tpu.dot_dimension_numbers<[1], [0], [0], [1], [0, 0, 1, 1], [], []>} : vector<600x256xbf16>, vector<256x256xbf16>, vector<600x256xf32> -> vector<600x256xf32>
    %c0_15 = arith.constant 0 : index
    %c0_16 = arith.constant 0 : index
    %20 = vector.load %arg7[%c0_15, %c0_16] : memref<1x256xf32, #tpu.memory_space<vmem>>, vector<1x256xf32>
    %21 = vector.broadcast %20 : vector<1x256xf32> to vector<600x256xf32>
    %22 = arith.addf %19, %21 : vector<600x256xf32>
    %cst_17 = arith.constant 0.000000e+00 : f32
    %23 = vector.broadcast %cst_17 : f32 to vector<600x256xf32>
    %24 = arith.maximumf %22, %23 : vector<600x256xf32>
    %25 = arith.truncf %24 : vector<600x256xf32> to vector<600x256xbf16>
    %c0_18 = arith.constant 0 : index
    %c0_19 = arith.constant 0 : index
    %26 = vector.load %arg8[%c0_18, %c0_19] : memref<256x4xbf16, #tpu.memory_space<vmem>>, vector<256x4xbf16>
    %cst_20 = arith.constant dense<0.000000e+00> : vector<600x4xf32>
    %27 = tpu.matmul %25, %26, %cst_20 {dimension_numbers = #tpu.dot_dimension_numbers<[1], [0], [0], [1], [0, 0, 1, 1], [], []>} : vector<600x256xbf16>, vector<256x4xbf16>, vector<600x4xf32> -> vector<600x4xf32>
    %c0_21 = arith.constant 0 : index
    %c0_22 = arith.constant 0 : index
    %28 = vector.load %arg9[%c0_21, %c0_22] : memref<1x4xf32, #tpu.memory_space<vmem>>, vector<1x4xf32>
    %29 = vector.broadcast %28 : vector<1x4xf32> to vector<600x4xf32>
    %30 = arith.addf %27, %29 : vector<600x4xf32>
    %c0_23 = arith.constant 0 : index
    %c0_24 = arith.constant 0 : index
    %31 = vector.load %arg10[%c0_23, %c0_24] : memref<600x4xf32, #tpu.memory_space<vmem>>, vector<600x4xf32>
    tpu.vector_store %arg10[%c0_23, %c0_24], %30 {strides = array<i32>} : memref<600x4xf32, #tpu.memory_space<vmem>>, vector<600x4xf32>,
    return
  }
  func.func @transform_0(%arg0: i32) -> (i32, i32) {
    %c0_i32 = arith.constant 0 : i32
    %c0_i32_0 = arith.constant 0 : i32
    return %arg0, %c0_i32 : i32, i32
  }
  func.func @transform_1(%arg0: i32) -> (i32, i32) {
    %c0_i32 = arith.constant 0 : i32
    %c0_i32_0 = arith.constant 0 : i32
    %c0_i32_1 = arith.constant 0 : i32
    return %c0_i32, %c0_i32_0 : i32, i32
  }
  func.func @transform_2(%arg0: i32) -> (i32, i32) {
    %c0_i32 = arith.constant 0 : i32
    %c0_i32_0 = arith.constant 0 : i32
    %c0_i32_1 = arith.constant 0 : i32
    return %c0_i32, %c0_i32_0 : i32, i32
  }
  func.func @transform_3(%arg0: i32) -> (i32, i32) {
    %c0_i32 = arith.constant 0 : i32
    %c0_i32_0 = arith.constant 0 : i32
    %c0_i32_1 = arith.constant 0 : i32
    return %c0_i32, %c0_i32_0 : i32, i32
  }
  func.func @transform_4(%arg0: i32) -> (i32, i32) {
    %c0_i32 = arith.constant 0 : i32
    %c0_i32_0 = arith.constant 0 : i32
    %c0_i32_1 = arith.constant 0 : i32
    return %c0_i32, %c0_i32_0 : i32, i32
  }
  func.func @transform_5(%arg0: i32) -> (i32, i32) {
    %c0_i32 = arith.constant 0 : i32
    %c0_i32_0 = arith.constant 0 : i32
    %c0_i32_1 = arith.constant 0 : i32
    return %c0_i32, %c0_i32_0 : i32, i32
  }
  func.func @transform_6(%arg0: i32) -> (i32, i32) {
    %c0_i32 = arith.constant 0 : i32
    %c0_i32_0 = arith.constant 0 : i32
    %c0_i32_1 = arith.constant 0 : i32
    return %c0_i32, %c0_i32_0 : i32, i32
  }
  func.func @transform_7(%arg0: i32) -> (i32, i32) {
    %c0_i32 = arith.constant 0 : i32
    %c0_i32_0 = arith.constant 0 : i32
    %c0_i32_1 = arith.constant 0 : i32
    return %c0_i32, %c0_i32_0 : i32, i32
  }
  func.func @transform_8(%arg0: i32) -> (i32, i32) {
    %c0_i32 = arith.constant 0 : i32
    %c0_i32_0 = arith.constant 0 : i32
    %c0_i32_1 = arith.constant 0 : i32
    return %c0_i32, %c0_i32_0 : i32, i32
  }
  func.func @transform_9(%arg0: i32) -> (i32, i32) {
    %c0_i32 = arith.constant 0 : i32
    %c0_i32_0 = arith.constant 0 : i32
    return %arg0, %c0_i32 : i32, i32
  }
}

</mosaic_0001>

<llo_original>
// kernel: tpu_custom_call.1
$region0: #{tpu_custom_call.1}
  #allocation0 [shape = 'u32[]', space=smem, size = 0x4, offset = 0x4, fixed_abs, tag = 'smem constant byte address 0x4 - core index']
  #allocation1 [shape = 'u32[72,128]{1,0:T(1,128)}', space=vmem, size = 0x9000, scoped, tag = 'internal scratch']
  %s0 = inlined_call_operand.vmem [shape: f32[600,64], index: 0, kind: input, shape index: {}]
  %s1 = inlined_call_operand.vmem [shape: bf16[64,256], index: 1, kind: input, shape index: {}]
  %s2 = inlined_call_operand.vmem [shape: f32[1,256], index: 2, kind: input, shape index: {}]
  %s3 = inlined_call_operand.vmem [shape: bf16[256,256], index: 3, kind: input, shape index: {}]
  %s4 = inlined_call_operand.vmem [shape: f32[1,256], index: 4, kind: input, shape index: {}]
  %s5 = inlined_call_operand.vmem [shape: bf16[256,256], index: 5, kind: input, shape index: {}]
  %s6 = inlined_call_operand.vmem [shape: f32[1,256], index: 6, kind: input, shape index: {}]
  %s7 = inlined_call_operand.vmem [shape: bf16[256,4], index: 7, kind: input, shape index: {}]
  %s8 = inlined_call_operand.vmem [shape: f32[1,4], index: 8, kind: input, shape index: {}]
  %s9 = inlined_call_operand.vmem [shape: f32[600,4], index: 9, kind: output, shape index: {}]
  %s10 = sld [smem:[#allocation0]]
  $region46: #{tpu_custom_call.1} parent=0
    _
  %s12 = ssub.s32 1, %s10
  %s13 = scalar_select 0, %s12, %s10
  // Predicated region
  $region2: #{tpu_custom_call.1} parent=0 // pred_check
    _
  $region3: #{tpu_custom_call.1} parent=0 // pred_check_branch
    %15 = sbr.rel (0) target = $region5
  $region4: #{tpu_custom_call.1} parent=0 // pred_region
    _
  $region5: #{tpu_custom_call.1} parent=0 // pred_fallthru
    _
  // Predicated region
  $region6: #{tpu_custom_call.1} parent=0 // pred_check
    _
  $region7: #{tpu_custom_call.1} parent=0 // pred_check_branch
    %17 = sbr.rel (0) target = $region9
  $region8: #{tpu_custom_call.1} parent=0 // pred_region
    _
  $region9: #{tpu_custom_call.1} parent=0 // pred_fallthru
    _
  // Predicated region
  $region10: #{tpu_custom_call.1} parent=0 // pred_check
    _
  $region11: #{tpu_custom_call.1} parent=0 // pred_check_branch
    %19 = sbr.rel (0) target = $region13
  $region12: #{tpu_custom_call.1} parent=0 // pred_region
    _
  $region13: #{tpu_custom_call.1} parent=0 // pred_fallthru
    _
  // Predicated region
  $region14: #{tpu_custom_call.1} parent=0 // pred_check
    _
  $region15: #{tpu_custom_call.1} parent=0 // pred_check_branch
    %21 = sbr.rel (0) target = $region17
  $region16: #{tpu_custom_call.1} parent=0 // pred_region
    _
  $region17: #{tpu_custom_call.1} parent=0 // pred_fallthru
    _
  // Predicated region
  $region18: #{tpu_custom_call.1} parent=0 // pred_check
    _
  $region19: #{tpu_custom_call.1} parent=0 // pred_check_branch
    %23 = sbr.rel (0) target = $region21
  $region20: #{tpu_custom_call.1} parent=0 // pred_region
    _
  $region21: #{tpu_custom_call.1} parent=0 // pred_fallthru
    _
  // Predicated region
  $region22: #{tpu_custom_call.1} parent=0 // pred_check
    _
  $region23: #{tpu_custom_call.1} parent=0 // pred_check_branch
    %25 = sbr.rel (0) target = $region25
  $region24: #{tpu_custom_call.1} parent=0 // pred_region
    _
  $region25: #{tpu_custom_call.1} parent=0 // pred_fallthru
    _
  // Predicated region
  $region26: #{tpu_custom_call.1} parent=0 // pred_check
    _
  $region27: #{tpu_custom_call.1} parent=0 // pred_check_branch
    %27 = sbr.rel (0) target = $region29
  $region28: #{tpu_custom_call.1} parent=0 // pred_region
    _
  $region29: #{tpu_custom_call.1} parent=0 // pred_fallthru
    _
  // Predicated region
  $region30: #{tpu_custom_call.1} parent=0 // pred_check
    _
  $region31: #{tpu_custom_call.1} parent=0 // pred_check_branch
    %29 = sbr.rel (0) target = $region33
  $region32: #{tpu_custom_call.1} parent=0 // pred_region
    _
  $region33: #{tpu_custom_call.1} parent=0 // pred_fallthru
    _
  // Predicated region
  $region34: #{tpu_custom_call.1} parent=0 // pred_check
    _
  $region35: #{tpu_custom_call.1} parent=0 // pred_check_branch
    %31 = sbr.rel (0) target = $region37
  $region36: #{tpu_custom_call.1} parent=0 // pred_region
    _
  $region37: #{tpu_custom_call.1} parent=0 // pred_fallthru
    _
  %v33 = vld [vmem:[%s0] sm:$0xff]
  %v34 = vld [vmem:[%s0 + $0x8] sm:$0xff]
  %v35 = vld [vmem:[%s0 + $0x10] sm:$0xff]
  %v36 = vld [vmem:[%s0 + $0x18] sm:$0xff]
  %v37 = vld [vmem:[%s0 + $0x20] sm:$0xff]
  %v38 = vld [vmem:[%s0 + $0x28] sm:$0xff]
  %v39 = vld [vmem:[%s0 + $0x30] sm:$0xff]
  %v40 = vld [vmem:[%s0 + $0x38] sm:$0xff]
  %v41 = vld [vmem:[%s0 + $0x40] sm:$0xff]
  %v42 = vld [vmem:[%s0 + $0x48] sm:$0xff]
  %v43 = vld [vmem:[%s0 + $0x50] sm:$0xff]
  %v44 = vld [vmem:[%s0 + $0x58] sm:$0xff]
  %v45 = vld [vmem:[%s0 + $0x60] sm:$0xff]
  %v46 = vld [vmem:[%s0 + $0x68] sm:$0xff]
  %v47 = vld [vmem:[%s0 + $0x70] sm:$0xff]
  %v48 = vld [vmem:[%s0 + $0x78] sm:$0xff]
  %v49 = vld [vmem:[%s0 + $0x80] sm:$0xff]
  %v50 = vld [vmem:[%s0 + $0x88] sm:$0xff]
  %v51 = vld [vmem:[%s0 + $0x90] sm:$0xff]
  %v52 = vld [vmem:[%s0 + $0x98] sm:$0xff]
  %v53 = vld [vmem:[%s0 + $0xa0] sm:$0xff]
  %v54 = vld [vmem:[%s0 + $0xa8] sm:$0xff]
  %v55 = vld [vmem:[%s0 + $0xb0] sm:$0xff]
  %v56 = vld [vmem:[%s0 + $0xb8] sm:$0xff]
  %v57 = vld [vmem:[%s0 + $0xc0] sm:$0xff]
  %v58 = vld [vmem:[%s0 + $0xc8] sm:$0xff]
  %v59 = vld [vmem:[%s0 + $0xd0] sm:$0xff]
  %v60 = vld [vmem:[%s0 + $0xd8] sm:$0xff]
  %v61 = vld [vmem:[%s0 + $0xe0] sm:$0xff]
  %v62 = vld [vmem:[%s0 + $0xe8] sm:$0xff]
  %v63 = vld [vmem:[%s0 + $0xf0] sm:$0xff]
  %v64 = vld [vmem:[%s0 + $0xf8] sm:$0xff]
  %v65 = vld [vmem:[%s0 + $0x100] sm:$0xff]
  %v66 = vld [vmem:[%s0 + $0x108] sm:$0xff]
  %v67 = vld [vmem:[%s0 + $0x110] sm:$0xff]
  %v68 = vld [vmem:[%s0 + $0x118] sm:$0xff]
  %v69 = vld [vmem:[%s0 + $0x120] sm:$0xff]
  %v70 = vld [vmem:[%s0 + $0x128] sm:$0xff]
  %v71 = vld [vmem:[%s0 + $0x130] sm:$0xff]
  %v72 = vld [vmem:[%s0 + $0x138] sm:$0xff]
  %v73 = vld [vmem:[%s0 + $0x140] sm:$0xff]
  %v74 = vld [vmem:[%s0 + $0x148] sm:$0xff]
  %v75 = vld [vmem:[%s0 + $0x150] sm:$0xff]
  %v76 = vld [vmem:[%s0 + $0x158] sm:$0xff]
  %v77 = vld [vmem:[%s0 + $0x160] sm:$0xff]
  %v78 = vld [vmem:[%s0 + $0x168] sm:$0xff]
  %v79 = vld [vmem:[%s0 + $0x170] sm:$0xff]
  %v80 = vld [vmem:[%s0 + $0x178] sm:$0xff]
  %v81 = vld [vmem:[%s0 + $0x180] sm:$0xff]
  %v82 = vld [vmem:[%s0 + $0x188] sm:$0xff]
  %v83 = vld [vmem:[%s0 + $0x190] sm:$0xff]
  %v84 = vld [vmem:[%s0 + $0x198] sm:$0xff]
  %v85 = vld [vmem:[%s0 + $0x1a0] sm:$0xff]
  %v86 = vld [vmem:[%s0 + $0x1a8] sm:$0xff]
  %v87 = vld [vmem:[%s0 + $0x1b0] sm:$0xff]
  %v88 = vld [vmem:[%s0 + $0x1b8] sm:$0xff]
  %v89 = vld [vmem:[%s0 + $0x1c0] sm:$0xff]
  %v90 = vld [vmem:[%s0 + $0x1c8] sm:$0xff]
  %v91 = vld [vmem:[%s0 + $0x1d0] sm:$0xff]
  %v92 = vld [vmem:[%s0 + $0x1d8] sm:$0xff]
  %v93 = vld [vmem:[%s0 + $0x1e0] sm:$0xff]
  %v94 = vld [vmem:[%s0 + $0x1e8] sm:$0xff]
  %v95 = vld [vmem:[%s0 + $0x1f0] sm:$0xff]
  %v96 = vld [vmem:[%s0 + $0x1f8] sm:$0xff]
  %v97 = vld [vmem:[%s0 + $0x200] sm:$0xff]
  %v98 = vld [vmem:[%s0 + $0x208] sm:$0xff]
  %v99 = vld [vmem:[%s0 + $0x210] sm:$0xff]
  %v100 = vld [vmem:[%s0 + $0x218] sm:$0xff]
  %v101 = vld [vmem:[%s0 + $0x220] sm:$0xff]
  %v102 = vld [vmem:[%s0 + $0x228] sm:$0xff]
  %v103 = vld [vmem:[%s0 + $0x230] sm:$0xff]
  %v104 = vld [vmem:[%s0 + $0x238] sm:$0xff]
  %v105 = vld [vmem:[%s0 + $0x240] sm:$0xff]
  %v106 = vld [vmem:[%s0 + $0x248] sm:$0xff]
  %v107 = vld [vmem:[%s0 + $0x250] sm:$0xff]
  %v108 = vpack.c.bf16 %v34, %v33
  %v109 = vpack.c.bf16 %v36, %v35
  %v110 = vpack.c.bf16 %v38, %v37
  %v111 = vpack.c.bf16 %v40, %v39
  %v112 = vpack.c.bf16 %v42, %v41
  %v113 = vpack.c.bf16 %v44, %v43
  %v114 = vpack.c.bf16 %v46, %v45
  %v115 = vpack.c.bf16 %v48, %v47
  %v116 = vpack.c.bf16 %v50, %v49
  %v117 = vpack.c.bf16 %v52, %v51
  %v118 = vpack.c.bf16 %v54, %v53
  %v119 = vpack.c.bf16 %v56, %v55
  %v120 = vpack.c.bf16 %v58, %v57
  %v121 = vpack.c.bf16 %v60, %v59
  %v122 = vpack.c.bf16 %v62, %v61
  %v123 = vpack.c.bf16 %v64, %v63
  %v124 = vpack.c.bf16 %v66, %v65
  %v125 = vpack.c.bf16 %v68, %v67
  %v126 = vpack.c.bf16 %v70, %v69
  %v127 = vpack.c.bf16 %v72, %v71
  %v128 = vpack.c.bf16 %v74, %v73
  %v129 = vpack.c.bf16 %v76, %v75
  %v130 = vpack.c.bf16 %v78, %v77
  %v131 = vpack.c.bf16 %v80, %v79
  %v132 = vpack.c.bf16 %v82, %v81
  %v133 = vpack.c.bf16 %v84, %v83
  %v134 = vpack.c.bf16 %v86, %v85
  %v135 = vpack.c.bf16 %v88, %v87
  %v136 = vpack.c.bf16 %v90, %v89
  %v137 = vpack.c.bf16 %v92, %v91
  %v138 = vpack.c.bf16 %v94, %v93
  %v139 = vpack.c.bf16 %v96, %v95
  %v140 = vpack.c.bf16 %v98, %v97
  %v141 = vpack.c.bf16 %v100, %v99
  %v142 = vpack.c.bf16 %v102, %v101
  %v143 = vpack.c.bf16 %v104, %v103
  %v144 = vpack.c.bf16 %v106, %v105
  %v145 = vpack.c.bf16 %v107, %v107
  %v146 = vld [vmem:[%s1] sm:$0xff]
  %v147 = vld [vmem:[%s1 + $0x8] sm:$0xff]
  %v148 = vld [vmem:[%s1 + $0x10] sm:$0xff]
  %v149 = vld [vmem:[%s1 + $0x18] sm:$0xff]
  %v150 = vld [vmem:[%s1 + $0x20] sm:$0xff]
  %v151 = vld [vmem:[%s1 + $0x28] sm:$0xff]
  %v152 = vld [vmem:[%s1 + $0x30] sm:$0xff]
  %v153 = vld [vmem:[%s1 + $0x38] sm:$0xff]
  %v154 = vld [vmem:[%s2] sm:$0x3]
  %v156 = vperm.slane %v154, 0
  %v157 = vperm.slane %v154, 1
  %v168 = vunpack.c.l.b16 %v146
  %v169 = vunpack.c.h.b16 %v146
  %v170 = vunpack.c.l.b16 %v147
  %v171 = vunpack.c.h.b16 %v147
  %v172 = vunpack.c.l.b16 %v148
  %v173 = vunpack.c.h.b16 %v148
  %v174 = vunpack.c.l.b16 %v149
  %v175 = vunpack.c.h.b16 %v149
  %v176 = vunpack.c.l.b16 %v150
  %v177 = vunpack.c.h.b16 %v150
  %v178 = vunpack.c.l.b16 %v151
  %v179 = vunpack.c.h.b16 %v151
  %v180 = vunpack.c.l.b16 %v152
  %v181 = vunpack.c.h.b16 %v152
  %v182 = vunpack.c.l.b16 %v153
  %v183 = vunpack.c.h.b16 %v153
  %v184 = vpack.c.b16 %v170, %v168
  %v185 = vpack.c.b16 %v171, %v169
  %v186 = vpack.c.b16 %v174, %v172
  %v187 = vpack.c.b16 %v175, %v173
  %v188 = vpack.c.b16 %v178, %v176
  %v189 = vpack.c.b16 %v179, %v177
  %v190 = vpack.c.b16 %v182, %v180
  %v191 = vpack.c.b16 %v183, %v181
  %vm200 = vcmask 523264
  %v202 = vsel %vm200, %v108, 0
  %v205 = vsel %vm200, %v109, 0
  %v208 = vsel %vm200, %v110, 0
  %v211 = vsel %vm200, %v111, 0
  %v214 = vsel %vm200, %v112, 0
  %v217 = vsel %vm200, %v113, 0
  %v220 = vsel %vm200, %v114, 0
  %v223 = vsel %vm200, %v115, 0
  %v226 = vsel %vm200, %v116, 0
  %v229 = vsel %vm200, %v117, 0
  %v232 = vsel %vm200, %v118, 0
  %v235 = vsel %vm200, %v119, 0
  %v238 = vsel %vm200, %v120, 0
  %v241 = vsel %vm200, %v121, 0
  %v244 = vsel %vm200, %v122, 0
  %v247 = vsel %vm200, %v123, 0
  %v250 = vsel %vm200, %v124, 0
  %v253 = vsel %vm200, %v125, 0
  %v256 = vsel %vm200, %v126, 0
  %v259 = vsel %vm200, %v127, 0
  %v262 = vsel %vm200, %v128, 0
  %v265 = vsel %vm200, %v129, 0
  %v268 = vsel %vm200, %v130, 0
  %v271 = vsel %vm200, %v131, 0
  %v274 = vsel %vm200, %v132, 0
  %v277 = vsel %vm200, %v133, 0
  %v280 = vsel %vm200, %v134, 0
  %v283 = vsel %vm200, %v135, 0
  %v286 = vsel %vm200, %v136, 0
  %v289 = vsel %vm200, %v137, 0
  %v292 = vsel %vm200, %v138, 0
  %v295 = vsel %vm200, %v139, 0
  %v298 = vsel %vm200, %v140, 0
  %v301 = vsel %vm200, %v141, 0
  %v304 = vsel %vm200, %v142, 0
  %v307 = vsel %vm200, %v143, 0
  %v310 = vsel %vm200, %v144, 0
  %v313 = vsel %vm200, %v145, 0
  %315 = vmatpush.bf16.msra.mxu0 0
  %316 = vmatpush.bf16.msra.mxu0 0
  %317 = vmatpush.bf16.msra.mxu0 0
  %318 = vmatpush.bf16.msra.mxu0 0
  %319 = vmatpush.bf16.msra.mxu0 %v190
  %320 = vmatpush.bf16.msra.mxu0 %v188
  %321 = vmatpush.bf16.msra.mxu0 %v186
  %322 = vmatpush.bf16.msra.mxu0 %v184
  %323 = vmatmul.bf16.gmra.mxu0 %v202
  %v324 = vpop.f32.mrf.mxu0
  %v325 = vadd.f32 %v156, %v324
  %v326 = vpop.f32.mrf.mxu0
  %v327 = vadd.f32 %v156, %v326
  %328 = vmatmul.bf16.gmra.mxu0 %v205
  %v329 = vpop.f32.mrf.mxu0
  %v330 = vadd.f32 %v156, %v329
  %v331 = vpop.f32.mrf.mxu0
  %v332 = vadd.f32 %v156, %v331
  %333 = vmatmul.bf16.gmra.mxu0 %v208
  %v334 = vpop.f32.mrf.mxu0
  %v335 = vadd.f32 %v156, %v334
  %v336 = vpop.f32.mrf.mxu0
  %v337 = vadd.f32 %v156, %v336
  %338 = vmatmul.bf16.gmra.mxu0 %v211
  %v339 = vpop.f32.mrf.mxu0
  %v340 = vadd.f32 %v156, %v339
  %v341 = vpop.f32.mrf.mxu0
  %v342 = vadd.f32 %v156, %v341
  %343 = vmatmul.bf16.gmra.mxu0 %v214
  %v344 = vpop.f32.mrf.mxu0
  %v345 = vadd.f32 %v156, %v344
  %v346 = vpop.f32.mrf.mxu0
  %v347 = vadd.f32 %v156, %v346
  %348 = vmatmul.bf16.gmra.mxu0 %v217
  %v349 = vpop.f32.mrf.mxu0
  %v350 = vadd.f32 %v156, %v349
  %v351 = vpop.f32.mrf.mxu0
  %v352 = vadd.f32 %v156, %v351
  %353 = vmatmul.bf16.gmra.mxu0 %v220
  %v354 = vpop.f32.mrf.mxu0
  %v355 = vadd.f32 %v156, %v354
  %v356 = vpop.f32.mrf.mxu0
  %v357 = vadd.f32 %v156, %v356
  %358 = vmatmul.bf16.gmra.mxu0 %v223
  %v359 = vpop.f32.mrf.mxu0
  %v360 = vadd.f32 %v156, %v359
  %v361 = vpop.f32.mrf.mxu0
  %v362 = vadd.f32 %v156, %v361
  %363 = vmatmul.bf16.gmra.mxu0 %v226
  %v364 = vpop.f32.mrf.mxu0
  %v365 = vadd.f32 %v156, %v364
  %v366 = vpop.f32.mrf.mxu0
  %v367 = vadd.f32 %v156, %v366
  %368 = vmatmul.bf16.gmra.mxu0 %v229
  %v369 = vpop.f32.mrf.mxu0
  %v370 = vadd.f32 %v156, %v369
  %v371 = vpop.f32.mrf.mxu0
  %v372 = vadd.f32 %v156, %v371
  %373 = vmatmul.bf16.gmra.mxu0 %v232
  %v374 = vpop.f32.mrf.mxu0
  %v375 = vadd.f32 %v156, %v374
  %v376 = vpop.f32.mrf.mxu0
  %v377 = vadd.f32 %v156, %v376
  %378 = vmatmul.bf16.gmra.mxu0 %v235
  %v379 = vpop.f32.mrf.mxu0
  %v380 = vadd.f32 %v156, %v379
  %v381 = vpop.f32.mrf.mxu0
  %v382 = vadd.f32 %v156, %v381
  %383 = vmatmul.bf16.gmra.mxu0 %v238
  %v384 = vpop.f32.mrf.mxu0
  %v385 = vadd.f32 %v156, %v384
  %v386 = vpop.f32.mrf.mxu0
  %v387 = vadd.f32 %v156, %v386
  %388 = vmatmul.bf16.gmra.mxu0 %v241
  %v389 = vpop.f32.mrf.mxu0
  %v390 = vadd.f32 %v156, %v389
  %v391 = vpop.f32.mrf.mxu0
  %v392 = vadd.f32 %v156, %v391
  %393 = vmatmul.bf16.gmra.mxu0 %v244
  %v394 = vpop.f32.mrf.mxu0
  %v395 = vadd.f32 %v156, %v394
  %v396 = vpop.f32.mrf.mxu0
  %v397 = vadd.f32 %v156, %v396
  %398 = vmatmul.bf16.gmra.mxu0 %v247
  %v399 = vpop.f32.mrf.mxu0
  %v400 = vadd.f32 %v156, %v399
  %v401 = vpop.f32.mrf.mxu0
  %v402 = vadd.f32 %v156, %v401
  %403 = vmatmul.bf16.gmra.mxu0 %v250
  %v404 = vpop.f32.mrf.mxu0
  %v405 = vadd.f32 %v156, %v404
  %v406 = vpop.f32.mrf.mxu0
  %v407 = vadd.f32 %v156, %v406
  %408 = vmatmul.bf16.gmra.mxu0 %v253
  %v409 = vpop.f32.mrf.mxu0
  %v410 = vadd.f32 %v156, %v409
  %v411 = vpop.f32.mrf.mxu0
  %v412 = vadd.f32 %v156, %v411
  %413 = vmatmul.bf16.gmra.mxu0 %v256
  %v414 = vpop.f32.mrf.mxu0
  %v415 = vadd.f32 %v156, %v414
  %v416 = vpop.f32.mrf.mxu0
  %v417 = vadd.f32 %v156, %v416
  %418 = vmatmul.bf16.gmra.mxu0 %v259
  %v419 = vpop.f32.mrf.mxu0
  %v420 = vadd.f32 %v156, %v419
  %v421 = vpop.f32.mrf.mxu0
  %v422 = vadd.f32 %v156, %v421
  %423 = vmatmul.bf16.gmra.mxu0 %v262
  %v424 = vpop.f32.mrf.mxu0
  %v425 = vadd.f32 %v156, %v424
  %v426 = vpop.f32.mrf.mxu0
  %v427 = vadd.f32 %v156, %v426
  %428 = vmatmul.bf16.gmra.mxu0 %v265
  %v429 = vpop.f32.mrf.mxu0
  %v430 = vadd.f32 %v156, %v429
  %v431 = vpop.f32.mrf.mxu0
  %v432 = vadd.f32 %v156, %v431
  %433 = vmatmul.bf16.gmra.mxu0 %v268
  %v434 = vpop.f32.mrf.mxu0
  %v435 = vadd.f32 %v156, %v434
  %v436 = vpop.f32.mrf.mxu0
  %v437 = vadd.f32 %v156, %v436
  %438 = vmatmul.bf16.gmra.mxu0 %v271
  %v439 = vpop.f32.mrf.mxu0
  %v440 = vadd.f32 %v156, %v439
  %v441 = vpop.f32.mrf.mxu0
  %v442 = vadd.f32 %v156, %v441
  %443 = vmatmul.bf16.gmra.mxu0 %v274
  %v444 = vpop.f32.mrf.mxu0
  %v445 = vadd.f32 %v156, %v444
  %v446 = vpop.f32.mrf.mxu0
  %v447 = vadd.f32 %v156, %v446
  %448 = vmatmul.bf16.gmra.mxu0 %v277
  %v449 = vpop.f32.mrf.mxu0
  %v450 = vadd.f32 %v156, %v449
  %v451 = vpop.f32.mrf.mxu0
  %v452 = vadd.f32 %v156, %v451
  %453 = vmatmul.bf16.gmra.mxu0 %v280
  %v454 = vpop.f32.mrf.mxu0
  %v455 = vadd.f32 %v156, %v454
  %v456 = vpop.f32.mrf.mxu0
  %v457 = vadd.f32 %v156, %v456
  %458 = vmatmul.bf16.gmra.mxu0 %v283
  %v459 = vpop.f32.mrf.mxu0
  %v460 = vadd.f32 %v156, %v459
  %v461 = vpop.f32.mrf.mxu0
  %v462 = vadd.f32 %v156, %v461
  %463 = vmatmul.bf16.gmra.mxu0 %v286
  %v464 = vpop.f32.mrf.mxu0
  %v465 = vadd.f32 %v156, %v464
  %v466 = vpop.f32.mrf.mxu0
  %v467 = vadd.f32 %v156, %v466
  %468 = vmatmul.bf16.gmra.mxu0 %v289
  %v469 = vpop.f32.mrf.mxu0
  %v470 = vadd.f32 %v156, %v469
  %v471 = vpop.f32.mrf.mxu0
  %v472 = vadd.f32 %v156, %v471
  %473 = vmatmul.bf16.gmra.mxu0 %v292
  %v474 = vpop.f32.mrf.mxu0
  %v475 = vadd.f32 %v156, %v474
  %v476 = vpop.f32.mrf.mxu0
  %v477 = vadd.f32 %v156, %v476
  %478 = vmatmul.bf16.gmra.mxu0 %v295
  %v479 = vpop.f32.mrf.mxu0
  %v480 = vadd.f32 %v156, %v479
  %v481 = vpop.f32.mrf.mxu0
  %v482 = vadd.f32 %v156, %v481
  %483 = vmatmul.bf16.gmra.mxu0 %v298
  %v484 = vpop.f32.mrf.mxu0
  %v485 = vadd.f32 %v156, %v484
  %v486 = vpop.f32.mrf.mxu0
  %v487 = vadd.f32 %v156, %v486
  %488 = vmatmul.bf16.gmra.mxu0 %v301
  %v489 = vpop.f32.mrf.mxu0
  %v490 = vadd.f32 %v156, %v489
  %v491 = vpop.f32.mrf.mxu0
  %v492 = vadd.f32 %v156, %v491
  %493 = vmatmul.bf16.gmra.mxu0 %v304
  %v494 = vpop.f32.mrf.mxu0
  %v495 = vadd.f32 %v156, %v494
  %v496 = vpop.f32.mrf.mxu0
  %v497 = vadd.f32 %v156, %v496
  %498 = vmatmul.bf16.gmra.mxu0 %v307
  %v499 = vpop.f32.mrf.mxu0
  %v500 = vadd.f32 %v156, %v499
  %v501 = vpop.f32.mrf.mxu0
  %v502 = vadd.f32 %v156, %v501
  %503 = vmatmul.bf16.gmra.mxu0 %v310
  %v504 = vpop.f32.mrf.mxu0
  %v505 = vadd.f32 %v156, %v504
  %v506 = vpop.f32.mrf.mxu0
  %v507 = vadd.f32 %v156, %v506
  %508 = vmatmul.bf16.gmra.mxu0 %v313
  %v509 = vpop.f32.mrf.mxu0
  %v510 = vadd.f32 %v156, %v509
  %v511 = vpop.f32.mrf.mxu0
  %512 = vdwg.mxu0
  %513 = vmatpush.bf16.msra.mxu0 0
  %514 = vmatpush.bf16.msra.mxu0 0
  %515 = vmatpush.bf16.msra.mxu0 0
  %516 = vmatpush.bf16.msra.mxu0 0
  %517 = vmatpush.bf16.msra.mxu0 %v191
  %518 = vmatpush.bf16.msra.mxu0 %v189
  %519 = vmatpush.bf16.msra.mxu0 %v187
  %520 = vmatpush.bf16.msra.mxu0 %v185
  %521 = vmatmul.bf16.gmra.mxu0 %v202
  %v522 = vpop.f32.mrf.mxu0
  %v523 = vadd.f32 %v157, %v522
  %v524 = vpop.f32.mrf.mxu0
  %v525 = vadd.f32 %v157, %v524
  %526 = vmatmul.bf16.gmra.mxu0 %v205
  %v527 = vpop.f32.mrf.mxu0
  %v528 = vadd.f32 %v157, %v527
  %v529 = vpop.f32.mrf.mxu0
  %v530 = vadd.f32 %v157, %v529
  %531 = vmatmul.bf16.gmra.mxu0 %v208
  %v532 = vpop.f32.mrf.mxu0
  %v533 = vadd.f32 %v157, %v532
  %v534 = vpop.f32.mrf.mxu0
  %v535 = vadd.f32 %v157, %v534
  %536 = vmatmul.bf16.gmra.mxu0 %v211
  %v537 = vpop.f32.mrf.mxu0
  %v538 = vadd.f32 %v157, %v537
  %v539 = vpop.f32.mrf.mxu0
  %v540 = vadd.f32 %v157, %v539
  %541 = vmatmul.bf16.gmra.mxu0 %v214
  %v542 = vpop.f32.mrf.mxu0
  %v543 = vadd.f32 %v157, %v542
  %v544 = vpop.f32.mrf.mxu0
  %v545 = vadd.f32 %v157, %v544
  %546 = vmatmul.bf16.gmra.mxu0 %v217
  %v547 = vpop.f32.mrf.mxu0
  %v548 = vadd.f32 %v157, %v547
  %v549 = vpop.f32.mrf.mxu0
  %v550 = vadd.f32 %v157, %v549
  %551 = vmatmul.bf16.gmra.mxu0 %v220
  %v552 = vpop.f32.mrf.mxu0
  %v553 = vadd.f32 %v157, %v552
  %v554 = vpop.f32.mrf.mxu0
  %v555 = vadd.f32 %v157, %v554
  %556 = vmatmul.bf16.gmra.mxu0 %v223
  %v557 = vpop.f32.mrf.mxu0
  %v558 = vadd.f32 %v157, %v557
  %v559 = vpop.f32.mrf.mxu0
  %v560 = vadd.f32 %v157, %v559
  %561 = vmatmul.bf16.gmra.mxu0 %v226
  %v562 = vpop.f32.mrf.mxu0
  %v563 = vadd.f32 %v157, %v562
  %v564 = vpop.f32.mrf.mxu0
  %v565 = vadd.f32 %v157, %v564
  %566 = vmatmul.bf16.gmra.mxu0 %v229
  %v567 = vpop.f32.mrf.mxu0
  %v568 = vadd.f32 %v157, %v567
  %v569 = vpop.f32.mrf.mxu0
  %v570 = vadd.f32 %v157, %v569
  %571 = vmatmul.bf16.gmra.mxu0 %v232
  %v572 = vpop.f32.mrf.mxu0
  %v573 = vadd.f32 %v157, %v572
  %v574 = vpop.f32.mrf.mxu0
  %v575 = vadd.f32 %v157, %v574
  %576 = vmatmul.bf16.gmra.mxu0 %v235
  %v577 = vpop.f32.mrf.mxu0
  %v578 = vadd.f32 %v157, %v577
  %v579 = vpop.f32.mrf.mxu0
  %v580 = vadd.f32 %v157, %v579
  %581 = vmatmul.bf16.gmra.mxu0 %v238
  %v582 = vpop.f32.mrf.mxu0
  %v583 = vadd.f32 %v157, %v582
  %v584 = vpop.f32.mrf.mxu0
  %v585 = vadd.f32 %v157, %v584
  %586 = vmatmul.bf16.gmra.mxu0 %v241
  %v587 = vpop.f32.mrf.mxu0
  %v588 = vadd.f32 %v157, %v587
  %v589 = vpop.f32.mrf.mxu0
  %v590 = vadd.f32 %v157, %v589
  %591 = vmatmul.bf16.gmra.mxu0 %v244
  %v592 = vpop.f32.mrf.mxu0
  %v593 = vadd.f32 %v157, %v592
  %v594 = vpop.f32.mrf.mxu0
  %v595 = vadd.f32 %v157, %v594
  %596 = vmatmul.bf16.gmra.mxu0 %v247
  %v597 = vpop.f32.mrf.mxu0
  %v598 = vadd.f32 %v157, %v597
  %v599 = vpop.f32.mrf.mxu0
  %v600 = vadd.f32 %v157, %v599
  %601 = vmatmul.bf16.gmra.mxu0 %v250
  %v602 = vpop.f32.mrf.mxu0
  %v603 = vadd.f32 %v157, %v602
  %v604 = vpop.f32.mrf.mxu0
  %v605 = vadd.f32 %v157, %v604
  %606 = vmatmul.bf16.gmra.mxu0 %v253
  %v607 = vpop.f32.mrf.mxu0
  %v608 = vadd.f32 %v157, %v607
  %v609 = vpop.f32.mrf.mxu0
  %v610 = vadd.f32 %v157, %v609
  %611 = vmatmul.bf16.gmra.mxu0 %v256
  %v612 = vpop.f32.mrf.mxu0
  %v613 = vadd.f32 %v157, %v612
  %v614 = vpop.f32.mrf.mxu0
  %v615 = vadd.f32 %v157, %v614
  %616 = vmatmul.bf16.gmra.mxu0 %v259
  %v617 = vpop.f32.mrf.mxu0
  %v618 = vadd.f32 %v157, %v617
  %v619 = vpop.f32.mrf.mxu0
  %v620 = vadd.f32 %v157, %v619
  %621 = vmatmul.bf16.gmra.mxu0 %v262
  %v622 = vpop.f32.mrf.mxu0
  %v623 = vadd.f32 %v157, %v622
  %v624 = vpop.f32.mrf.mxu0
  %v625 = vadd.f32 %v157, %v624
  %626 = vmatmul.bf16.gmra.mxu0 %v265
  %v627 = vpop.f32.mrf.mxu0
  %v628 = vadd.f32 %v157, %v627
  %v629 = vpop.f32.mrf.mxu0
  %v630 = vadd.f32 %v157, %v629
  %631 = vmatmul.bf16.gmra.mxu0 %v268
  %v632 = vpop.f32.mrf.mxu0
  %v633 = vadd.f32 %v157, %v632
  %v634 = vpop.f32.mrf.mxu0
  %v635 = vadd.f32 %v157, %v634
  %636 = vmatmul.bf16.gmra.mxu0 %v271
  %v637 = vpop.f32.mrf.mxu0
  %v638 = vadd.f32 %v157, %v637
  %v639 = vpop.f32.mrf.mxu0
  %v640 = vadd.f32 %v157, %v639
  %641 = vmatmul.bf16.gmra.mxu0 %v274
  %v642 = vpop.f32.mrf.mxu0
  %v643 = vadd.f32 %v157, %v642
  %v644 = vpop.f32.mrf.mxu0
  %v645 = vadd.f32 %v157, %v644
  %646 = vmatmul.bf16.gmra.mxu0 %v277
  %v647 = vpop.f32.mrf.mxu0
  %v648 = vadd.f32 %v157, %v647
  %v649 = vpop.f32.mrf.mxu0
  %v650 = vadd.f32 %v157, %v649
  %651 = vmatmul.bf16.gmra.mxu0 %v280
  %v652 = vpop.f32.mrf.mxu0
  %v653 = vadd.f32 %v157, %v652
  %v654 = vpop.f32.mrf.mxu0
  %v655 = vadd.f32 %v157, %v654
  %656 = vmatmul.bf16.gmra.mxu0 %v283
  %v657 = vpop.f32.mrf.mxu0
  %v658 = vadd.f32 %v157, %v657
  %v659 = vpop.f32.mrf.mxu0
  %v660 = vadd.f32 %v157, %v659
  %661 = vmatmul.bf16.gmra.mxu0 %v286
  %v662 = vpop.f32.mrf.mxu0
  %v663 = vadd.f32 %v157, %v662
  %v664 = vpop.f32.mrf.mxu0
  %v665 = vadd.f32 %v157, %v664
  %666 = vmatmul.bf16.gmra.mxu0 %v289
  %v667 = vpop.f32.mrf.mxu0
  %v668 = vadd.f32 %v157, %v667
  %v669 = vpop.f32.mrf.mxu0
  %v670 = vadd.f32 %v157, %v669
  %671 = vmatmul.bf16.gmra.mxu0 %v292
  %v672 = vpop.f32.mrf.mxu0
  %v673 = vadd.f32 %v157, %v672
  %v674 = vpop.f32.mrf.mxu0
  %v675 = vadd.f32 %v157, %v674
  %676 = vmatmul.bf16.gmra.mxu0 %v295
  %v677 = vpop.f32.mrf.mxu0
  %v678 = vadd.f32 %v157, %v677
  %v679 = vpop.f32.mrf.mxu0
  %v680 = vadd.f32 %v157, %v679
  %681 = vmatmul.bf16.gmra.mxu0 %v298
  %v682 = vpop.f32.mrf.mxu0
  %v683 = vadd.f32 %v157, %v682
  %v684 = vpop.f32.mrf.mxu0
  %v685 = vadd.f32 %v157, %v684
  %686 = vmatmul.bf16.gmra.mxu0 %v301
  %v687 = vpop.f32.mrf.mxu0
  %v688 = vadd.f32 %v157, %v687
  %v689 = vpop.f32.mrf.mxu0
  %v690 = vadd.f32 %v157, %v689
  %691 = vmatmul.bf16.gmra.mxu0 %v304
  %v692 = vpop.f32.mrf.mxu0
  %v693 = vadd.f32 %v157, %v692
  %v694 = vpop.f32.mrf.mxu0
  %v695 = vadd.f32 %v157, %v694
  %696 = vmatmul.bf16.gmra.mxu0 %v307
  %v697 = vpop.f32.mrf.mxu0
  %v698 = vadd.f32 %v157, %v697
  %v699 = vpop.f32.mrf.mxu0
  %v700 = vadd.f32 %v157, %v699
  %701 = vmatmul.bf16.gmra.mxu0 %v310
  %v702 = vpop.f32.mrf.mxu0
  %v703 = vadd.f32 %v157, %v702
  %v704 = vpop.f32.mrf.mxu0
  %v705 = vadd.f32 %v157, %v704
  %706 = vmatmul.bf16.gmra.mxu0 %v313
  %v707 = vpop.f32.mrf.mxu0
  %v708 = vadd.f32 %v157, %v707
  %v709 = vpop.f32.mrf.mxu0
  %710 = vdwg.mxu0
  %v711 = vmax.f32 %v325, 0.0
  %v712 = vmax.f32 %v523, 0.0
  %v713 = vmax.f32 %v327, 0.0
  %v714 = vmax.f32 %v525, 0.0
  %v715 = vmax.f32 %v330, 0.0
  %v716 = vmax.f32 %v528, 0.0
  %v717 = vmax.f32 %v332, 0.0
  %v718 = vmax.f32 %v530, 0.0
  %v719 = vmax.f32 %v335, 0.0
  %v720 = vmax.f32 %v533, 0.0
  %v721 = vmax.f32 %v337, 0.0
  %v722 = vmax.f32 %v535, 0.0
  %v723 = vmax.f32 %v340, 0.0
  %v724 = vmax.f32 %v538, 0.0
  %v725 = vmax.f32 %v342, 0.0
  %v726 = vmax.f32 %v540, 0.0
  %v727 = vmax.f32 %v345, 0.0
  %v728 = vmax.f32 %v543, 0.0
  %v729 = vmax.f32 %v347, 0.0
  %v730 = vmax.f32 %v545, 0.0
  %v731 = vmax.f32 %v350, 0.0
  %v732 = vmax.f32 %v548, 0.0
  %v733 = vmax.f32 %v352, 0.0
  %v734 = vmax.f32 %v550, 0.0
  %v735 = vmax.f32 %v355, 0.0
  %v736 = vmax.f32 %v553, 0.0
  %v737 = vmax.f32 %v357, 0.0
  %v738 = vmax.f32 %v555, 0.0
  %v739 = vmax.f32 %v360, 0.0
  %v740 = vmax.f32 %v558, 0.0
  %v741 = vmax.f32 %v362, 0.0
  %v742 = vmax.f32 %v560, 0.0
  %v743 = vmax.f32 %v365, 0.0
  %v744 = vmax.f32 %v563, 0.0
  %v745 = vmax.f32 %v367, 0.0
  %v746 = vmax.f32 %v565, 0.0
  %v747 = vmax.f32 %v370, 0.0
  %v748 = vmax.f32 %v568, 0.0
  %v749 = vmax.f32 %v372, 0.0
  %v750 = vmax.f32 %v570, 0.0
  %v751 = vmax.f32 %v375, 0.0
  %v752 = vmax.f32 %v573, 0.0
  %v753 = vmax.f32 %v377, 0.0
  %v754 = vmax.f32 %v575, 0.0
  %v755 = vmax.f32 %v380, 0.0
  %v756 = vmax.f32 %v578, 0.0
  %v757 = vmax.f32 %v382, 0.0
  %v758 = vmax.f32 %v580, 0.0
  %v759 = vmax.f32 %v385, 0.0
  %v760 = vmax.f32 %v583, 0.0
  %v761 = vmax.f32 %v387, 0.0
  %v762 = vmax.f32 %v585, 0.0
  %v763 = vmax.f32 %v390, 0.0
  %v764 = vmax.f32 %v588, 0.0
  %v765 = vmax.f32 %v392, 0.0
  %v766 = vmax.f32 %v590, 0.0
  %v767 = vmax.f32 %v395, 0.0
  %v768 = vmax.f32 %v593, 0.0
  %v769 = vmax.f32 %v397, 0.0
  %v770 = vmax.f32 %v595, 0.0
  %v771 = vmax.f32 %v400, 0.0
  %v772 = vmax.f32 %v598, 0.0
  %v773 = vmax.f32 %v402, 0.0
  %v774 = vmax.f32 %v600, 0.0
  %v775 = vmax.f32 %v405, 0.0
  %v776 = vmax.f32 %v603, 0.0
  %v777 = vmax.f32 %v407, 0.0
  %v778 = vmax.f32 %v605, 0.0
  %v779 = vmax.f32 %v410, 0.0
  %v780 = vmax.f32 %v608, 0.0
  %v781 = vmax.f32 %v412, 0.0
  %v782 = vmax.f32 %v610, 0.0
  %v783 = vmax.f32 %v415, 0.0
  %v784 = vmax.f32 %v613, 0.0
  %v785 = vmax.f32 %v417, 0.0
  %v786 = vmax.f32 %v615, 0.0
  %v787 = vmax.f32 %v420, 0.0
  %v788 = vmax.f32 %v618, 0.0
  %v789 = vmax.f32 %v422, 0.0
  %v790 = vmax.f32 %v620, 0.0
  %v791 = vmax.f32 %v425, 0.0
  %v792 = vmax.f32 %v623, 0.0
  %v793 = vmax.f32 %v427, 0.0
  %v794 = vmax.f32 %v625, 0.0
  %v795 = vmax.f32 %v430, 0.0
  %v796 = vmax.f32 %v628, 0.0
  %v797 = vmax.f32 %v432, 0.0
  %v798 = vmax.f32 %v630, 0.0
  %v799 = vmax.f32 %v435, 0.0
  %v800 = vmax.f32 %v633, 0.0
  %v801 = vmax.f32 %v437, 0.0
  %v802 = vmax.f32 %v635, 0.0
  %v803 = vmax.f32 %v440, 0.0
  %v804 = vmax.f32 %v638, 0.0
  %v805 = vmax.f32 %v442, 0.0
  %v806 = vmax.f32 %v640, 0.0
  %v807 = vmax.f32 %v445, 0.0
  %v808 = vmax.f32 %v643, 0.0
  %v809 = vmax.f32 %v447, 0.0
  %v810 = vmax.f32 %v645, 0.0
  %v811 = vmax.f32 %v450, 0.0
  %v812 = vmax.f32 %v648, 0.0
  %v813 = vmax.f32 %v452, 0.0
  %v814 = vmax.f32 %v650, 0.0
  %v815 = vmax.f32 %v455, 0.0
  %v816 = vmax.f32 %v653, 0.0
  %v817 = vmax.f32 %v457, 0.0
  %v818 = vmax.f32 %v655, 0.0
  %v819 = vmax.f32 %v460, 0.0
  %v820 = vmax.f32 %v658, 0.0
  %v821 = vmax.f32 %v462, 0.0
  %v822 = vmax.f32 %v660, 0.0
  %v823 = vmax.f32 %v465, 0.0
  %v824 = vmax.f32 %v663, 0.0
  %v825 = vmax.f32 %v467, 0.0
  %v826 = vmax.f32 %v665, 0.0
  %v827 = vmax.f32 %v470, 0.0
  %v828 = vmax.f32 %v668, 0.0
  %v829 = vmax.f32 %v472, 0.0
  %v830 = vmax.f32 %v670, 0.0
  %v831 = vmax.f32 %v475, 0.0
  %v832 = vmax.f32 %v673, 0.0
  %v833 = vmax.f32 %v477, 0.0
  %v834 = vmax.f32 %v675, 0.0
  %v835 = vmax.f32 %v480, 0.0
  %v836 = vmax.f32 %v678, 0.0
  %v837 = vmax.f32 %v482, 0.0
  %v838 = vmax.f32 %v680, 0.0
  %v839 = vmax.f32 %v485, 0.0
  %v840 = vmax.f32 %v683, 0.0
  %v841 = vmax.f32 %v487, 0.0
  %v842 = vmax.f32 %v685, 0.0
  %v843 = vmax.f32 %v490, 0.0
  %v844 = vmax.f32 %v688, 0.0
  %v845 = vmax.f32 %v492, 0.0
  %v846 = vmax.f32 %v690, 0.0
  %v847 = vmax.f32 %v495, 0.0
  %v848 = vmax.f32 %v693, 0.0
  %v849 = vmax.f32 %v497, 0.0
  %v850 = vmax.f32 %v695, 0.0
  %v851 = vmax.f32 %v500, 0.0
  %v852 = vmax.f32 %v698, 0.0
  %v853 = vmax.f32 %v502, 0.0
  %v854 = vmax.f32 %v700, 0.0
  %v855 = vmax.f32 %v505, 0.0
  %v856 = vmax.f32 %v703, 0.0
  %v857 = vmax.f32 %v507, 0.0
  %v858 = vmax.f32 %v705, 0.0
  %v859 = vmax.f32 %v510, 0.0
  %v860 = vmax.f32 %v708, 0.0
  %v861 = vpack.c.bf16 %v713, %v711
  %v862 = vpack.c.bf16 %v714, %v712
  %v863 = vpack.c.bf16 %v717, %v715
  %v864 = vpack.c.bf16 %v718, %v716
  %v865 = vpack.c.bf16 %v721, %v719
  %v866 = vpack.c.bf16 %v722, %v720
  %v867 = vpack.c.bf16 %v725, %v723
  %v868 = vpack.c.bf16 %v726, %v724
  %v869 = vpack.c.bf16 %v729, %v727
  %v870 = vpack.c.bf16 %v730, %v728
  %v871 = vpack.c.bf16 %v733, %v731
  %v872 = vpack.c.bf16 %v734, %v732
  %v873 = vpack.c.bf16 %v737, %v735
  %v874 = vpack.c.bf16 %v738, %v736
  %v875 = vpack.c.bf16 %v741, %v739
  %v876 = vpack.c.bf16 %v742, %v740
  %v877 = vpack.c.bf16 %v745, %v743
  %v878 = vpack.c.bf16 %v746, %v744
  %v879 = vpack.c.bf16 %v749, %v747
  %v880 = vpack.c.bf16 %v750, %v748
  %v881 = vpack.c.bf16 %v753, %v751
  %v882 = vpack.c.bf16 %v754, %v752
  %v883 = vpack.c.bf16 %v757, %v755
  %v884 = vpack.c.bf16 %v758, %v756
  %v885 = vpack.c.bf16 %v761, %v759
  %v886 = vpack.c.bf16 %v762, %v760
  %v887 = vpack.c.bf16 %v765, %v763
  %v888 = vpack.c.bf16 %v766, %v764
  %v889 = vpack.c.bf16 %v769, %v767
  %v890 = vpack.c.bf16 %v770, %v768
  %v891 = vpack.c.bf16 %v773, %v771
  %v892 = vpack.c.bf16 %v774, %v772
  %v893 = vpack.c.bf16 %v777, %v775
  %v894 = vpack.c.bf16 %v778, %v776
  %v895 = vpack.c.bf16 %v781, %v779
  %v896 = vpack.c.bf16 %v782, %v780
  %v897 = vpack.c.bf16 %v785, %v783
  %v898 = vpack.c.bf16 %v786, %v784
  %v899 = vpack.c.bf16 %v789, %v787
  %v900 = vpack.c.bf16 %v790, %v788
  %v901 = vpack.c.bf16 %v793, %v791
  %v902 = vpack.c.bf16 %v794, %v792
  %v903 = vpack.c.bf16 %v797, %v795
  %v904 = vpack.c.bf16 %v798, %v796
  %v905 = vpack.c.bf16 %v801, %v799
  %v906 = vpack.c.bf16 %v802, %v800
  %v907 = vpack.c.bf16 %v805, %v803
  %v908 = vpack.c.bf16 %v806, %v804
  %v909 = vpack.c.bf16 %v809, %v807
  %v910 = vpack.c.bf16 %v810, %v808
  %v911 = vpack.c.bf16 %v813, %v811
  %v912 = vpack.c.bf16 %v814, %v812
  %v913 = vpack.c.bf16 %v817, %v815
  %v914 = vpack.c.bf16 %v818, %v816
  %v915 = vpack.c.bf16 %v821, %v819
  %v916 = vpack.c.bf16 %v822, %v820
  %v917 = vpack.c.bf16 %v825, %v823
  %v918 = vpack.c.bf16 %v826, %v824
  %v919 = vpack.c.bf16 %v829, %v827
  %v920 = vpack.c.bf16 %v830, %v828
  %v921 = vpack.c.bf16 %v833, %v831
  %v922 = vpack.c.bf16 %v834, %v832
  %v923 = vpack.c.bf16 %v837, %v835
  %v924 = vpack.c.bf16 %v838, %v836
  %v925 = vpack.c.bf16 %v841, %v839
  %v926 = vpack.c.bf16 %v842, %v840
  %v927 = vpack.c.bf16 %v845, %v843
  %v928 = vpack.c.bf16 %v846, %v844
  %v929 = vpack.c.bf16 %v849, %v847
  %v930 = vpack.c.bf16 %v850, %v848
  %v931 = vpack.c.bf16 %v853, %v851
  %v932 = vpack.c.bf16 %v854, %v852
  %v933 = vpack.c.bf16 %v857, %v855
  %v934 = vpack.c.bf16 %v858, %v856
  %v935 = vpack.c.bf16 %v859, %v859
  %v936 = vpack.c.bf16 %v860, %v860
  %v937 = vld [vmem:[%s3] sm:$0xff]
  %v938 = vld [vmem:[%s3 + $0x8] sm:$0xff]
  %v939 = vld [vmem:[%s3 + $0x10] sm:$0xff]
  %v940 = vld [vmem:[%s3 + $0x18] sm:$0xff]
  %v941 = vld [vmem:[%s3 + $0x20] sm:$0xff]
  %v942 = vld [vmem:[%s3 + $0x28] sm:$0xff]
  %v943 = vld [vmem:[%s3 + $0x30] sm:$0xff]
  %v944 = vld [vmem:[%s3 + $0x38] sm:$0xff]
  %v945 = vld [vmem:[%s3 + $0x40] sm:$0xff]
  %v946 = vld [vmem:[%s3 + $0x48] sm:$0xff]
  %v947 = vld [vmem:[%s3 + $0x50] sm:$0xff]
  %v948 = vld [vmem:[%s3 + $0x58] sm:$0xff]
  %v949 = vld [vmem:[%s3 + $0x60] sm:$0xff]
  %v950 = vld [vmem:[%s3 + $0x68] sm:$0xff]
  %v951 = vld [vmem:[%s3 + $0x70] sm:$0xff]
  %v952 = vld [vmem:[%s3 + $0x78] sm:$0xff]
  %v953 = vld [vmem:[%s3 + $0x80] sm:$0xff]
  %v954 = vld [vmem:[%s3 + $0x88] sm:$0xff]
  %v955 = vld [vmem:[%s3 + $0x90] sm:$0xff]
  %v956 = vld [vmem:[%s3 + $0x98] sm:$0xff]
  %v957 = vld [vmem:[%s3 + $0xa0] sm:$0xff]
  %v958 = vld [vmem:[%s3 + $0xa8] sm:$0xff]
  %v959 = vld [vmem:[%s3 + $0xb0] sm:$0xff]
  %v960 = vld [vmem:[%s3 + $0xb8] sm:$0xff]
  %v961 = vld [vmem:[%s3 + $0xc0] sm:$0xff]
  %v962 = vld [vmem:[%s3 + $0xc8] sm:$0xff]
  %v963 = vld [vmem:[%s3 + $0xd0] sm:$0xff]
  %v964 = vld [vmem:[%s3 + $0xd8] sm:$0xff]
  %v965 = vld [vmem:[%s3 + $0xe0] sm:$0xff]
  %v966 = vld [vmem:[%s3 + $0xe8] sm:$0xff]
  %v967 = vld [vmem:[%s3 + $0xf0] sm:$0xff]
  %v968 = vld [vmem:[%s3 + $0xf8] sm:$0xff]
  %v969 = vld [vmem:[%s4] sm:$0x3]
  %v971 = vperm.slane %v969, 0
  %v972 = vperm.slane %v969, 1
  %v1007 = vunpack.c.l.b16 %v937
  %v1008 = vunpack.c.h.b16 %v937
  %v1009 = vunpack.c.l.b16 %v938
  %v1010 = vunpack.c.h.b16 %v938
  %v1011 = vunpack.c.l.b16 %v939
  %v1012 = vunpack.c.h.b16 %v939
  %v1013 = vunpack.c.l.b16 %v940
  %v1014 = vunpack.c.h.b16 %v940
  %v1015 = vunpack.c.l.b16 %v941
  %v1016 = vunpack.c.h.b16 %v941
  %v1017 = vunpack.c.l.b16 %v942
  %v1018 = vunpack.c.h.b16 %v942
  %v1019 = vunpack.c.l.b16 %v943
  %v1020 = vunpack.c.h.b16 %v943
  %v1021 = vunpack.c.l.b16 %v944
  %v1022 = vunpack.c.h.b16 %v944
  %v1023 = vunpack.c.l.b16 %v945
  %v1024 = vunpack.c.h.b16 %v945
  %v1025 = vunpack.c.l.b16 %v946
  %v1026 = vunpack.c.h.b16 %v946
  %v1027 = vunpack.c.l.b16 %v947
  %v1028 = vunpack.c.h.b16 %v947
  %v1029 = vunpack.c.l.b16 %v948
  %v1030 = vunpack.c.h.b16 %v948
  %v1031 = vunpack.c.l.b16 %v949
  %v1032 = vunpack.c.h.b16 %v949
  %v1033 = vunpack.c.l.b16 %v950
  %v1034 = vunpack.c.h.b16 %v950
  %v1035 = vunpack.c.l.b16 %v951
  %v1036 = vunpack.c.h.b16 %v951
  %v1037 = vunpack.c.l.b16 %v952
  %v1038 = vunpack.c.h.b16 %v952
  %v1039 = vunpack.c.l.b16 %v953
  %v1040 = vunpack.c.h.b16 %v953
  %v1041 = vunpack.c.l.b16 %v954
  %v1042 = vunpack.c.h.b16 %v954
  %v1043 = vunpack.c.l.b16 %v955
  %v1044 = vunpack.c.h.b16 %v955
  %v1045 = vunpack.c.l.b16 %v956
  %v1046 = vunpack.c.h.b16 %v956
  %v1047 = vunpack.c.l.b16 %v957
  %v1048 = vunpack.c.h.b16 %v957
  %v1049 = vunpack.c.l.b16 %v958
  %v1050 = vunpack.c.h.b16 %v958
  %v1051 = vunpack.c.l.b16 %v959
  %v1052 = vunpack.c.h.b16 %v959
  %v1053 = vunpack.c.l.b16 %v960
  %v1054 = vunpack.c.h.b16 %v960
  %v1055 = vunpack.c.l.b16 %v961
  %v1056 = vunpack.c.h.b16 %v961
  %v1057 = vunpack.c.l.b16 %v962
  %v1058 = vunpack.c.h.b16 %v962
  %v1059 = vunpack.c.l.b16 %v963
  %v1060 = vunpack.c.h.b16 %v963
  %v1061 = vunpack.c.l.b16 %v964
  %v1062 = vunpack.c.h.b16 %v964
  %v1063 = vunpack.c.l.b16 %v965
  %v1064 = vunpack.c.h.b16 %v965
  %v1065 = vunpack.c.l.b16 %v966
  %v1066 = vunpack.c.h.b16 %v966
  %v1067 = vunpack.c.l.b16 %v967
  %v1068 = vunpack.c.h.b16 %v967
  %v1069 = vunpack.c.l.b16 %v968
  %v1070 = vunpack.c.h.b16 %v968
  %v1071 = vpack.c.b16 %v1009, %v1007
  %v1072 = vpack.c.b16 %v1010, %v1008
  %v1073 = vpack.c.b16 %v1013, %v1011
  %v1074 = vpack.c.b16 %v1014, %v1012
  %v1075 = vpack.c.b16 %v1017, %v1015
  %v1076 = vpack.c.b16 %v1018, %v1016
  %v1077 = vpack.c.b16 %v1021, %v1019
  %v1078 = vpack.c.b16 %v1022, %v1020
  %v1079 = vpack.c.b16 %v1025, %v1023
  %v1080 = vpack.c.b16 %v1026, %v1024
  %v1081 = vpack.c.b16 %v1029, %v1027
  %v1082 = vpack.c.b16 %v1030, %v1028
  %v1083 = vpack.c.b16 %v1033, %v1031
  %v1084 = vpack.c.b16 %v1034, %v1032
  %v1085 = vpack.c.b16 %v1037, %v1035
  %v1086 = vpack.c.b16 %v1038, %v1036
  %v1087 = vpack.c.b16 %v1041, %v1039
  %v1088 = vpack.c.b16 %v1042, %v1040
  %v1089 = vpack.c.b16 %v1045, %v1043
  %v1090 = vpack.c.b16 %v1046, %v1044
  %v1091 = vpack.c.b16 %v1049, %v1047
  %v1092 = vpack.c.b16 %v1050, %v1048
  %v1093 = vpack.c.b16 %v1053, %v1051
  %v1094 = vpack.c.b16 %v1054, %v1052
  %v1095 = vpack.c.b16 %v1057, %v1055
  %v1096 = vpack.c.b16 %v1058, %v1056
  %v1097 = vpack.c.b16 %v1061, %v1059
  %v1098 = vpack.c.b16 %v1062, %v1060
  %v1099 = vpack.c.b16 %v1065, %v1063
  %v1100 = vpack.c.b16 %v1066, %v1064
  %v1101 = vpack.c.b16 %v1069, %v1067
  %v1102 = vpack.c.b16 %v1070, %v1068
  %1135 = vmatpush.bf16.msra.mxu0 %v1085
  %1136 = vmatpush.bf16.msra.mxu0 %v1083
  %1137 = vmatpush.bf16.msra.mxu0 %v1081
  %1138 = vmatpush.bf16.msra.mxu0 %v1079
  %1139 = vmatpush.bf16.msra.mxu0 %v1077
  %1140 = vmatpush.bf16.msra.mxu0 %v1075
  %1141 = vmatpush.bf16.msra.mxu0 %v1073
  %1142 = vmatpush.bf16.msra.mxu0 %v1071
  %1143 = vmatmul.bf16.gmra.mxu0 %v861
  %v1144 = vpop.f32.mrf.mxu0
  %v1145 = vadd.f32 %v971, %v1144
  %v1146 = vpop.f32.mrf.mxu0
  %v1147 = vadd.f32 %v971, %v1146
  %1148 = vmatmul.bf16.gmra.mxu0 %v863
  %v1149 = vpop.f32.mrf.mxu0
  %v1150 = vadd.f32 %v971, %v1149
  %v1151 = vpop.f32.mrf.mxu0
  %v1152 = vadd.f32 %v971, %v1151
  %1153 = vmatmul.bf16.gmra.mxu0 %v865
  %v1154 = vpop.f32.mrf.mxu0
  %v1155 = vadd.f32 %v971, %v1154
  %v1156 = vpop.f32.mrf.mxu0
  %v1157 = vadd.f32 %v971, %v1156
  %1158 = vmatmul.bf16.gmra.mxu0 %v867
  %v1159 = vpop.f32.mrf.mxu0
  %v1160 = vadd.f32 %v971, %v1159
  %v1161 = vpop.f32.mrf.mxu0
  %v1162 = vadd.f32 %v971, %v1161
  %1163 = vmatmul.bf16.gmra.mxu0 %v869
  %v1164 = vpop.f32.mrf.mxu0
  %v1165 = vadd.f32 %v971, %v1164
  %v1166 = vpop.f32.mrf.mxu0
  %v1167 = vadd.f32 %v971, %v1166
  %1168 = vmatmul.bf16.gmra.mxu0 %v871
  %v1169 = vpop.f32.mrf.mxu0
  %v1170 = vadd.f32 %v971, %v1169
  %v1171 = vpop.f32.mrf.mxu0
  %v1172 = vadd.f32 %v971, %v1171
  %1173 = vmatmul.bf16.gmra.mxu0 %v873
  %v1174 = vpop.f32.mrf.mxu0
  %v1175 = vadd.f32 %v971, %v1174
  %v1176 = vpop.f32.mrf.mxu0
  %v1177 = vadd.f32 %v971, %v1176
  %1178 = vmatmul.bf16.gmra.mxu0 %v875
  %v1179 = vpop.f32.mrf.mxu0
  %v1180 = vadd.f32 %v971, %v1179
  %v1181 = vpop.f32.mrf.mxu0
  %v1182 = vadd.f32 %v971, %v1181
  %1183 = vmatmul.bf16.gmra.mxu0 %v877
  %v1184 = vpop.f32.mrf.mxu0
  %v1185 = vadd.f32 %v971, %v1184
  %v1186 = vpop.f32.mrf.mxu0
  %v1187 = vadd.f32 %v971, %v1186
  %1188 = vmatmul.bf16.gmra.mxu0 %v879
  %v1189 = vpop.f32.mrf.mxu0
  %v1190 = vadd.f32 %v971, %v1189
  %v1191 = vpop.f32.mrf.mxu0
  %v1192 = vadd.f32 %v971, %v1191
  %1193 = vmatmul.bf16.gmra.mxu0 %v881
  %v1194 = vpop.f32.mrf.mxu0
  %v1195 = vadd.f32 %v971, %v1194
  %v1196 = vpop.f32.mrf.mxu0
  %v1197 = vadd.f32 %v971, %v1196
  %1198 = vmatmul.bf16.gmra.mxu0 %v883
  %v1199 = vpop.f32.mrf.mxu0
  %v1200 = vadd.f32 %v971, %v1199
  %v1201 = vpop.f32.mrf.mxu0
  %v1202 = vadd.f32 %v971, %v1201
  %1203 = vmatmul.bf16.gmra.mxu0 %v885
  %v1204 = vpop.f32.mrf.mxu0
  %v1205 = vadd.f32 %v971, %v1204
  %v1206 = vpop.f32.mrf.mxu0
  %v1207 = vadd.f32 %v971, %v1206
  %1208 = vmatmul.bf16.gmra.mxu0 %v887
  %v1209 = vpop.f32.mrf.mxu0
  %v1210 = vadd.f32 %v971, %v1209
  %v1211 = vpop.f32.mrf.mxu0
  %v1212 = vadd.f32 %v971, %v1211
  %1213 = vmatmul.bf16.gmra.mxu0 %v889
  %v1214 = vpop.f32.mrf.mxu0
  %v1215 = vadd.f32 %v971, %v1214
  %v1216 = vpop.f32.mrf.mxu0
  %v1217 = vadd.f32 %v971, %v1216
  %1218 = vmatmul.bf16.gmra.mxu0 %v891
  %v1219 = vpop.f32.mrf.mxu0
  %v1220 = vadd.f32 %v971, %v1219
  %v1221 = vpop.f32.mrf.mxu0
  %v1222 = vadd.f32 %v971, %v1221
  %1223 = vmatmul.bf16.gmra.mxu0 %v893
  %v1224 = vpop.f32.mrf.mxu0
  %v1225 = vadd.f32 %v971, %v1224
  %v1226 = vpop.f32.mrf.mxu0
  %v1227 = vadd.f32 %v971, %v1226
  %1228 = vmatmul.bf16.gmra.mxu0 %v895
  %v1229 = vpop.f32.mrf.mxu0
  %v1230 = vadd.f32 %v971, %v1229
  %v1231 = vpop.f32.mrf.mxu0
  %v1232 = vadd.f32 %v971, %v1231
  %1233 = vmatmul.bf16.gmra.mxu0 %v897
  %v1234 = vpop.f32.mrf.mxu0
  %v1235 = vadd.f32 %v971, %v1234
  %v1236 = vpop.f32.mrf.mxu0
  %v1237 = vadd.f32 %v971, %v1236
  %1238 = vmatmul.bf16.gmra.mxu0 %v899
  %v1239 = vpop.f32.mrf.mxu0
  %v1240 = vadd.f32 %v971, %v1239
  %v1241 = vpop.f32.mrf.mxu0
  %v1242 = vadd.f32 %v971, %v1241
  %1243 = vmatmul.bf16.gmra.mxu0 %v901
  %v1244 = vpop.f32.mrf.mxu0
  %v1245 = vadd.f32 %v971, %v1244
  %v1246 = vpop.f32.mrf.mxu0
  %v1247 = vadd.f32 %v971, %v1246
  %1248 = vmatmul.bf16.gmra.mxu0 %v903
  %v1249 = vpop.f32.mrf.mxu0
  %v1250 = vadd.f32 %v971, %v1249
  %v1251 = vpop.f32.mrf.mxu0
  %v1252 = vadd.f32 %v971, %v1251
  %1253 = vmatmul.bf16.gmra.mxu0 %v905
  %v1254 = vpop.f32.mrf.mxu0
  %v1255 = vadd.f32 %v971, %v1254
  %v1256 = vpop.f32.mrf.mxu0
  %v1257 = vadd.f32 %v971, %v1256
  %1258 = vmatmul.bf16.gmra.mxu0 %v907
  %v1259 = vpop.f32.mrf.mxu0
  %v1260 = vadd.f32 %v971, %v1259
  %v1261 = vpop.f32.mrf.mxu0
  %v1262 = vadd.f32 %v971, %v1261
  %1263 = vmatmul.bf16.gmra.mxu0 %v909
  %v1264 = vpop.f32.mrf.mxu0
  %v1265 = vadd.f32 %v971, %v1264
  %v1266 = vpop.f32.mrf.mxu0
  %v1267 = vadd.f32 %v971, %v1266
  %1268 = vmatmul.bf16.gmra.mxu0 %v911
  %v1269 = vpop.f32.mrf.mxu0
  %v1270 = vadd.f32 %v971, %v1269
  %v1271 = vpop.f32.mrf.mxu0
  %v1272 = vadd.f32 %v971, %v1271
  %1273 = vmatmul.bf16.gmra.mxu0 %v913
  %v1274 = vpop.f32.mrf.mxu0
  %v1275 = vadd.f32 %v971, %v1274
  %v1276 = vpop.f32.mrf.mxu0
  %v1277 = vadd.f32 %v971, %v1276
  %1278 = vmatmul.bf16.gmra.mxu0 %v915
  %v1279 = vpop.f32.mrf.mxu0
  %v1280 = vadd.f32 %v971, %v1279
  %v1281 = vpop.f32.mrf.mxu0
  %v1282 = vadd.f32 %v971, %v1281
  %1283 = vmatmul.bf16.gmra.mxu0 %v917
  %v1284 = vpop.f32.mrf.mxu0
  %v1285 = vadd.f32 %v971, %v1284
  %v1286 = vpop.f32.mrf.mxu0
  %v1287 = vadd.f32 %v971, %v1286
  %1288 = vmatmul.bf16.gmra.mxu0 %v919
  %v1289 = vpop.f32.mrf.mxu0
  %v1290 = vadd.f32 %v971, %v1289
  %v1291 = vpop.f32.mrf.mxu0
  %v1292 = vadd.f32 %v971, %v1291
  %1293 = vmatmul.bf16.gmra.mxu0 %v921
  %v1294 = vpop.f32.mrf.mxu0
  %v1295 = vadd.f32 %v971, %v1294
  %v1296 = vpop.f32.mrf.mxu0
  %v1297 = vadd.f32 %v971, %v1296
  %1298 = vmatmul.bf16.gmra.mxu0 %v923
  %v1299 = vpop.f32.mrf.mxu0
  %v1300 = vadd.f32 %v971, %v1299
  %v1301 = vpop.f32.mrf.mxu0
  %v1302 = vadd.f32 %v971, %v1301
  %1303 = vmatmul.bf16.gmra.mxu0 %v925
  %v1304 = vpop.f32.mrf.mxu0
  %v1305 = vadd.f32 %v971, %v1304
  %v1306 = vpop.f32.mrf.mxu0
  %v1307 = vadd.f32 %v971, %v1306
  %1308 = vmatmul.bf16.gmra.mxu0 %v927
  %v1309 = vpop.f32.mrf.mxu0
  %v1310 = vadd.f32 %v971, %v1309
  %v1311 = vpop.f32.mrf.mxu0
  %v1312 = vadd.f32 %v971, %v1311
  %1313 = vmatmul.bf16.gmra.mxu0 %v929
  %v1314 = vpop.f32.mrf.mxu0
  %v1315 = vadd.f32 %v971, %v1314
  %v1316 = vpop.f32.mrf.mxu0
  %v1317 = vadd.f32 %v971, %v1316
  %1318 = vmatmul.bf16.gmra.mxu0 %v931
  %v1319 = vpop.f32.mrf.mxu0
  %v1320 = vadd.f32 %v971, %v1319
  %v1321 = vpop.f32.mrf.mxu0
  %v1322 = vadd.f32 %v971, %v1321
  %1323 = vmatmul.bf16.gmra.mxu0 %v933
  %v1324 = vpop.f32.mrf.mxu0
  %v1325 = vadd.f32 %v971, %v1324
  %v1326 = vpop.f32.mrf.mxu0
  %v1327 = vadd.f32 %v971, %v1326
  %1328 = vmatmul.bf16.gmra.mxu0 %v935
  %v1329 = vpop.f32.mrf.mxu0
  %v1330 = vadd.f32 %v971, %v1329
  %v1331 = vpop.f32.mrf.mxu0
  %1332 = vdwg.mxu0
  %1333 = vmatpush.bf16.msra.mxu0 %v1101
  %1334 = vmatpush.bf16.msra.mxu0 %v1099
  %1335 = vmatpush.bf16.msra.mxu0 %v1097
  %1336 = vmatpush.bf16.msra.mxu0 %v1095
  %1337 = vmatpush.bf16.msra.mxu0 %v1093
  %1338 = vmatpush.bf16.msra.mxu0 %v1091
  %1339 = vmatpush.bf16.msra.mxu0 %v1089
  %1340 = vmatpush.bf16.msra.mxu0 %v1087
  %1341 = vmatmul.bf16.gmra.mxu0 %v862
  %v1342 = vpop.f32.mrf.mxu0
  %v1343 = vadd.f32 %v1145, %v1342
  %v1344 = vpop.f32.mrf.mxu0
  %v1345 = vadd.f32 %v1147, %v1344
  %1346 = vmatmul.bf16.gmra.mxu0 %v864
  %v1347 = vpop.f32.mrf.mxu0
  %v1348 = vadd.f32 %v1150, %v1347
  %v1349 = vpop.f32.mrf.mxu0
  %v1350 = vadd.f32 %v1152, %v1349
  %1351 = vmatmul.bf16.gmra.mxu0 %v866
  %v1352 = vpop.f32.mrf.mxu0
  %v1353 = vadd.f32 %v1155, %v1352
  %v1354 = vpop.f32.mrf.mxu0
  %v1355 = vadd.f32 %v1157, %v1354
  %1356 = vmatmul.bf16.gmra.mxu0 %v868
  %v1357 = vpop.f32.mrf.mxu0
  %v1358 = vadd.f32 %v1160, %v1357
  %v1359 = vpop.f32.mrf.mxu0
  %v1360 = vadd.f32 %v1162, %v1359
  %1361 = vmatmul.bf16.gmra.mxu0 %v870
  %v1362 = vpop.f32.mrf.mxu0
  %v1363 = vadd.f32 %v1165, %v1362
  %v1364 = vpop.f32.mrf.mxu0
  %v1365 = vadd.f32 %v1167, %v1364
  %1366 = vmatmul.bf16.gmra.mxu0 %v872
  %v1367 = vpop.f32.mrf.mxu0
  %v1368 = vadd.f32 %v1170, %v1367
  %v1369 = vpop.f32.mrf.mxu0
  %v1370 = vadd.f32 %v1172, %v1369
  %1371 = vmatmul.bf16.gmra.mxu0 %v874
  %v1372 = vpop.f32.mrf.mxu0
  %v1373 = vadd.f32 %v1175, %v1372
  %v1374 = vpop.f32.mrf.mxu0
  %v1375 = vadd.f32 %v1177, %v1374
  %1376 = vmatmul.bf16.gmra.mxu0 %v876
  %v1377 = vpop.f32.mrf.mxu0
  %v1378 = vadd.f32 %v1180, %v1377
  %v1379 = vpop.f32.mrf.mxu0
  %v1380 = vadd.f32 %v1182, %v1379
  %1381 = vmatmul.bf16.gmra.mxu0 %v878
  %v1382 = vpop.f32.mrf.mxu0
  %v1383 = vadd.f32 %v1185, %v1382
  %v1384 = vpop.f32.mrf.mxu0
  %v1385 = vadd.f32 %v1187, %v1384
  %1386 = vmatmul.bf16.gmra.mxu0 %v880
  %v1387 = vpop.f32.mrf.mxu0
  %v1388 = vadd.f32 %v1190, %v1387
  %v1389 = vpop.f32.mrf.mxu0
  %v1390 = vadd.f32 %v1192, %v1389
  %1391 = vmatmul.bf16.gmra.mxu0 %v882
  %v1392 = vpop.f32.mrf.mxu0
  %v1393 = vadd.f32 %v1195, %v1392
  %v1394 = vpop.f32.mrf.mxu0
  %v1395 = vadd.f32 %v1197, %v1394
  %1396 = vmatmul.bf16.gmra.mxu0 %v884
  %v1397 = vpop.f32.mrf.mxu0
  %v1398 = vadd.f32 %v1200, %v1397
  %v1399 = vpop.f32.mrf.mxu0
  %v1400 = vadd.f32 %v1202, %v1399
  %1401 = vmatmul.bf16.gmra.mxu0 %v886
  %v1402 = vpop.f32.mrf.mxu0
  %v1403 = vadd.f32 %v1205, %v1402
  %v1404 = vpop.f32.mrf.mxu0
  %v1405 = vadd.f32 %v1207, %v1404
  %1406 = vmatmul.bf16.gmra.mxu0 %v888
  %v1407 = vpop.f32.mrf.mxu0
  %v1408 = vadd.f32 %v1210, %v1407
  %v1409 = vpop.f32.mrf.mxu0
  %v1410 = vadd.f32 %v1212, %v1409
  %1411 = vmatmul.bf16.gmra.mxu0 %v890
  %v1412 = vpop.f32.mrf.mxu0
  %v1413 = vadd.f32 %v1215, %v1412
  %v1414 = vpop.f32.mrf.mxu0
  %v1415 = vadd.f32 %v1217, %v1414
  %1416 = vmatmul.bf16.gmra.mxu0 %v892
  %v1417 = vpop.f32.mrf.mxu0
  %v1418 = vadd.f32 %v1220, %v1417
  %v1419 = vpop.f32.mrf.mxu0
  %v1420 = vadd.f32 %v1222, %v1419
  %1421 = vmatmul.bf16.gmra.mxu0 %v894
  %v1422 = vpop.f32.mrf.mxu0
  %v1423 = vadd.f32 %v1225, %v1422
  %v1424 = vpop.f32.mrf.mxu0
  %v1425 = vadd.f32 %v1227, %v1424
  %1426 = vmatmul.bf16.gmra.mxu0 %v896
  %v1427 = vpop.f32.mrf.mxu0
  %v1428 = vadd.f32 %v1230, %v1427
  %v1429 = vpop.f32.mrf.mxu0
  %v1430 = vadd.f32 %v1232, %v1429
  %1431 = vmatmul.bf16.gmra.mxu0 %v898
  %v1432 = vpop.f32.mrf.mxu0
  %v1433 = vadd.f32 %v1235, %v1432
  %v1434 = vpop.f32.mrf.mxu0
  %v1435 = vadd.f32 %v1237, %v1434
  %1436 = vmatmul.bf16.gmra.mxu0 %v900
  %v1437 = vpop.f32.mrf.mxu0
  %v1438 = vadd.f32 %v1240, %v1437
  %v1439 = vpop.f32.mrf.mxu0
  %v1440 = vadd.f32 %v1242, %v1439
  %1441 = vmatmul.bf16.gmra.mxu0 %v902
  %v1442 = vpop.f32.mrf.mxu0
  %v1443 = vadd.f32 %v1245, %v1442
  %v1444 = vpop.f32.mrf.mxu0
  %v1445 = vadd.f32 %v1247, %v1444
  %1446 = vmatmul.bf16.gmra.mxu0 %v904
  %v1447 = vpop.f32.mrf.mxu0
  %v1448 = vadd.f32 %v1250, %v1447
  %v1449 = vpop.f32.mrf.mxu0
  %v1450 = vadd.f32 %v1252, %v1449
  %1451 = vmatmul.bf16.gmra.mxu0 %v906
  %v1452 = vpop.f32.mrf.mxu0
  %v1453 = vadd.f32 %v1255, %v1452
  %v1454 = vpop.f32.mrf.mxu0
  %v1455 = vadd.f32 %v1257, %v1454
  %1456 = vmatmul.bf16.gmra.mxu0 %v908
  %v1457 = vpop.f32.mrf.mxu0
  %v1458 = vadd.f32 %v1260, %v1457
  %v1459 = vpop.f32.mrf.mxu0
  %v1460 = vadd.f32 %v1262, %v1459
  %1461 = vmatmul.bf16.gmra.mxu0 %v910
  %v1462 = vpop.f32.mrf.mxu0
  %v1463 = vadd.f32 %v1265, %v1462
  %v1464 = vpop.f32.mrf.mxu0
  %v1465 = vadd.f32 %v1267, %v1464
  %1466 = vmatmul.bf16.gmra.mxu0 %v912
  %v1467 = vpop.f32.mrf.mxu0
  %v1468 = vadd.f32 %v1270, %v1467
  %v1469 = vpop.f32.mrf.mxu0
  %v1470 = vadd.f32 %v1272, %v1469
  %1471 = vmatmul.bf16.gmra.mxu0 %v914
  %v1472 = vpop.f32.mrf.mxu0
  %v1473 = vadd.f32 %v1275, %v1472
  %v1474 = vpop.f32.mrf.mxu0
  %v1475 = vadd.f32 %v1277, %v1474
  %1476 = vmatmul.bf16.gmra.mxu0 %v916
  %v1477 = vpop.f32.mrf.mxu0
  %v1478 = vadd.f32 %v1280, %v1477
  %v1479 = vpop.f32.mrf.mxu0
  %v1480 = vadd.f32 %v1282, %v1479
  %1481 = vmatmul.bf16.gmra.mxu0 %v918
  %v1482 = vpop.f32.mrf.mxu0
  %v1483 = vadd.f32 %v1285, %v1482
  %v1484 = vpop.f32.mrf.mxu0
  %v1485 = vadd.f32 %v1287, %v1484
  %1486 = vmatmul.bf16.gmra.mxu0 %v920
  %v1487 = vpop.f32.mrf.mxu0
  %v1488 = vadd.f32 %v1290, %v1487
  %v1489 = vpop.f32.mrf.mxu0
  %v1490 = vadd.f32 %v1292, %v1489
  %1491 = vmatmul.bf16.gmra.mxu0 %v922
  %v1492 = vpop.f32.mrf.mxu0
  %v1493 = vadd.f32 %v1295, %v1492
  %v1494 = vpop.f32.mrf.mxu0
  %v1495 = vadd.f32 %v1297, %v1494
  %1496 = vmatmul.bf16.gmra.mxu0 %v924
  %v1497 = vpop.f32.mrf.mxu0
  %v1498 = vadd.f32 %v1300, %v1497
  %v1499 = vpop.f32.mrf.mxu0
  %v1500 = vadd.f32 %v1302, %v1499
  %1501 = vmatmul.bf16.gmra.mxu0 %v926
  %v1502 = vpop.f32.mrf.mxu0
  %v1503 = vadd.f32 %v1305, %v1502
  %v1504 = vpop.f32.mrf.mxu0
  %v1505 = vadd.f32 %v1307, %v1504
  %1506 = vmatmul.bf16.gmra.mxu0 %v928
  %v1507 = vpop.f32.mrf.mxu0
  %v1508 = vadd.f32 %v1310, %v1507
  %v1509 = vpop.f32.mrf.mxu0
  %v1510 = vadd.f32 %v1312, %v1509
  %1511 = vmatmul.bf16.gmra.mxu0 %v930
  %v1512 = vpop.f32.mrf.mxu0
  %v1513 = vadd.f32 %v1315, %v1512
  %v1514 = vpop.f32.mrf.mxu0
  %v1515 = vadd.f32 %v1317, %v1514
  %1516 = vmatmul.bf16.gmra.mxu0 %v932
  %v1517 = vpop.f32.mrf.mxu0
  %v1518 = vadd.f32 %v1320, %v1517
  %v1519 = vpop.f32.mrf.mxu0
  %v1520 = vadd.f32 %v1322, %v1519
  %1521 = vmatmul.bf16.gmra.mxu0 %v934
  %v1522 = vpop.f32.mrf.mxu0
  %v1523 = vadd.f32 %v1325, %v1522
  %v1524 = vpop.f32.mrf.mxu0
  %v1525 = vadd.f32 %v1327, %v1524
  %1526 = vmatmul.bf16.gmra.mxu0 %v936
  %v1527 = vpop.f32.mrf.mxu0
  %v1528 = vadd.f32 %v1330, %v1527
  %v1529 = vpop.f32.mrf.mxu0
  %1530 = vdwg.mxu0
  %1531 = vmatpush.bf16.msra.mxu0 %v1086
  %1532 = vmatpush.bf16.msra.mxu0 %v1084
  %1533 = vmatpush.bf16.msra.mxu0 %v1082
  %1534 = vmatpush.bf16.msra.mxu0 %v1080
  %1535 = vmatpush.bf16.msra.mxu0 %v1078
  %1536 = vmatpush.bf16.msra.mxu0 %v1076
  %1537 = vmatpush.bf16.msra.mxu0 %v1074
  %1538 = vmatpush.bf16.msra.mxu0 %v1072
  %1539 = vmatmul.bf16.gmra.mxu0 %v861
  %v1540 = vpop.f32.mrf.mxu0
  %v1541 = vadd.f32 %v972, %v1540
  %v1542 = vpop.f32.mrf.mxu0
  %v1543 = vadd.f32 %v972, %v1542
  %1544 = vmatmul.bf16.gmra.mxu0 %v863
  %v1545 = vpop.f32.mrf.mxu0
  %v1546 = vadd.f32 %v972, %v1545
  %v1547 = vpop.f32.mrf.mxu0
  %v1548 = vadd.f32 %v972, %v1547
  %1549 = vmatmul.bf16.gmra.mxu0 %v865
  %v1550 = vpop.f32.mrf.mxu0
  %v1551 = vadd.f32 %v972, %v1550
  %v1552 = vpop.f32.mrf.mxu0
  %v1553 = vadd.f32 %v972, %v1552
  %1554 = vmatmul.bf16.gmra.mxu0 %v867
  %v1555 = vpop.f32.mrf.mxu0
  %v1556 = vadd.f32 %v972, %v1555
  %v1557 = vpop.f32.mrf.mxu0
  %v1558 = vadd.f32 %v972, %v1557
  %1559 = vmatmul.bf16.gmra.mxu0 %v869
  %v1560 = vpop.f32.mrf.mxu0
  %v1561 = vadd.f32 %v972, %v1560
  %v1562 = vpop.f32.mrf.mxu0
  %v1563 = vadd.f32 %v972, %v1562
  %1564 = vmatmul.bf16.gmra.mxu0 %v871
  %v1565 = vpop.f32.mrf.mxu0
  %v1566 = vadd.f32 %v972, %v1565
  %v1567 = vpop.f32.mrf.mxu0
  %v1568 = vadd.f32 %v972, %v1567
  %1569 = vmatmul.bf16.gmra.mxu0 %v873
  %v1570 = vpop.f32.mrf.mxu0
  %v1571 = vadd.f32 %v972, %v1570
  %v1572 = vpop.f32.mrf.mxu0
  %v1573 = vadd.f32 %v972, %v1572
  %1574 = vmatmul.bf16.gmra.mxu0 %v875
  %v1575 = vpop.f32.mrf.mxu0
  %v1576 = vadd.f32 %v972, %v1575
  %v1577 = vpop.f32.mrf.mxu0
  %v1578 = vadd.f32 %v972, %v1577
  %1579 = vmatmul.bf16.gmra.mxu0 %v877
  %v1580 = vpop.f32.mrf.mxu0
  %v1581 = vadd.f32 %v972, %v1580
  %v1582 = vpop.f32.mrf.mxu0
  %v1583 = vadd.f32 %v972, %v1582
  %1584 = vmatmul.bf16.gmra.mxu0 %v879
  %v1585 = vpop.f32.mrf.mxu0
  %v1586 = vadd.f32 %v972, %v1585
  %v1587 = vpop.f32.mrf.mxu0
  %v1588 = vadd.f32 %v972, %v1587
  %1589 = vmatmul.bf16.gmra.mxu0 %v881
  %v1590 = vpop.f32.mrf.mxu0
  %v1591 = vadd.f32 %v972, %v1590
  %v1592 = vpop.f32.mrf.mxu0
  %v1593 = vadd.f32 %v972, %v1592
  %1594 = vmatmul.bf16.gmra.mxu0 %v883
  %v1595 = vpop.f32.mrf.mxu0
  %v1596 = vadd.f32 %v972, %v1595
  %v1597 = vpop.f32.mrf.mxu0
  %v1598 = vadd.f32 %v972, %v1597
  %1599 = vmatmul.bf16.gmra.mxu0 %v885
  %v1600 = vpop.f32.mrf.mxu0
  %v1601 = vadd.f32 %v972, %v1600
  %v1602 = vpop.f32.mrf.mxu0
  %v1603 = vadd.f32 %v972, %v1602
  %1604 = vmatmul.bf16.gmra.mxu0 %v887
  %v1605 = vpop.f32.mrf.mxu0
  %v1606 = vadd.f32 %v972, %v1605
  %v1607 = vpop.f32.mrf.mxu0
  %v1608 = vadd.f32 %v972, %v1607
  %1609 = vmatmul.bf16.gmra.mxu0 %v889
  %v1610 = vpop.f32.mrf.mxu0
  %v1611 = vadd.f32 %v972, %v1610
  %v1612 = vpop.f32.mrf.mxu0
  %v1613 = vadd.f32 %v972, %v1612
  %1614 = vmatmul.bf16.gmra.mxu0 %v891
  %v1615 = vpop.f32.mrf.mxu0
  %v1616 = vadd.f32 %v972, %v1615
  %v1617 = vpop.f32.mrf.mxu0
  %v1618 = vadd.f32 %v972, %v1617
  %1619 = vmatmul.bf16.gmra.mxu0 %v893
  %v1620 = vpop.f32.mrf.mxu0
  %v1621 = vadd.f32 %v972, %v1620
  %v1622 = vpop.f32.mrf.mxu0
  %v1623 = vadd.f32 %v972, %v1622
  %1624 = vmatmul.bf16.gmra.mxu0 %v895
  %v1625 = vpop.f32.mrf.mxu0
  %v1626 = vadd.f32 %v972, %v1625
  %v1627 = vpop.f32.mrf.mxu0
  %v1628 = vadd.f32 %v972, %v1627
  %1629 = vmatmul.bf16.gmra.mxu0 %v897
  %v1630 = vpop.f32.mrf.mxu0
  %v1631 = vadd.f32 %v972, %v1630
  %v1632 = vpop.f32.mrf.mxu0
  %v1633 = vadd.f32 %v972, %v1632
  %1634 = vmatmul.bf16.gmra.mxu0 %v899
  %v1635 = vpop.f32.mrf.mxu0
  %v1636 = vadd.f32 %v972, %v1635
  %v1637 = vpop.f32.mrf.mxu0
  %v1638 = vadd.f32 %v972, %v1637
  %1639 = vmatmul.bf16.gmra.mxu0 %v901
  %v1640 = vpop.f32.mrf.mxu0
  %v1641 = vadd.f32 %v972, %v1640
  %v1642 = vpop.f32.mrf.mxu0
  %v1643 = vadd.f32 %v972, %v1642
  %1644 = vmatmul.bf16.gmra.mxu0 %v903
  %v1645 = vpop.f32.mrf.mxu0
  %v1646 = vadd.f32 %v972, %v1645
  %v1647 = vpop.f32.mrf.mxu0
  %v1648 = vadd.f32 %v972, %v1647
  %1649 = vmatmul.bf16.gmra.mxu0 %v905
  %v1650 = vpop.f32.mrf.mxu0
  %v1651 = vadd.f32 %v972, %v1650
  %v1652 = vpop.f32.mrf.mxu0
  %v1653 = vadd.f32 %v972, %v1652
  %1654 = vmatmul.bf16.gmra.mxu0 %v907
  %v1655 = vpop.f32.mrf.mxu0
  %v1656 = vadd.f32 %v972, %v1655
  %v1657 = vpop.f32.mrf.mxu0
  %v1658 = vadd.f32 %v972, %v1657
  %1659 = vmatmul.bf16.gmra.mxu0 %v909
  %v1660 = vpop.f32.mrf.mxu0
  %v1661 = vadd.f32 %v972, %v1660
  %v1662 = vpop.f32.mrf.mxu0
  %v1663 = vadd.f32 %v972, %v1662
  %1664 = vmatmul.bf16.gmra.mxu0 %v911
  %v1665 = vpop.f32.mrf.mxu0
  %v1666 = vadd.f32 %v972, %v1665
  %v1667 = vpop.f32.mrf.mxu0
  %v1668 = vadd.f32 %v972, %v1667
  %1669 = vmatmul.bf16.gmra.mxu0 %v913
  %v1670 = vpop.f32.mrf.mxu0
  %v1671 = vadd.f32 %v972, %v1670
  %v1672 = vpop.f32.mrf.mxu0
  %v1673 = vadd.f32 %v972, %v1672
  %1674 = vmatmul.bf16.gmra.mxu0 %v915
  %v1675 = vpop.f32.mrf.mxu0
  %v1676 = vadd.f32 %v972, %v1675
  %v1677 = vpop.f32.mrf.mxu0
  %v1678 = vadd.f32 %v972, %v1677
  %1679 = vmatmul.bf16.gmra.mxu0 %v917
  %v1680 = vpop.f32.mrf.mxu0
  %v1681 = vadd.f32 %v972, %v1680
  %v1682 = vpop.f32.mrf.mxu0
  %v1683 = vadd.f32 %v972, %v1682
  %1684 = vmatmul.bf16.gmra.mxu0 %v919
  %v1685 = vpop.f32.mrf.mxu0
  %v1686 = vadd.f32 %v972, %v1685
  %v1687 = vpop.f32.mrf.mxu0
  %v1688 = vadd.f32 %v972, %v1687
  %1689 = vmatmul.bf16.gmra.mxu0 %v921
  %v1690 = vpop.f32.mrf.mxu0
  %v1691 = vadd.f32 %v972, %v1690
  %v1692 = vpop.f32.mrf.mxu0
  %v1693 = vadd.f32 %v972, %v1692
  %1694 = vmatmul.bf16.gmra.mxu0 %v923
  %v1695 = vpop.f32.mrf.mxu0
  %v1696 = vadd.f32 %v972, %v1695
  %v1697 = vpop.f32.mrf.mxu0
  %v1698 = vadd.f32 %v972, %v1697
  %1699 = vmatmul.bf16.gmra.mxu0 %v925
  %v1700 = vpop.f32.mrf.mxu0
  %v1701 = vadd.f32 %v972, %v1700
  %v1702 = vpop.f32.mrf.mxu0
  %v1703 = vadd.f32 %v972, %v1702
  %1704 = vmatmul.bf16.gmra.mxu0 %v927
  %v1705 = vpop.f32.mrf.mxu0
  %v1706 = vadd.f32 %v972, %v1705
  %v1707 = vpop.f32.mrf.mxu0
  %v1708 = vadd.f32 %v972, %v1707
  %1709 = vmatmul.bf16.gmra.mxu0 %v929
  %v1710 = vpop.f32.mrf.mxu0
  %v1711 = vadd.f32 %v972, %v1710
  %v1712 = vpop.f32.mrf.mxu0
  %v1713 = vadd.f32 %v972, %v1712
  %1714 = vmatmul.bf16.gmra.mxu0 %v931
  %v1715 = vpop.f32.mrf.mxu0
  %v1716 = vadd.f32 %v972, %v1715
  %v1717 = vpop.f32.mrf.mxu0
  %v1718 = vadd.f32 %v972, %v1717
  %1719 = vmatmul.bf16.gmra.mxu0 %v933
  %v1720 = vpop.f32.mrf.mxu0
  %v1721 = vadd.f32 %v972, %v1720
  %v1722 = vpop.f32.mrf.mxu0
  %v1723 = vadd.f32 %v972, %v1722
  %1724 = vmatmul.bf16.gmra.mxu0 %v935
  %v1725 = vpop.f32.mrf.mxu0
  %v1726 = vadd.f32 %v972, %v1725
  %v1727 = vpop.f32.mrf.mxu0
  %1728 = vdwg.mxu0
  %1729 = vmatpush.bf16.msra.mxu0 %v1102
  %1730 = vmatpush.bf16.msra.mxu0 %v1100
  %1731 = vmatpush.bf16.msra.mxu0 %v1098
  %1732 = vmatpush.bf16.msra.mxu0 %v1096
  %1733 = vmatpush.bf16.msra.mxu0 %v1094
  %1734 = vmatpush.bf16.msra.mxu0 %v1092
  %1735 = vmatpush.bf16.msra.mxu0 %v1090
  %1736 = vmatpush.bf16.msra.mxu0 %v1088
  %1737 = vmatmul.bf16.gmra.mxu0 %v862
  %v1738 = vpop.f32.mrf.mxu0
  %v1739 = vadd.f32 %v1541, %v1738
  %v1740 = vpop.f32.mrf.mxu0
  %v1741 = vadd.f32 %v1543, %v1740
  %1742 = vmatmul.bf16.gmra.mxu0 %v864
  %v1743 = vpop.f32.mrf.mxu0
  %v1744 = vadd.f32 %v1546, %v1743
  %v1745 = vpop.f32.mrf.mxu0
  %v1746 = vadd.f32 %v1548, %v1745
  %1747 = vmatmul.bf16.gmra.mxu0 %v866
  %v1748 = vpop.f32.mrf.mxu0
  %v1749 = vadd.f32 %v1551, %v1748
  %v1750 = vpop.f32.mrf.mxu0
  %v1751 = vadd.f32 %v1553, %v1750
  %1752 = vmatmul.bf16.gmra.mxu0 %v868
  %v1753 = vpop.f32.mrf.mxu0
  %v1754 = vadd.f32 %v1556, %v1753
  %v1755 = vpop.f32.mrf.mxu0
  %v1756 = vadd.f32 %v1558, %v1755
  %1757 = vmatmul.bf16.gmra.mxu0 %v870
  %v1758 = vpop.f32.mrf.mxu0
  %v1759 = vadd.f32 %v1561, %v1758
  %v1760 = vpop.f32.mrf.mxu0
  %v1761 = vadd.f32 %v1563, %v1760
  %1762 = vmatmul.bf16.gmra.mxu0 %v872
  %v1763 = vpop.f32.mrf.mxu0
  %v1764 = vadd.f32 %v1566, %v1763
  %v1765 = vpop.f32.mrf.mxu0
  %v1766 = vadd.f32 %v1568, %v1765
  %1767 = vmatmul.bf16.gmra.mxu0 %v874
  %v1768 = vpop.f32.mrf.mxu0
  %v1769 = vadd.f32 %v1571, %v1768
  %v1770 = vpop.f32.mrf.mxu0
  %v1771 = vadd.f32 %v1573, %v1770
  %1772 = vmatmul.bf16.gmra.mxu0 %v876
  %v1773 = vpop.f32.mrf.mxu0
  %v1774 = vadd.f32 %v1576, %v1773
  %v1775 = vpop.f32.mrf.mxu0
  %v1776 = vadd.f32 %v1578, %v1775
  %1777 = vmatmul.bf16.gmra.mxu0 %v878
  %v1778 = vpop.f32.mrf.mxu0
  %v1779 = vadd.f32 %v1581, %v1778
  %v1780 = vpop.f32.mrf.mxu0
  %v1781 = vadd.f32 %v1583, %v1780
  %1782 = vmatmul.bf16.gmra.mxu0 %v880
  %v1783 = vpop.f32.mrf.mxu0
  %v1784 = vadd.f32 %v1586, %v1783
  %v1785 = vpop.f32.mrf.mxu0
  %v1786 = vadd.f32 %v1588, %v1785
  %1787 = vmatmul.bf16.gmra.mxu0 %v882
  %v1788 = vpop.f32.mrf.mxu0
  %v1789 = vadd.f32 %v1591, %v1788
  %v1790 = vpop.f32.mrf.mxu0
  %v1791 = vadd.f32 %v1593, %v1790
  %1792 = vmatmul.bf16.gmra.mxu0 %v884
  %v1793 = vpop.f32.mrf.mxu0
  %v1794 = vadd.f32 %v1596, %v1793
  %v1795 = vpop.f32.mrf.mxu0
  %v1796 = vadd.f32 %v1598, %v1795
  %1797 = vmatmul.bf16.gmra.mxu0 %v886
  %v1798 = vpop.f32.mrf.mxu0
  %v1799 = vadd.f32 %v1601, %v1798
  %v1800 = vpop.f32.mrf.mxu0
  %v1801 = vadd.f32 %v1603, %v1800
  %1802 = vmatmul.bf16.gmra.mxu0 %v888
  %v1803 = vpop.f32.mrf.mxu0
  %v1804 = vadd.f32 %v1606, %v1803
  %v1805 = vpop.f32.mrf.mxu0
  %v1806 = vadd.f32 %v1608, %v1805
  %1807 = vmatmul.bf16.gmra.mxu0 %v890
  %v1808 = vpop.f32.mrf.mxu0
  %v1809 = vadd.f32 %v1611, %v1808
  %v1810 = vpop.f32.mrf.mxu0
  %v1811 = vadd.f32 %v1613, %v1810
  %1812 = vmatmul.bf16.gmra.mxu0 %v892
  %v1813 = vpop.f32.mrf.mxu0
  %v1814 = vadd.f32 %v1616, %v1813
  %v1815 = vpop.f32.mrf.mxu0
  %v1816 = vadd.f32 %v1618, %v1815
  %1817 = vmatmul.bf16.gmra.mxu0 %v894
  %v1818 = vpop.f32.mrf.mxu0
  %v1819 = vadd.f32 %v1621, %v1818
  %v1820 = vpop.f32.mrf.mxu0
  %v1821 = vadd.f32 %v1623, %v1820
  %1822 = vmatmul.bf16.gmra.mxu0 %v896
  %v1823 = vpop.f32.mrf.mxu0
  %v1824 = vadd.f32 %v1626, %v1823
  %v1825 = vpop.f32.mrf.mxu0
  %v1826 = vadd.f32 %v1628, %v1825
  %1827 = vmatmul.bf16.gmra.mxu0 %v898
  %v1828 = vpop.f32.mrf.mxu0
  %v1829 = vadd.f32 %v1631, %v1828
  %v1830 = vpop.f32.mrf.mxu0
  %v1831 = vadd.f32 %v1633, %v1830
  %1832 = vmatmul.bf16.gmra.mxu0 %v900
  %v1833 = vpop.f32.mrf.mxu0
  %v1834 = vadd.f32 %v1636, %v1833
  %v1835 = vpop.f32.mrf.mxu0
  %v1836 = vadd.f32 %v1638, %v1835
  %1837 = vmatmul.bf16.gmra.mxu0 %v902
  %v1838 = vpop.f32.mrf.mxu0
  %v1839 = vadd.f32 %v1641, %v1838
  %v1840 = vpop.f32.mrf.mxu0
  %v1841 = vadd.f32 %v1643, %v1840
  %1842 = vmatmul.bf16.gmra.mxu0 %v904
  %v1843 = vpop.f32.mrf.mxu0
  %v1844 = vadd.f32 %v1646, %v1843
  %v1845 = vpop.f32.mrf.mxu0
  %v1846 = vadd.f32 %v1648, %v1845
  %1847 = vmatmul.bf16.gmra.mxu0 %v906
  %v1848 = vpop.f32.mrf.mxu0
  %v1849 = vadd.f32 %v1651, %v1848
  %v1850 = vpop.f32.mrf.mxu0
  %v1851 = vadd.f32 %v1653, %v1850
  %1852 = vmatmul.bf16.gmra.mxu0 %v908
  %v1853 = vpop.f32.mrf.mxu0
  %v1854 = vadd.f32 %v1656, %v1853
  %v1855 = vpop.f32.mrf.mxu0
  %v1856 = vadd.f32 %v1658, %v1855
  %1857 = vmatmul.bf16.gmra.mxu0 %v910
  %v1858 = vpop.f32.mrf.mxu0
  %v1859 = vadd.f32 %v1661, %v1858
  %v1860 = vpop.f32.mrf.mxu0
  %v1861 = vadd.f32 %v1663, %v1860
  %1862 = vmatmul.bf16.gmra.mxu0 %v912
  %v1863 = vpop.f32.mrf.mxu0
  %v1864 = vadd.f32 %v1666, %v1863
  %v1865 = vpop.f32.mrf.mxu0
  %v1866 = vadd.f32 %v1668, %v1865
  %1867 = vmatmul.bf16.gmra.mxu0 %v914
  %v1868 = vpop.f32.mrf.mxu0
  %v1869 = vadd.f32 %v1671, %v1868
  %v1870 = vpop.f32.mrf.mxu0
  %v1871 = vadd.f32 %v1673, %v1870
  %1872 = vmatmul.bf16.gmra.mxu0 %v916
  %v1873 = vpop.f32.mrf.mxu0
  %v1874 = vadd.f32 %v1676, %v1873
  %v1875 = vpop.f32.mrf.mxu0
  %v1876 = vadd.f32 %v1678, %v1875
  %1877 = vmatmul.bf16.gmra.mxu0 %v918
  %v1878 = vpop.f32.mrf.mxu0
  %v1879 = vadd.f32 %v1681, %v1878
  %v1880 = vpop.f32.mrf.mxu0
  %v1881 = vadd.f32 %v1683, %v1880
  %1882 = vmatmul.bf16.gmra.mxu0 %v920
  %v1883 = vpop.f32.mrf.mxu0
  %v1884 = vadd.f32 %v1686, %v1883
  %v1885 = vpop.f32.mrf.mxu0
  %v1886 = vadd.f32 %v1688, %v1885
  %1887 = vmatmul.bf16.gmra.mxu0 %v922
  %v1888 = vpop.f32.mrf.mxu0
  %v1889 = vadd.f32 %v1691, %v1888
  %v1890 = vpop.f32.mrf.mxu0
  %v1891 = vadd.f32 %v1693, %v1890
  %1892 = vmatmul.bf16.gmra.mxu0 %v924
  %v1893 = vpop.f32.mrf.mxu0
  %v1894 = vadd.f32 %v1696, %v1893
  %v1895 = vpop.f32.mrf.mxu0
  %v1896 = vadd.f32 %v1698, %v1895
  %1897 = vmatmul.bf16.gmra.mxu0 %v926
  %v1898 = vpop.f32.mrf.mxu0
  %v1899 = vadd.f32 %v1701, %v1898
  %v1900 = vpop.f32.mrf.mxu0
  %v1901 = vadd.f32 %v1703, %v1900
  %1902 = vmatmul.bf16.gmra.mxu0 %v928
  %v1903 = vpop.f32.mrf.mxu0
  %v1904 = vadd.f32 %v1706, %v1903
  %v1905 = vpop.f32.mrf.mxu0
  %v1906 = vadd.f32 %v1708, %v1905
  %1907 = vmatmul.bf16.gmra.mxu0 %v930
  %v1908 = vpop.f32.mrf.mxu0
  %v1909 = vadd.f32 %v1711, %v1908
  %v1910 = vpop.f32.mrf.mxu0
  %v1911 = vadd.f32 %v1713, %v1910
  %1912 = vmatmul.bf16.gmra.mxu0 %v932
  %v1913 = vpop.f32.mrf.mxu0
  %v1914 = vadd.f32 %v1716, %v1913
  %v1915 = vpop.f32.mrf.mxu0
  %v1916 = vadd.f32 %v1718, %v1915
  %1917 = vmatmul.bf16.gmra.mxu0 %v934
  %v1918 = vpop.f32.mrf.mxu0
  %v1919 = vadd.f32 %v1721, %v1918
  %v1920 = vpop.f32.mrf.mxu0
  %v1921 = vadd.f32 %v1723, %v1920
  %1922 = vmatmul.bf16.gmra.mxu0 %v936
  %v1923 = vpop.f32.mrf.mxu0
  %v1924 = vadd.f32 %v1726, %v1923
  %v1925 = vpop.f32.mrf.mxu0
  %1926 = vdwg.mxu0
  %v1927 = vmax.f32 %v1343, 0.0
  %v1928 = vmax.f32 %v1739, 0.0
  %v1929 = vmax.f32 %v1345, 0.0
  %v1930 = vmax.f32 %v1741, 0.0
  %v1931 = vmax.f32 %v1348, 0.0
  %v1932 = vmax.f32 %v1744, 0.0
  %v1933 = vmax.f32 %v1350, 0.0
  %v1934 = vmax.f32 %v1746, 0.0
  %v1935 = vmax.f32 %v1353, 0.0
  %v1936 = vmax.f32 %v1749, 0.0
  %v1937 = vmax.f32 %v1355, 0.0
  %v1938 = vmax.f32 %v1751, 0.0
  %v1939 = vmax.f32 %v1358, 0.0
  %v1940 = vmax.f32 %v1754, 0.0
  %v1941 = vmax.f32 %v1360, 0.0
  %v1942 = vmax.f32 %v1756, 0.0
  %v1943 = vmax.f32 %v1363, 0.0
  %v1944 = vmax.f32 %v1759, 0.0
  %v1945 = vmax.f32 %v1365, 0.0
  %v1946 = vmax.f32 %v1761, 0.0
  %v1947 = vmax.f32 %v1368, 0.0
  %v1948 = vmax.f32 %v1764, 0.0
  %v1949 = vmax.f32 %v1370, 0.0
  %v1950 = vmax.f32 %v1766, 0.0
  %v1951 = vmax.f32 %v1373, 0.0
  %v1952 = vmax.f32 %v1769, 0.0
  %v1953 = vmax.f32 %v1375, 0.0
  %v1954 = vmax.f32 %v1771, 0.0
  %v1955 = vmax.f32 %v1378, 0.0
  %v1956 = vmax.f32 %v1774, 0.0
  %v1957 = vmax.f32 %v1380, 0.0
  %v1958 = vmax.f32 %v1776, 0.0
  %v1959 = vmax.f32 %v1383, 0.0
  %v1960 = vmax.f32 %v1779, 0.0
  %v1961 = vmax.f32 %v1385, 0.0
  %v1962 = vmax.f32 %v1781, 0.0
  %v1963 = vmax.f32 %v1388, 0.0
  %v1964 = vmax.f32 %v1784, 0.0
  %v1965 = vmax.f32 %v1390, 0.0
  %v1966 = vmax.f32 %v1786, 0.0
  %v1967 = vmax.f32 %v1393, 0.0
  %v1968 = vmax.f32 %v1789, 0.0
  %v1969 = vmax.f32 %v1395, 0.0
  %v1970 = vmax.f32 %v1791, 0.0
  %v1971 = vmax.f32 %v1398, 0.0
  %v1972 = vmax.f32 %v1794, 0.0
  %v1973 = vmax.f32 %v1400, 0.0
  %v1974 = vmax.f32 %v1796, 0.0
  %v1975 = vmax.f32 %v1403, 0.0
  %v1976 = vmax.f32 %v1799, 0.0
  %v1977 = vmax.f32 %v1405, 0.0
  %v1978 = vmax.f32 %v1801, 0.0
  %v1979 = vmax.f32 %v1408, 0.0
  %v1980 = vmax.f32 %v1804, 0.0
  %v1981 = vmax.f32 %v1410, 0.0
  %v1982 = vmax.f32 %v1806, 0.0
  %v1983 = vmax.f32 %v1413, 0.0
  %v1984 = vmax.f32 %v1809, 0.0
  %v1985 = vmax.f32 %v1415, 0.0
  %v1986 = vmax.f32 %v1811, 0.0
  %v1987 = vmax.f32 %v1418, 0.0
  %v1988 = vmax.f32 %v1814, 0.0
  %v1989 = vmax.f32 %v1420, 0.0
  %v1990 = vmax.f32 %v1816, 0.0
  %v1991 = vmax.f32 %v1423, 0.0
  %v1992 = vmax.f32 %v1819, 0.0
  %v1993 = vmax.f32 %v1425, 0.0
  %v1994 = vmax.f32 %v1821, 0.0
  %v1995 = vmax.f32 %v1428, 0.0
  %v1996 = vmax.f32 %v1824, 0.0
  %v1997 = vmax.f32 %v1430, 0.0
  %v1998 = vmax.f32 %v1826, 0.0
  %v1999 = vmax.f32 %v1433, 0.0
  %v2000 = vmax.f32 %v1829, 0.0
  %v2001 = vmax.f32 %v1435, 0.0
  %v2002 = vmax.f32 %v1831, 0.0
  %v2003 = vmax.f32 %v1438, 0.0
  %v2004 = vmax.f32 %v1834, 0.0
  %v2005 = vmax.f32 %v1440, 0.0
  %v2006 = vmax.f32 %v1836, 0.0
  %v2007 = vmax.f32 %v1443, 0.0
  %v2008 = vmax.f32 %v1839, 0.0
  %v2009 = vmax.f32 %v1445, 0.0
  %v2010 = vmax.f32 %v1841, 0.0
  %v2011 = vmax.f32 %v1448, 0.0
  %v2012 = vmax.f32 %v1844, 0.0
  %v2013 = vmax.f32 %v1450, 0.0
  %v2014 = vmax.f32 %v1846, 0.0
  %v2015 = vmax.f32 %v1453, 0.0
  %v2016 = vmax.f32 %v1849, 0.0
  %v2017 = vmax.f32 %v1455, 0.0
  %v2018 = vmax.f32 %v1851, 0.0
  %v2019 = vmax.f32 %v1458, 0.0
  %v2020 = vmax.f32 %v1854, 0.0
  %v2021 = vmax.f32 %v1460, 0.0
  %v2022 = vmax.f32 %v1856, 0.0
  %v2023 = vmax.f32 %v1463, 0.0
  %v2024 = vmax.f32 %v1859, 0.0
  %v2025 = vmax.f32 %v1465, 0.0
  %v2026 = vmax.f32 %v1861, 0.0
  %v2027 = vmax.f32 %v1468, 0.0
  %v2028 = vmax.f32 %v1864, 0.0
  %v2029 = vmax.f32 %v1470, 0.0
  %v2030 = vmax.f32 %v1866, 0.0
  %v2031 = vmax.f32 %v1473, 0.0
  %v2032 = vmax.f32 %v1869, 0.0
  %v2033 = vmax.f32 %v1475, 0.0
  %v2034 = vmax.f32 %v1871, 0.0
  %v2035 = vmax.f32 %v1478, 0.0
  %v2036 = vmax.f32 %v1874, 0.0
  %v2037 = vmax.f32 %v1480, 0.0
  %v2038 = vmax.f32 %v1876, 0.0
  %v2039 = vmax.f32 %v1483, 0.0
  %v2040 = vmax.f32 %v1879, 0.0
  %v2041 = vmax.f32 %v1485, 0.0
  %v2042 = vmax.f32 %v1881, 0.0
  %v2043 = vmax.f32 %v1488, 0.0
  %v2044 = vmax.f32 %v1884, 0.0
  %v2045 = vmax.f32 %v1490, 0.0
  %v2046 = vmax.f32 %v1886, 0.0
  %v2047 = vmax.f32 %v1493, 0.0
  %v2048 = vmax.f32 %v1889, 0.0
  %v2049 = vmax.f32 %v1495, 0.0
  %v2050 = vmax.f32 %v1891, 0.0
  %v2051 = vmax.f32 %v1498, 0.0
  %v2052 = vmax.f32 %v1894, 0.0
  %v2053 = vmax.f32 %v1500, 0.0
  %v2054 = vmax.f32 %v1896, 0.0
  %v2055 = vmax.f32 %v1503, 0.0
  %v2056 = vmax.f32 %v1899, 0.0
  %v2057 = vmax.f32 %v1505, 0.0
  %v2058 = vmax.f32 %v1901, 0.0
  %v2059 = vmax.f32 %v1508, 0.0
  %v2060 = vmax.f32 %v1904, 0.0
  %v2061 = vmax.f32 %v1510, 0.0
  %v2062 = vmax.f32 %v1906, 0.0
  %v2063 = vmax.f32 %v1513, 0.0
  %v2064 = vmax.f32 %v1909, 0.0
  %v2065 = vmax.f32 %v1515, 0.0
  %v2066 = vmax.f32 %v1911, 0.0
  %v2067 = vmax.f32 %v1518, 0.0
  %v2068 = vmax.f32 %v1914, 0.0
  %v2069 = vmax.f32 %v1520, 0.0
  %v2070 = vmax.f32 %v1916, 0.0
  %v2071 = vmax.f32 %v1523, 0.0
  %v2072 = vmax.f32 %v1919, 0.0
  %v2073 = vmax.f32 %v1525, 0.0
  %v2074 = vmax.f32 %v1921, 0.0
  %v2075 = vmax.f32 %v1528, 0.0
  %v2076 = vmax.f32 %v1924, 0.0
  %v2077 = vpack.c.bf16 %v1929, %v1927
  %v2078 = vpack.c.bf16 %v1930, %v1928
  %v2079 = vpack.c.bf16 %v1933, %v1931
  %v2080 = vpack.c.bf16 %v1934, %v1932
  %v2081 = vpack.c.bf16 %v1937, %v1935
  %v2082 = vpack.c.bf16 %v1938, %v1936
  %v2083 = vpack.c.bf16 %v1941, %v1939
  %v2084 = vpack.c.bf16 %v1942, %v1940
  %v2085 = vpack.c.bf16 %v1945, %v1943
  %v2086 = vpack.c.bf16 %v1946, %v1944
  %v2087 = vpack.c.bf16 %v1949, %v1947
  %v2088 = vpack.c.bf16 %v1950, %v1948
  %v2089 = vpack.c.bf16 %v1953, %v1951
  %v2090 = vpack.c.bf16 %v1954, %v1952
  %v2091 = vpack.c.bf16 %v1957, %v1955
  %v2092 = vpack.c.bf16 %v1958, %v1956
  %v2093 = vpack.c.bf16 %v1961, %v1959
  %v2094 = vpack.c.bf16 %v1962, %v1960
  %v2095 = vpack.c.bf16 %v1965, %v1963
  %v2096 = vpack.c.bf16 %v1966, %v1964
  %v2097 = vpack.c.bf16 %v1969, %v1967
  %v2098 = vpack.c.bf16 %v1970, %v1968
  %v2099 = vpack.c.bf16 %v1973, %v1971
  %v2100 = vpack.c.bf16 %v1974, %v1972
  %v2101 = vpack.c.bf16 %v1977, %v1975
  %v2102 = vpack.c.bf16 %v1978, %v1976
  %v2103 = vpack.c.bf16 %v1981, %v1979
  %v2104 = vpack.c.bf16 %v1982, %v1980
  %v2105 = vpack.c.bf16 %v1985, %v1983
  %v2106 = vpack.c.bf16 %v1986, %v1984
  %v2107 = vpack.c.bf16 %v1989, %v1987
  %v2108 = vpack.c.bf16 %v1990, %v1988
  %v2109 = vpack.c.bf16 %v1993, %v1991
  %v2110 = vpack.c.bf16 %v1994, %v1992
  %v2111 = vpack.c.bf16 %v1997, %v1995
  %v2112 = vpack.c.bf16 %v1998, %v1996
  %v2113 = vpack.c.bf16 %v2001, %v1999
  %v2114 = vpack.c.bf16 %v2002, %v2000
  %v2115 = vpack.c.bf16 %v2005, %v2003
  %v2116 = vpack.c.bf16 %v2006, %v2004
  %v2117 = vpack.c.bf16 %v2009, %v2007
  %v2118 = vpack.c.bf16 %v2010, %v2008
  %v2119 = vpack.c.bf16 %v2013, %v2011
  %v2120 = vpack.c.bf16 %v2014, %v2012
  %v2121 = vpack.c.bf16 %v2017, %v2015
  %v2122 = vpack.c.bf16 %v2018, %v2016
  %v2123 = vpack.c.bf16 %v2021, %v2019
  %v2124 = vpack.c.bf16 %v2022, %v2020
  %v2125 = vpack.c.bf16 %v2025, %v2023
  %v2126 = vpack.c.bf16 %v2026, %v2024
  %v2127 = vpack.c.bf16 %v2029, %v2027
  %v2128 = vpack.c.bf16 %v2030, %v2028
  %v2129 = vpack.c.bf16 %v2033, %v2031
  %v2130 = vpack.c.bf16 %v2034, %v2032
  %v2131 = vpack.c.bf16 %v2037, %v2035
  %v2132 = vpack.c.bf16 %v2038, %v2036
  %v2133 = vpack.c.bf16 %v2041, %v2039
  %v2134 = vpack.c.bf16 %v2042, %v2040
  %v2135 = vpack.c.bf16 %v2045, %v2043
  %v2136 = vpack.c.bf16 %v2046, %v2044
  %v2137 = vpack.c.bf16 %v2049, %v2047
  %v2138 = vpack.c.bf16 %v2050, %v2048
  %v2139 = vpack.c.bf16 %v2053, %v2051
  %v2140 = vpack.c.bf16 %v2054, %v2052
  %v2141 = vpack.c.bf16 %v2057, %v2055
  %v2142 = vpack.c.bf16 %v2058, %v2056
  %v2143 = vpack.c.bf16 %v2061, %v2059
  %v2144 = vpack.c.bf16 %v2062, %v2060
  %v2145 = vpack.c.bf16 %v2065, %v2063
  %v2146 = vpack.c.bf16 %v2066, %v2064
  %v2147 = vpack.c.bf16 %v2069, %v2067
  %v2148 = vpack.c.bf16 %v2070, %v2068
  %v2149 = vpack.c.bf16 %v2073, %v2071
  %v2150 = vpack.c.bf16 %v2074, %v2072
  %v2151 = vpack.c.bf16 %v2075, %v2075
  %v2152 = vpack.c.bf16 %v2076, %v2076
  %v2153 = vld [vmem:[%s5] sm:$0xff]
  %v2154 = vld [vmem:[%s5 + $0x8] sm:$0xff]
  %v2155 = vld [vmem:[%s5 + $0x10] sm:$0xff]
  %v2156 = vld [vmem:[%s5 + $0x18] sm:$0xff]
  %v2157 = vld [vmem:[%s5 + $0x20] sm:$0xff]
  %v2158 = vld [vmem:[%s5 + $0x28] sm:$0xff]
  %v2159 = vld [vmem:[%s5 + $0x30] sm:$0xff]
  %v2160 = vld [vmem:[%s5 + $0x38] sm:$0xff]
  %v2161 = vld [vmem:[%s5 + $0x40] sm:$0xff]
  %v2162 = vld [vmem:[%s5 + $0x48] sm:$0xff]
  %v2163 = vld [vmem:[%s5 + $0x50] sm:$0xff]
  %v2164 = vld [vmem:[%s5 + $0x58] sm:$0xff]
  %v2165 = vld [vmem:[%s5 + $0x60] sm:$0xff]
  %v2166 = vld [vmem:[%s5 + $0x68] sm:$0xff]
  %v2167 = vld [vmem:[%s5 + $0x70] sm:$0xff]
  %v2168 = vld [vmem:[%s5 + $0x78] sm:$0xff]
  %v2169 = vld [vmem:[%s5 + $0x80] sm:$0xff]
  %v2170 = vld [vmem:[%s5 + $0x88] sm:$0xff]
  %v2171 = vld [vmem:[%s5 + $0x90] sm:$0xff]
  %v2172 = vld [vmem:[%s5 + $0x98] sm:$0xff]
  %v2173 = vld [vmem:[%s5 + $0xa0] sm:$0xff]
  %v2174 = vld [vmem:[%s5 + $0xa8] sm:$0xff]
  %v2175 = vld [vmem:[%s5 + $0xb0] sm:$0xff]
  %v2176 = vld [vmem:[%s5 + $0xb8] sm:$0xff]
  %v2177 = vld [vmem:[%s5 + $0xc0] sm:$0xff]
  %v2178 = vld [vmem:[%s5 + $0xc8] sm:$0xff]
  %v2179 = vld [vmem:[%s5 + $0xd0] sm:$0xff]
  %v2180 = vld [vmem:[%s5 + $0xd8] sm:$0xff]
  %v2181 = vld [vmem:[%s5 + $0xe0] sm:$0xff]
  %v2182 = vld [vmem:[%s5 + $0xe8] sm:$0xff]
  %v2183 = vld [vmem:[%s5 + $0xf0] sm:$0xff]
  %v2184 = vld [vmem:[%s5 + $0xf8] sm:$0xff]
  %v2185 = vld [vmem:[%s6] sm:$0x3]
  %v2187 = vperm.slane %v2185, 0
  %v2188 = vperm.slane %v2185, 1
  %v2223 = vunpack.c.l.b16 %v2153
  %v2224 = vunpack.c.h.b16 %v2153
  %v2225 = vunpack.c.l.b16 %v2154
  %v2226 = vunpack.c.h.b16 %v2154
  %v2227 = vunpack.c.l.b16 %v2155
  %v2228 = vunpack.c.h.b16 %v2155
  %v2229 = vunpack.c.l.b16 %v2156
  %v2230 = vunpack.c.h.b16 %v2156
  %v2231 = vunpack.c.l.b16 %v2157
  %v2232 = vunpack.c.h.b16 %v2157
  %v2233 = vunpack.c.l.b16 %v2158
  %v2234 = vunpack.c.h.b16 %v2158
  %v2235 = vunpack.c.l.b16 %v2159
  %v2236 = vunpack.c.h.b16 %v2159
  %v2237 = vunpack.c.l.b16 %v2160
  %v2238 = vunpack.c.h.b16 %v2160
  %v2239 = vunpack.c.l.b16 %v2161
  %v2240 = vunpack.c.h.b16 %v2161
  %v2241 = vunpack.c.l.b16 %v2162
  %v2242 = vunpack.c.h.b16 %v2162
  %v2243 = vunpack.c.l.b16 %v2163
  %v2244 = vunpack.c.h.b16 %v2163
  %v2245 = vunpack.c.l.b16 %v2164
  %v2246 = vunpack.c.h.b16 %v2164
  %v2247 = vunpack.c.l.b16 %v2165
  %v2248 = vunpack.c.h.b16 %v2165
  %v2249 = vunpack.c.l.b16 %v2166
  %v2250 = vunpack.c.h.b16 %v2166
  %v2251 = vunpack.c.l.b16 %v2167
  %v2252 = vunpack.c.h.b16 %v2167
  %v2253 = vunpack.c.l.b16 %v2168
  %v2254 = vunpack.c.h.b16 %v2168
  %v2255 = vunpack.c.l.b16 %v2169
  %v2256 = vunpack.c.h.b16 %v2169
  %v2257 = vunpack.c.l.b16 %v2170
  %v2258 = vunpack.c.h.b16 %v2170
  %v2259 = vunpack.c.l.b16 %v2171
  %v2260 = vunpack.c.h.b16 %v2171
  %v2261 = vunpack.c.l.b16 %v2172
  %v2262 = vunpack.c.h.b16 %v2172
  %v2263 = vunpack.c.l.b16 %v2173
  %v2264 = vunpack.c.h.b16 %v2173
  %v2265 = vunpack.c.l.b16 %v2174
  %v2266 = vunpack.c.h.b16 %v2174
  %v2267 = vunpack.c.l.b16 %v2175
  %v2268 = vunpack.c.h.b16 %v2175
  %v2269 = vunpack.c.l.b16 %v2176
  %v2270 = vunpack.c.h.b16 %v2176
  %v2271 = vunpack.c.l.b16 %v2177
  %v2272 = vunpack.c.h.b16 %v2177
  %v2273 = vunpack.c.l.b16 %v2178
  %v2274 = vunpack.c.h.b16 %v2178
  %v2275 = vunpack.c.l.b16 %v2179
  %v2276 = vunpack.c.h.b16 %v2179
  %v2277 = vunpack.c.l.b16 %v2180
  %v2278 = vunpack.c.h.b16 %v2180
  %v2279 = vunpack.c.l.b16 %v2181
  %v2280 = vunpack.c.h.b16 %v2181
  %v2281 = vunpack.c.l.b16 %v2182
  %v2282 = vunpack.c.h.b16 %v2182
  %v2283 = vunpack.c.l.b16 %v2183
  %v2284 = vunpack.c.h.b16 %v2183
  %v2285 = vunpack.c.l.b16 %v2184
  %v2286 = vunpack.c.h.b16 %v2184
  %v2287 = vpack.c.b16 %v2225, %v2223
  %v2288 = vpack.c.b16 %v2226, %v2224
  %v2289 = vpack.c.b16 %v2229, %v2227
  %v2290 = vpack.c.b16 %v2230, %v2228
  %v2291 = vpack.c.b16 %v2233, %v2231
  %v2292 = vpack.c.b16 %v2234, %v2232
  %v2293 = vpack.c.b16 %v2237, %v2235
  %v2294 = vpack.c.b16 %v2238, %v2236
  %v2295 = vpack.c.b16 %v2241, %v2239
  %v2296 = vpack.c.b16 %v2242, %v2240
  %v2297 = vpack.c.b16 %v2245, %v2243
  %v2298 = vpack.c.b16 %v2246, %v2244
  %v2299 = vpack.c.b16 %v2249, %v2247
  %v2300 = vpack.c.b16 %v2250, %v2248
  %v2301 = vpack.c.b16 %v2253, %v2251
  %v2302 = vpack.c.b16 %v2254, %v2252
  %v2303 = vpack.c.b16 %v2257, %v2255
  %v2304 = vpack.c.b16 %v2258, %v2256
  %v2305 = vpack.c.b16 %v2261, %v2259
  %v2306 = vpack.c.b16 %v2262, %v2260
  %v2307 = vpack.c.b16 %v2265, %v2263
  %v2308 = vpack.c.b16 %v2266, %v2264
  %v2309 = vpack.c.b16 %v2269, %v2267
  %v2310 = vpack.c.b16 %v2270, %v2268
  %v2311 = vpack.c.b16 %v2273, %v2271
  %v2312 = vpack.c.b16 %v2274, %v2272
  %v2313 = vpack.c.b16 %v2277, %v2275
  %v2314 = vpack.c.b16 %v2278, %v2276
  %v2315 = vpack.c.b16 %v2281, %v2279
  %v2316 = vpack.c.b16 %v2282, %v2280
  %v2317 = vpack.c.b16 %v2285, %v2283
  %v2318 = vpack.c.b16 %v2286, %v2284
  %2351 = vmatpush.bf16.msra.mxu0 %v2301
  %2352 = vmatpush.bf16.msra.mxu0 %v2299
  %2353 = vmatpush.bf16.msra.mxu0 %v2297
  %2354 = vmatpush.bf16.msra.mxu0 %v2295
  %2355 = vmatpush.bf16.msra.mxu0 %v2293
  %2356 = vmatpush.bf16.msra.mxu0 %v2291
  %2357 = vmatpush.bf16.msra.mxu0 %v2289
  %2358 = vmatpush.bf16.msra.mxu0 %v2287
  %2359 = vmatmul.bf16.gmra.mxu0 %v2077
  %v2360 = vpop.f32.mrf.mxu0
  %v2361 = vadd.f32 %v2187, %v2360
  %v2362 = vpop.f32.mrf.mxu0
  %v2363 = vadd.f32 %v2187, %v2362
  %2364 = vmatmul.bf16.gmra.mxu0 %v2079
  %v2365 = vpop.f32.mrf.mxu0
  %v2366 = vadd.f32 %v2187, %v2365
  %v2367 = vpop.f32.mrf.mxu0
  %v2368 = vadd.f32 %v2187, %v2367
  %2369 = vmatmul.bf16.gmra.mxu0 %v2081
  %v2370 = vpop.f32.mrf.mxu0
  %v2371 = vadd.f32 %v2187, %v2370
  %v2372 = vpop.f32.mrf.mxu0
  %v2373 = vadd.f32 %v2187, %v2372
  %2374 = vmatmul.bf16.gmra.mxu0 %v2083
  %v2375 = vpop.f32.mrf.mxu0
  %v2376 = vadd.f32 %v2187, %v2375
  %v2377 = vpop.f32.mrf.mxu0
  %v2378 = vadd.f32 %v2187, %v2377
  %2379 = vmatmul.bf16.gmra.mxu0 %v2085
  %v2380 = vpop.f32.mrf.mxu0
  %v2381 = vadd.f32 %v2187, %v2380
  %v2382 = vpop.f32.mrf.mxu0
  %v2383 = vadd.f32 %v2187, %v2382
  %2384 = vmatmul.bf16.gmra.mxu0 %v2087
  %v2385 = vpop.f32.mrf.mxu0
  %v2386 = vadd.f32 %v2187, %v2385
  %v2387 = vpop.f32.mrf.mxu0
  %v2388 = vadd.f32 %v2187, %v2387
  %2389 = vmatmul.bf16.gmra.mxu0 %v2089
  %v2390 = vpop.f32.mrf.mxu0
  %v2391 = vadd.f32 %v2187, %v2390
  %v2392 = vpop.f32.mrf.mxu0
  %v2393 = vadd.f32 %v2187, %v2392
  %2394 = vmatmul.bf16.gmra.mxu0 %v2091
  %v2395 = vpop.f32.mrf.mxu0
  %v2396 = vadd.f32 %v2187, %v2395
  %v2397 = vpop.f32.mrf.mxu0
  %v2398 = vadd.f32 %v2187, %v2397
  %2399 = vmatmul.bf16.gmra.mxu0 %v2093
  %v2400 = vpop.f32.mrf.mxu0
  %v2401 = vadd.f32 %v2187, %v2400
  %v2402 = vpop.f32.mrf.mxu0
  %v2403 = vadd.f32 %v2187, %v2402
  %2404 = vmatmul.bf16.gmra.mxu0 %v2095
  %v2405 = vpop.f32.mrf.mxu0
  %v2406 = vadd.f32 %v2187, %v2405
  %v2407 = vpop.f32.mrf.mxu0
  %v2408 = vadd.f32 %v2187, %v2407
  %2409 = vmatmul.bf16.gmra.mxu0 %v2097
  %v2410 = vpop.f32.mrf.mxu0
  %v2411 = vadd.f32 %v2187, %v2410
  %v2412 = vpop.f32.mrf.mxu0
  %v2413 = vadd.f32 %v2187, %v2412
  %2414 = vmatmul.bf16.gmra.mxu0 %v2099
  %v2415 = vpop.f32.mrf.mxu0
  %v2416 = vadd.f32 %v2187, %v2415
  %v2417 = vpop.f32.mrf.mxu0
  %v2418 = vadd.f32 %v2187, %v2417
  %2419 = vmatmul.bf16.gmra.mxu0 %v2101
  %v2420 = vpop.f32.mrf.mxu0
  %v2421 = vadd.f32 %v2187, %v2420
  %v2422 = vpop.f32.mrf.mxu0
  %v2423 = vadd.f32 %v2187, %v2422
  %2424 = vmatmul.bf16.gmra.mxu0 %v2103
  %v2425 = vpop.f32.mrf.mxu0
  %v2426 = vadd.f32 %v2187, %v2425
  %v2427 = vpop.f32.mrf.mxu0
  %v2428 = vadd.f32 %v2187, %v2427
  %2429 = vmatmul.bf16.gmra.mxu0 %v2105
  %v2430 = vpop.f32.mrf.mxu0
  %v2431 = vadd.f32 %v2187, %v2430
  %v2432 = vpop.f32.mrf.mxu0
  %v2433 = vadd.f32 %v2187, %v2432
  %2434 = vmatmul.bf16.gmra.mxu0 %v2107
  %v2435 = vpop.f32.mrf.mxu0
  %v2436 = vadd.f32 %v2187, %v2435
  %v2437 = vpop.f32.mrf.mxu0
  %v2438 = vadd.f32 %v2187, %v2437
  %2439 = vmatmul.bf16.gmra.mxu0 %v2109
  %v2440 = vpop.f32.mrf.mxu0
  %v2441 = vadd.f32 %v2187, %v2440
  %v2442 = vpop.f32.mrf.mxu0
  %v2443 = vadd.f32 %v2187, %v2442
  %2444 = vmatmul.bf16.gmra.mxu0 %v2111
  %v2445 = vpop.f32.mrf.mxu0
  %v2446 = vadd.f32 %v2187, %v2445
  %v2447 = vpop.f32.mrf.mxu0
  %v2448 = vadd.f32 %v2187, %v2447
  %2449 = vmatmul.bf16.gmra.mxu0 %v2113
  %v2450 = vpop.f32.mrf.mxu0
  %v2451 = vadd.f32 %v2187, %v2450
  %v2452 = vpop.f32.mrf.mxu0
  %v2453 = vadd.f32 %v2187, %v2452
  %2454 = vmatmul.bf16.gmra.mxu0 %v2115
  %v2455 = vpop.f32.mrf.mxu0
  %v2456 = vadd.f32 %v2187, %v2455
  %v2457 = vpop.f32.mrf.mxu0
  %v2458 = vadd.f32 %v2187, %v2457
  %2459 = vmatmul.bf16.gmra.mxu0 %v2117
  %v2460 = vpop.f32.mrf.mxu0
  %v2461 = vadd.f32 %v2187, %v2460
  %v2462 = vpop.f32.mrf.mxu0
  %v2463 = vadd.f32 %v2187, %v2462
  %2464 = vmatmul.bf16.gmra.mxu0 %v2119
  %v2465 = vpop.f32.mrf.mxu0
  %v2466 = vadd.f32 %v2187, %v2465
  %v2467 = vpop.f32.mrf.mxu0
  %v2468 = vadd.f32 %v2187, %v2467
  %2469 = vmatmul.bf16.gmra.mxu0 %v2121
  %v2470 = vpop.f32.mrf.mxu0
  %v2471 = vadd.f32 %v2187, %v2470
  %v2472 = vpop.f32.mrf.mxu0
  %v2473 = vadd.f32 %v2187, %v2472
  %2474 = vmatmul.bf16.gmra.mxu0 %v2123
  %v2475 = vpop.f32.mrf.mxu0
  %v2476 = vadd.f32 %v2187, %v2475
  %v2477 = vpop.f32.mrf.mxu0
  %v2478 = vadd.f32 %v2187, %v2477
  %2479 = vmatmul.bf16.gmra.mxu0 %v2125
  %v2480 = vpop.f32.mrf.mxu0
  %v2481 = vadd.f32 %v2187, %v2480
  %v2482 = vpop.f32.mrf.mxu0
  %v2483 = vadd.f32 %v2187, %v2482
  %2484 = vmatmul.bf16.gmra.mxu0 %v2127
  %v2485 = vpop.f32.mrf.mxu0
  %v2486 = vadd.f32 %v2187, %v2485
  %v2487 = vpop.f32.mrf.mxu0
  %v2488 = vadd.f32 %v2187, %v2487
  %2489 = vmatmul.bf16.gmra.mxu0 %v2129
  %v2490 = vpop.f32.mrf.mxu0
  %v2491 = vadd.f32 %v2187, %v2490
  %v2492 = vpop.f32.mrf.mxu0
  %v2493 = vadd.f32 %v2187, %v2492
  %2494 = vmatmul.bf16.gmra.mxu0 %v2131
  %v2495 = vpop.f32.mrf.mxu0
  %v2496 = vadd.f32 %v2187, %v2495
  %v2497 = vpop.f32.mrf.mxu0
  %v2498 = vadd.f32 %v2187, %v2497
  %2499 = vmatmul.bf16.gmra.mxu0 %v2133
  %v2500 = vpop.f32.mrf.mxu0
  %v2501 = vadd.f32 %v2187, %v2500
  %v2502 = vpop.f32.mrf.mxu0
  %v2503 = vadd.f32 %v2187, %v2502
  %2504 = vmatmul.bf16.gmra.mxu0 %v2135
  %v2505 = vpop.f32.mrf.mxu0
  %v2506 = vadd.f32 %v2187, %v2505
  %v2507 = vpop.f32.mrf.mxu0
  %v2508 = vadd.f32 %v2187, %v2507
  %2509 = vmatmul.bf16.gmra.mxu0 %v2137
  %v2510 = vpop.f32.mrf.mxu0
  %v2511 = vadd.f32 %v2187, %v2510
  %v2512 = vpop.f32.mrf.mxu0
  %v2513 = vadd.f32 %v2187, %v2512
  %2514 = vmatmul.bf16.gmra.mxu0 %v2139
  %v2515 = vpop.f32.mrf.mxu0
  %v2516 = vadd.f32 %v2187, %v2515
  %v2517 = vpop.f32.mrf.mxu0
  %v2518 = vadd.f32 %v2187, %v2517
  %2519 = vmatmul.bf16.gmra.mxu0 %v2141
  %v2520 = vpop.f32.mrf.mxu0
  %v2521 = vadd.f32 %v2187, %v2520
  %v2522 = vpop.f32.mrf.mxu0
  %v2523 = vadd.f32 %v2187, %v2522
  %2524 = vmatmul.bf16.gmra.mxu0 %v2143
  %v2525 = vpop.f32.mrf.mxu0
  %v2526 = vadd.f32 %v2187, %v2525
  %v2527 = vpop.f32.mrf.mxu0
  %v2528 = vadd.f32 %v2187, %v2527
  %2529 = vmatmul.bf16.gmra.mxu0 %v2145
  %v2530 = vpop.f32.mrf.mxu0
  %v2531 = vadd.f32 %v2187, %v2530
  %v2532 = vpop.f32.mrf.mxu0
  %v2533 = vadd.f32 %v2187, %v2532
  %2534 = vmatmul.bf16.gmra.mxu0 %v2147
  %v2535 = vpop.f32.mrf.mxu0
  %v2536 = vadd.f32 %v2187, %v2535
  %v2537 = vpop.f32.mrf.mxu0
  %v2538 = vadd.f32 %v2187, %v2537
  %2539 = vmatmul.bf16.gmra.mxu0 %v2149
  %v2540 = vpop.f32.mrf.mxu0
  %v2541 = vadd.f32 %v2187, %v2540
  %v2542 = vpop.f32.mrf.mxu0
  %v2543 = vadd.f32 %v2187, %v2542
  %2544 = vmatmul.bf16.gmra.mxu0 %v2151
  %v2545 = vpop.f32.mrf.mxu0
  %v2546 = vadd.f32 %v2187, %v2545
  %v2547 = vpop.f32.mrf.mxu0
  %2548 = vdwg.mxu0
  %2549 = vmatpush.bf16.msra.mxu0 %v2317
  %2550 = vmatpush.bf16.msra.mxu0 %v2315
  %2551 = vmatpush.bf16.msra.mxu0 %v2313
  %2552 = vmatpush.bf16.msra.mxu0 %v2311
  %2553 = vmatpush.bf16.msra.mxu0 %v2309
  %2554 = vmatpush.bf16.msra.mxu0 %v2307
  %2555 = vmatpush.bf16.msra.mxu0 %v2305
  %2556 = vmatpush.bf16.msra.mxu0 %v2303
  %2557 = vmatmul.bf16.gmra.mxu0 %v2078
  %v2558 = vpop.f32.mrf.mxu0
  %v2559 = vadd.f32 %v2361, %v2558
  %v2560 = vpop.f32.mrf.mxu0
  %v2561 = vadd.f32 %v2363, %v2560
  %2562 = vmatmul.bf16.gmra.mxu0 %v2080
  %v2563 = vpop.f32.mrf.mxu0
  %v2564 = vadd.f32 %v2366, %v2563
  %v2565 = vpop.f32.mrf.mxu0
  %v2566 = vadd.f32 %v2368, %v2565
  %2567 = vmatmul.bf16.gmra.mxu0 %v2082
  %v2568 = vpop.f32.mrf.mxu0
  %v2569 = vadd.f32 %v2371, %v2568
  %v2570 = vpop.f32.mrf.mxu0
  %v2571 = vadd.f32 %v2373, %v2570
  %2572 = vmatmul.bf16.gmra.mxu0 %v2084
  %v2573 = vpop.f32.mrf.mxu0
  %v2574 = vadd.f32 %v2376, %v2573
  %v2575 = vpop.f32.mrf.mxu0
  %v2576 = vadd.f32 %v2378, %v2575
  %2577 = vmatmul.bf16.gmra.mxu0 %v2086
  %v2578 = vpop.f32.mrf.mxu0
  %v2579 = vadd.f32 %v2381, %v2578
  %v2580 = vpop.f32.mrf.mxu0
  %v2581 = vadd.f32 %v2383, %v2580
  %2582 = vmatmul.bf16.gmra.mxu0 %v2088
  %v2583 = vpop.f32.mrf.mxu0
  %v2584 = vadd.f32 %v2386, %v2583
  %v2585 = vpop.f32.mrf.mxu0
  %v2586 = vadd.f32 %v2388, %v2585
  %2587 = vmatmul.bf16.gmra.mxu0 %v2090
  %v2588 = vpop.f32.mrf.mxu0
  %v2589 = vadd.f32 %v2391, %v2588
  %v2590 = vpop.f32.mrf.mxu0
  %v2591 = vadd.f32 %v2393, %v2590
  %2592 = vmatmul.bf16.gmra.mxu0 %v2092
  %v2593 = vpop.f32.mrf.mxu0
  %v2594 = vadd.f32 %v2396, %v2593
  %v2595 = vpop.f32.mrf.mxu0
  %v2596 = vadd.f32 %v2398, %v2595
  %2597 = vmatmul.bf16.gmra.mxu0 %v2094
  %v2598 = vpop.f32.mrf.mxu0
  %v2599 = vadd.f32 %v2401, %v2598
  %v2600 = vpop.f32.mrf.mxu0
  %v2601 = vadd.f32 %v2403, %v2600
  %2602 = vmatmul.bf16.gmra.mxu0 %v2096
  %v2603 = vpop.f32.mrf.mxu0
  %v2604 = vadd.f32 %v2406, %v2603
  %v2605 = vpop.f32.mrf.mxu0
  %v2606 = vadd.f32 %v2408, %v2605
  %2607 = vmatmul.bf16.gmra.mxu0 %v2098
  %v2608 = vpop.f32.mrf.mxu0
  %v2609 = vadd.f32 %v2411, %v2608
  %v2610 = vpop.f32.mrf.mxu0
  %v2611 = vadd.f32 %v2413, %v2610
  %2612 = vmatmul.bf16.gmra.mxu0 %v2100
  %v2613 = vpop.f32.mrf.mxu0
  %v2614 = vadd.f32 %v2416, %v2613
  %v2615 = vpop.f32.mrf.mxu0
  %v2616 = vadd.f32 %v2418, %v2615
  %2617 = vmatmul.bf16.gmra.mxu0 %v2102
  %v2618 = vpop.f32.mrf.mxu0
  %v2619 = vadd.f32 %v2421, %v2618
  %v2620 = vpop.f32.mrf.mxu0
  %v2621 = vadd.f32 %v2423, %v2620
  %2622 = vmatmul.bf16.gmra.mxu0 %v2104
  %v2623 = vpop.f32.mrf.mxu0
  %v2624 = vadd.f32 %v2426, %v2623
  %v2625 = vpop.f32.mrf.mxu0
  %v2626 = vadd.f32 %v2428, %v2625
  %2627 = vmatmul.bf16.gmra.mxu0 %v2106
  %v2628 = vpop.f32.mrf.mxu0
  %v2629 = vadd.f32 %v2431, %v2628
  %v2630 = vpop.f32.mrf.mxu0
  %v2631 = vadd.f32 %v2433, %v2630
  %2632 = vmatmul.bf16.gmra.mxu0 %v2108
  %v2633 = vpop.f32.mrf.mxu0
  %v2634 = vadd.f32 %v2436, %v2633
  %v2635 = vpop.f32.mrf.mxu0
  %v2636 = vadd.f32 %v2438, %v2635
  %2637 = vmatmul.bf16.gmra.mxu0 %v2110
  %v2638 = vpop.f32.mrf.mxu0
  %v2639 = vadd.f32 %v2441, %v2638
  %v2640 = vpop.f32.mrf.mxu0
  %v2641 = vadd.f32 %v2443, %v2640
  %2642 = vmatmul.bf16.gmra.mxu0 %v2112
  %v2643 = vpop.f32.mrf.mxu0
  %v2644 = vadd.f32 %v2446, %v2643
  %v2645 = vpop.f32.mrf.mxu0
  %v2646 = vadd.f32 %v2448, %v2645
  %2647 = vmatmul.bf16.gmra.mxu0 %v2114
  %v2648 = vpop.f32.mrf.mxu0
  %v2649 = vadd.f32 %v2451, %v2648
  %v2650 = vpop.f32.mrf.mxu0
  %v2651 = vadd.f32 %v2453, %v2650
  %2652 = vmatmul.bf16.gmra.mxu0 %v2116
  %v2653 = vpop.f32.mrf.mxu0
  %v2654 = vadd.f32 %v2456, %v2653
  %v2655 = vpop.f32.mrf.mxu0
  %v2656 = vadd.f32 %v2458, %v2655
  %2657 = vmatmul.bf16.gmra.mxu0 %v2118
  %v2658 = vpop.f32.mrf.mxu0
  %v2659 = vadd.f32 %v2461, %v2658
  %v2660 = vpop.f32.mrf.mxu0
  %v2661 = vadd.f32 %v2463, %v2660
  %2662 = vmatmul.bf16.gmra.mxu0 %v2120
  %v2663 = vpop.f32.mrf.mxu0
  %v2664 = vadd.f32 %v2466, %v2663
  %v2665 = vpop.f32.mrf.mxu0
  %v2666 = vadd.f32 %v2468, %v2665
  %2667 = vmatmul.bf16.gmra.mxu0 %v2122
  %v2668 = vpop.f32.mrf.mxu0
  %v2669 = vadd.f32 %v2471, %v2668
  %v2670 = vpop.f32.mrf.mxu0
  %v2671 = vadd.f32 %v2473, %v2670
  %2672 = vmatmul.bf16.gmra.mxu0 %v2124
  %v2673 = vpop.f32.mrf.mxu0
  %v2674 = vadd.f32 %v2476, %v2673
  %v2675 = vpop.f32.mrf.mxu0
  %v2676 = vadd.f32 %v2478, %v2675
  %2677 = vmatmul.bf16.gmra.mxu0 %v2126
  %v2678 = vpop.f32.mrf.mxu0
  %v2679 = vadd.f32 %v2481, %v2678
  %v2680 = vpop.f32.mrf.mxu0
  %v2681 = vadd.f32 %v2483, %v2680
  %2682 = vmatmul.bf16.gmra.mxu0 %v2128
  %v2683 = vpop.f32.mrf.mxu0
  %v2684 = vadd.f32 %v2486, %v2683
  %v2685 = vpop.f32.mrf.mxu0
  %v2686 = vadd.f32 %v2488, %v2685
  %2687 = vmatmul.bf16.gmra.mxu0 %v2130
  %v2688 = vpop.f32.mrf.mxu0
  %v2689 = vadd.f32 %v2491, %v2688
  %v2690 = vpop.f32.mrf.mxu0
  %v2691 = vadd.f32 %v2493, %v2690
  %2692 = vmatmul.bf16.gmra.mxu0 %v2132
  %v2693 = vpop.f32.mrf.mxu0
  %v2694 = vadd.f32 %v2496, %v2693
  %v2695 = vpop.f32.mrf.mxu0
  %v2696 = vadd.f32 %v2498, %v2695
  %2697 = vmatmul.bf16.gmra.mxu0 %v2134
  %v2698 = vpop.f32.mrf.mxu0
  %v2699 = vadd.f32 %v2501, %v2698
  %v2700 = vpop.f32.mrf.mxu0
  %v2701 = vadd.f32 %v2503, %v2700
  %2702 = vmatmul.bf16.gmra.mxu0 %v2136
  %v2703 = vpop.f32.mrf.mxu0
  %v2704 = vadd.f32 %v2506, %v2703
  %v2705 = vpop.f32.mrf.mxu0
  %v2706 = vadd.f32 %v2508, %v2705
  %2707 = vmatmul.bf16.gmra.mxu0 %v2138
  %v2708 = vpop.f32.mrf.mxu0
  %v2709 = vadd.f32 %v2511, %v2708
  %v2710 = vpop.f32.mrf.mxu0
  %v2711 = vadd.f32 %v2513, %v2710
  %2712 = vmatmul.bf16.gmra.mxu0 %v2140
  %v2713 = vpop.f32.mrf.mxu0
  %v2714 = vadd.f32 %v2516, %v2713
  %v2715 = vpop.f32.mrf.mxu0
  %v2716 = vadd.f32 %v2518, %v2715
  %2717 = vmatmul.bf16.gmra.mxu0 %v2142
  %v2718 = vpop.f32.mrf.mxu0
  %v2719 = vadd.f32 %v2521, %v2718
  %v2720 = vpop.f32.mrf.mxu0
  %v2721 = vadd.f32 %v2523, %v2720
  %2722 = vmatmul.bf16.gmra.mxu0 %v2144
  %v2723 = vpop.f32.mrf.mxu0
  %v2724 = vadd.f32 %v2526, %v2723
  %v2725 = vpop.f32.mrf.mxu0
  %v2726 = vadd.f32 %v2528, %v2725
  %2727 = vmatmul.bf16.gmra.mxu0 %v2146
  %v2728 = vpop.f32.mrf.mxu0
  %v2729 = vadd.f32 %v2531, %v2728
  %v2730 = vpop.f32.mrf.mxu0
  %v2731 = vadd.f32 %v2533, %v2730
  %2732 = vmatmul.bf16.gmra.mxu0 %v2148
  %v2733 = vpop.f32.mrf.mxu0
  %v2734 = vadd.f32 %v2536, %v2733
  %v2735 = vpop.f32.mrf.mxu0
  %v2736 = vadd.f32 %v2538, %v2735
  %2737 = vmatmul.bf16.gmra.mxu0 %v2150
  %v2738 = vpop.f32.mrf.mxu0
  %v2739 = vadd.f32 %v2541, %v2738
  %v2740 = vpop.f32.mrf.mxu0
  %v2741 = vadd.f32 %v2543, %v2740
  %2742 = vmatmul.bf16.gmra.mxu0 %v2152
  %v2743 = vpop.f32.mrf.mxu0
  %v2744 = vadd.f32 %v2546, %v2743
  %v2745 = vpop.f32.mrf.mxu0
  %2746 = vdwg.mxu0
  %2747 = vmatpush.bf16.msra.mxu0 %v2302
  %2748 = vmatpush.bf16.msra.mxu0 %v2300
  %2749 = vmatpush.bf16.msra.mxu0 %v2298
  %2750 = vmatpush.bf16.msra.mxu0 %v2296
  %2751 = vmatpush.bf16.msra.mxu0 %v2294
  %2752 = vmatpush.bf16.msra.mxu0 %v2292
  %2753 = vmatpush.bf16.msra.mxu0 %v2290
  %2754 = vmatpush.bf16.msra.mxu0 %v2288
  %2755 = vmatmul.bf16.gmra.mxu0 %v2077
  %v2756 = vpop.f32.mrf.mxu0
  %v2757 = vadd.f32 %v2188, %v2756
  %v2758 = vpop.f32.mrf.mxu0
  %v2759 = vadd.f32 %v2188, %v2758
  %2760 = vmatmul.bf16.gmra.mxu0 %v2079
  %v2761 = vpop.f32.mrf.mxu0
  %v2762 = vadd.f32 %v2188, %v2761
  %v2763 = vpop.f32.mrf.mxu0
  %v2764 = vadd.f32 %v2188, %v2763
  %2765 = vmatmul.bf16.gmra.mxu0 %v2081
  %v2766 = vpop.f32.mrf.mxu0
  %v2767 = vadd.f32 %v2188, %v2766
  %v2768 = vpop.f32.mrf.mxu0
  %v2769 = vadd.f32 %v2188, %v2768
  %2770 = vmatmul.bf16.gmra.mxu0 %v2083
  %v2771 = vpop.f32.mrf.mxu0
  %v2772 = vadd.f32 %v2188, %v2771
  %v2773 = vpop.f32.mrf.mxu0
  %v2774 = vadd.f32 %v2188, %v2773
  %2775 = vmatmul.bf16.gmra.mxu0 %v2085
  %v2776 = vpop.f32.mrf.mxu0
  %v2777 = vadd.f32 %v2188, %v2776
  %v2778 = vpop.f32.mrf.mxu0
  %v2779 = vadd.f32 %v2188, %v2778
  %2780 = vmatmul.bf16.gmra.mxu0 %v2087
  %v2781 = vpop.f32.mrf.mxu0
  %v2782 = vadd.f32 %v2188, %v2781
  %v2783 = vpop.f32.mrf.mxu0
  %v2784 = vadd.f32 %v2188, %v2783
  %2785 = vmatmul.bf16.gmra.mxu0 %v2089
  %v2786 = vpop.f32.mrf.mxu0
  %v2787 = vadd.f32 %v2188, %v2786
  %v2788 = vpop.f32.mrf.mxu0
  %v2789 = vadd.f32 %v2188, %v2788
  %2790 = vmatmul.bf16.gmra.mxu0 %v2091
  %v2791 = vpop.f32.mrf.mxu0
  %v2792 = vadd.f32 %v2188, %v2791
  %v2793 = vpop.f32.mrf.mxu0
  %v2794 = vadd.f32 %v2188, %v2793
  %2795 = vmatmul.bf16.gmra.mxu0 %v2093
  %v2796 = vpop.f32.mrf.mxu0
  %v2797 = vadd.f32 %v2188, %v2796
  %v2798 = vpop.f32.mrf.mxu0
  %v2799 = vadd.f32 %v2188, %v2798
  %2800 = vmatmul.bf16.gmra.mxu0 %v2095
  %v2801 = vpop.f32.mrf.mxu0
  %v2802 = vadd.f32 %v2188, %v2801
  %v2803 = vpop.f32.mrf.mxu0
  %v2804 = vadd.f32 %v2188, %v2803
  %2805 = vmatmul.bf16.gmra.mxu0 %v2097
  %v2806 = vpop.f32.mrf.mxu0
  %v2807 = vadd.f32 %v2188, %v2806
  %v2808 = vpop.f32.mrf.mxu0
  %v2809 = vadd.f32 %v2188, %v2808
  %2810 = vmatmul.bf16.gmra.mxu0 %v2099
  %v2811 = vpop.f32.mrf.mxu0
  %v2812 = vadd.f32 %v2188, %v2811
  %v2813 = vpop.f32.mrf.mxu0
  %v2814 = vadd.f32 %v2188, %v2813
  %2815 = vmatmul.bf16.gmra.mxu0 %v2101
  %v2816 = vpop.f32.mrf.mxu0
  %v2817 = vadd.f32 %v2188, %v2816
  %v2818 = vpop.f32.mrf.mxu0
  %v2819 = vadd.f32 %v2188, %v2818
  %2820 = vmatmul.bf16.gmra.mxu0 %v2103
  %v2821 = vpop.f32.mrf.mxu0
  %v2822 = vadd.f32 %v2188, %v2821
  %v2823 = vpop.f32.mrf.mxu0
  %v2824 = vadd.f32 %v2188, %v2823
  %2825 = vmatmul.bf16.gmra.mxu0 %v2105
  %v2826 = vpop.f32.mrf.mxu0
  %v2827 = vadd.f32 %v2188, %v2826
  %v2828 = vpop.f32.mrf.mxu0
  %v2829 = vadd.f32 %v2188, %v2828
  %2830 = vmatmul.bf16.gmra.mxu0 %v2107
  %v2831 = vpop.f32.mrf.mxu0
  %v2832 = vadd.f32 %v2188, %v2831
  %v2833 = vpop.f32.mrf.mxu0
  %v2834 = vadd.f32 %v2188, %v2833
  %2835 = vmatmul.bf16.gmra.mxu0 %v2109
  %v2836 = vpop.f32.mrf.mxu0
  %v2837 = vadd.f32 %v2188, %v2836
  %v2838 = vpop.f32.mrf.mxu0
  %v2839 = vadd.f32 %v2188, %v2838
  %2840 = vmatmul.bf16.gmra.mxu0 %v2111
  %v2841 = vpop.f32.mrf.mxu0
  %v2842 = vadd.f32 %v2188, %v2841
  %v2843 = vpop.f32.mrf.mxu0
  %v2844 = vadd.f32 %v2188, %v2843
  %2845 = vmatmul.bf16.gmra.mxu0 %v2113
  %v2846 = vpop.f32.mrf.mxu0
  %v2847 = vadd.f32 %v2188, %v2846
  %v2848 = vpop.f32.mrf.mxu0
  %v2849 = vadd.f32 %v2188, %v2848
  %2850 = vmatmul.bf16.gmra.mxu0 %v2115
  %v2851 = vpop.f32.mrf.mxu0
  %v2852 = vadd.f32 %v2188, %v2851
  %v2853 = vpop.f32.mrf.mxu0
  %v2854 = vadd.f32 %v2188, %v2853
  %2855 = vmatmul.bf16.gmra.mxu0 %v2117
  %v2856 = vpop.f32.mrf.mxu0
  %v2857 = vadd.f32 %v2188, %v2856
  %v2858 = vpop.f32.mrf.mxu0
  %v2859 = vadd.f32 %v2188, %v2858
  %2860 = vmatmul.bf16.gmra.mxu0 %v2119
  %v2861 = vpop.f32.mrf.mxu0
  %v2862 = vadd.f32 %v2188, %v2861
  %v2863 = vpop.f32.mrf.mxu0
  %v2864 = vadd.f32 %v2188, %v2863
  %2865 = vmatmul.bf16.gmra.mxu0 %v2121
  %v2866 = vpop.f32.mrf.mxu0
  %v2867 = vadd.f32 %v2188, %v2866
  %v2868 = vpop.f32.mrf.mxu0
  %v2869 = vadd.f32 %v2188, %v2868
  %2870 = vmatmul.bf16.gmra.mxu0 %v2123
  %v2871 = vpop.f32.mrf.mxu0
  %v2872 = vadd.f32 %v2188, %v2871
  %v2873 = vpop.f32.mrf.mxu0
  %v2874 = vadd.f32 %v2188, %v2873
  %2875 = vmatmul.bf16.gmra.mxu0 %v2125
  %v2876 = vpop.f32.mrf.mxu0
  %v2877 = vadd.f32 %v2188, %v2876
  %v2878 = vpop.f32.mrf.mxu0
  %v2879 = vadd.f32 %v2188, %v2878
  %2880 = vmatmul.bf16.gmra.mxu0 %v2127
  %v2881 = vpop.f32.mrf.mxu0
  %v2882 = vadd.f32 %v2188, %v2881
  %v2883 = vpop.f32.mrf.mxu0
  %v2884 = vadd.f32 %v2188, %v2883
  %2885 = vmatmul.bf16.gmra.mxu0 %v2129
  %v2886 = vpop.f32.mrf.mxu0
  %v2887 = vadd.f32 %v2188, %v2886
  %v2888 = vpop.f32.mrf.mxu0
  %v2889 = vadd.f32 %v2188, %v2888
  %2890 = vmatmul.bf16.gmra.mxu0 %v2131
  %v2891 = vpop.f32.mrf.mxu0
  %v2892 = vadd.f32 %v2188, %v2891
  %v2893 = vpop.f32.mrf.mxu0
  %v2894 = vadd.f32 %v2188, %v2893
  %2895 = vmatmul.bf16.gmra.mxu0 %v2133
  %v2896 = vpop.f32.mrf.mxu0
  %v2897 = vadd.f32 %v2188, %v2896
  %v2898 = vpop.f32.mrf.mxu0
  %v2899 = vadd.f32 %v2188, %v2898
  %2900 = vmatmul.bf16.gmra.mxu0 %v2135
  %v2901 = vpop.f32.mrf.mxu0
  %v2902 = vadd.f32 %v2188, %v2901
  %v2903 = vpop.f32.mrf.mxu0
  %v2904 = vadd.f32 %v2188, %v2903
  %2905 = vmatmul.bf16.gmra.mxu0 %v2137
  %v2906 = vpop.f32.mrf.mxu0
  %v2907 = vadd.f32 %v2188, %v2906
  %v2908 = vpop.f32.mrf.mxu0
  %v2909 = vadd.f32 %v2188, %v2908
  %2910 = vmatmul.bf16.gmra.mxu0 %v2139
  %v2911 = vpop.f32.mrf.mxu0
  %v2912 = vadd.f32 %v2188, %v2911
  %v2913 = vpop.f32.mrf.mxu0
  %v2914 = vadd.f32 %v2188, %v2913
  %2915 = vmatmul.bf16.gmra.mxu0 %v2141
  %v2916 = vpop.f32.mrf.mxu0
  %v2917 = vadd.f32 %v2188, %v2916
  %v2918 = vpop.f32.mrf.mxu0
  %v2919 = vadd.f32 %v2188, %v2918
  %2920 = vmatmul.bf16.gmra.mxu0 %v2143
  %v2921 = vpop.f32.mrf.mxu0
  %v2922 = vadd.f32 %v2188, %v2921
  %v2923 = vpop.f32.mrf.mxu0
  %v2924 = vadd.f32 %v2188, %v2923
  %2925 = vmatmul.bf16.gmra.mxu0 %v2145
  %v2926 = vpop.f32.mrf.mxu0
  %v2927 = vadd.f32 %v2188, %v2926
  %v2928 = vpop.f32.mrf.mxu0
  %v2929 = vadd.f32 %v2188, %v2928
  %2930 = vmatmul.bf16.gmra.mxu0 %v2147
  %v2931 = vpop.f32.mrf.mxu0
  %v2932 = vadd.f32 %v2188, %v2931
  %v2933 = vpop.f32.mrf.mxu0
  %v2934 = vadd.f32 %v2188, %v2933
  %2935 = vmatmul.bf16.gmra.mxu0 %v2149
  %v2936 = vpop.f32.mrf.mxu0
  %v2937 = vadd.f32 %v2188, %v2936
  %v2938 = vpop.f32.mrf.mxu0
  %v2939 = vadd.f32 %v2188, %v2938
  %2940 = vmatmul.bf16.gmra.mxu0 %v2151
  %v2941 = vpop.f32.mrf.mxu0
  %v2942 = vadd.f32 %v2188, %v2941
  %v2943 = vpop.f32.mrf.mxu0
  %2944 = vdwg.mxu0
  %2945 = vmatpush.bf16.msra.mxu0 %v2318
  %2946 = vmatpush.bf16.msra.mxu0 %v2316
  %2947 = vmatpush.bf16.msra.mxu0 %v2314
  %2948 = vmatpush.bf16.msra.mxu0 %v2312
  %2949 = vmatpush.bf16.msra.mxu0 %v2310
  %2950 = vmatpush.bf16.msra.mxu0 %v2308
  %2951 = vmatpush.bf16.msra.mxu0 %v2306
  %2952 = vmatpush.bf16.msra.mxu0 %v2304
  %2953 = vmatmul.bf16.gmra.mxu0 %v2078
  %v2954 = vpop.f32.mrf.mxu0
  %v2955 = vadd.f32 %v2757, %v2954
  %v2956 = vpop.f32.mrf.mxu0
  %v2957 = vadd.f32 %v2759, %v2956
  %2958 = vmatmul.bf16.gmra.mxu0 %v2080
  %v2959 = vpop.f32.mrf.mxu0
  %v2960 = vadd.f32 %v2762, %v2959
  %v2961 = vpop.f32.mrf.mxu0
  %v2962 = vadd.f32 %v2764, %v2961
  %2963 = vmatmul.bf16.gmra.mxu0 %v2082
  %v2964 = vpop.f32.mrf.mxu0
  %v2965 = vadd.f32 %v2767, %v2964
  %v2966 = vpop.f32.mrf.mxu0
  %v2967 = vadd.f32 %v2769, %v2966
  %2968 = vmatmul.bf16.gmra.mxu0 %v2084
  %v2969 = vpop.f32.mrf.mxu0
  %v2970 = vadd.f32 %v2772, %v2969
  %v2971 = vpop.f32.mrf.mxu0
  %v2972 = vadd.f32 %v2774, %v2971
  %2973 = vmatmul.bf16.gmra.mxu0 %v2086
  %v2974 = vpop.f32.mrf.mxu0
  %v2975 = vadd.f32 %v2777, %v2974
  %v2976 = vpop.f32.mrf.mxu0
  %v2977 = vadd.f32 %v2779, %v2976
  %2978 = vmatmul.bf16.gmra.mxu0 %v2088
  %v2979 = vpop.f32.mrf.mxu0
  %v2980 = vadd.f32 %v2782, %v2979
  %v2981 = vpop.f32.mrf.mxu0
  %v2982 = vadd.f32 %v2784, %v2981
  %2983 = vmatmul.bf16.gmra.mxu0 %v2090
  %v2984 = vpop.f32.mrf.mxu0
  %v2985 = vadd.f32 %v2787, %v2984
  %v2986 = vpop.f32.mrf.mxu0
  %v2987 = vadd.f32 %v2789, %v2986
  %2988 = vmatmul.bf16.gmra.mxu0 %v2092
  %v2989 = vpop.f32.mrf.mxu0
  %v2990 = vadd.f32 %v2792, %v2989
  %v2991 = vpop.f32.mrf.mxu0
  %v2992 = vadd.f32 %v2794, %v2991
  %2993 = vmatmul.bf16.gmra.mxu0 %v2094
  %v2994 = vpop.f32.mrf.mxu0
  %v2995 = vadd.f32 %v2797, %v2994
  %v2996 = vpop.f32.mrf.mxu0
  %v2997 = vadd.f32 %v2799, %v2996
  %2998 = vmatmul.bf16.gmra.mxu0 %v2096
  %v2999 = vpop.f32.mrf.mxu0
  %v3000 = vadd.f32 %v2802, %v2999
  %v3001 = vpop.f32.mrf.mxu0
  %v3002 = vadd.f32 %v2804, %v3001
  %3003 = vmatmul.bf16.gmra.mxu0 %v2098
  %v3004 = vpop.f32.mrf.mxu0
  %v3005 = vadd.f32 %v2807, %v3004
  %v3006 = vpop.f32.mrf.mxu0
  %v3007 = vadd.f32 %v2809, %v3006
  %3008 = vmatmul.bf16.gmra.mxu0 %v2100
  %v3009 = vpop.f32.mrf.mxu0
  %v3010 = vadd.f32 %v2812, %v3009
  %v3011 = vpop.f32.mrf.mxu0
  %v3012 = vadd.f32 %v2814, %v3011
  %3013 = vmatmul.bf16.gmra.mxu0 %v2102
  %v3014 = vpop.f32.mrf.mxu0
  %v3015 = vadd.f32 %v2817, %v3014
  %v3016 = vpop.f32.mrf.mxu0
  %v3017 = vadd.f32 %v2819, %v3016
  %3018 = vmatmul.bf16.gmra.mxu0 %v2104
  %v3019 = vpop.f32.mrf.mxu0
  %v3020 = vadd.f32 %v2822, %v3019
  %v3021 = vpop.f32.mrf.mxu0
  %v3022 = vadd.f32 %v2824, %v3021
  %3023 = vmatmul.bf16.gmra.mxu0 %v2106
  %v3024 = vpop.f32.mrf.mxu0
  %v3025 = vadd.f32 %v2827, %v3024
  %v3026 = vpop.f32.mrf.mxu0
  %v3027 = vadd.f32 %v2829, %v3026
  %3028 = vmatmul.bf16.gmra.mxu0 %v2108
  %v3029 = vpop.f32.mrf.mxu0
  %v3030 = vadd.f32 %v2832, %v3029
  %v3031 = vpop.f32.mrf.mxu0
  %v3032 = vadd.f32 %v2834, %v3031
  %3033 = vmatmul.bf16.gmra.mxu0 %v2110
  %v3034 = vpop.f32.mrf.mxu0
  %v3035 = vadd.f32 %v2837, %v3034
  %v3036 = vpop.f32.mrf.mxu0
  %v3037 = vadd.f32 %v2839, %v3036
  %3038 = vmatmul.bf16.gmra.mxu0 %v2112
  %v3039 = vpop.f32.mrf.mxu0
  %v3040 = vadd.f32 %v2842, %v3039
  %v3041 = vpop.f32.mrf.mxu0
  %v3042 = vadd.f32 %v2844, %v3041
  %3043 = vmatmul.bf16.gmra.mxu0 %v2114
  %v3044 = vpop.f32.mrf.mxu0
  %v3045 = vadd.f32 %v2847, %v3044
  %v3046 = vpop.f32.mrf.mxu0
  %v3047 = vadd.f32 %v2849, %v3046
  %3048 = vmatmul.bf16.gmra.mxu0 %v2116
  %v3049 = vpop.f32.mrf.mxu0
  %v3050 = vadd.f32 %v2852, %v3049
  %v3051 = vpop.f32.mrf.mxu0
  %v3052 = vadd.f32 %v2854, %v3051
  %3053 = vmatmul.bf16.gmra.mxu0 %v2118
  %v3054 = vpop.f32.mrf.mxu0
  %v3055 = vadd.f32 %v2857, %v3054
  %v3056 = vpop.f32.mrf.mxu0
  %v3057 = vadd.f32 %v2859, %v3056
  %3058 = vmatmul.bf16.gmra.mxu0 %v2120
  %v3059 = vpop.f32.mrf.mxu0
  %v3060 = vadd.f32 %v2862, %v3059
  %v3061 = vpop.f32.mrf.mxu0
  %v3062 = vadd.f32 %v2864, %v3061
  %3063 = vmatmul.bf16.gmra.mxu0 %v2122
  %v3064 = vpop.f32.mrf.mxu0
  %v3065 = vadd.f32 %v2867, %v3064
  %v3066 = vpop.f32.mrf.mxu0
  %v3067 = vadd.f32 %v2869, %v3066
  %3068 = vmatmul.bf16.gmra.mxu0 %v2124
  %v3069 = vpop.f32.mrf.mxu0
  %v3070 = vadd.f32 %v2872, %v3069
  %v3071 = vpop.f32.mrf.mxu0
  %v3072 = vadd.f32 %v2874, %v3071
  %3073 = vmatmul.bf16.gmra.mxu0 %v2126
  %v3074 = vpop.f32.mrf.mxu0
  %v3075 = vadd.f32 %v2877, %v3074
  %v3076 = vpop.f32.mrf.mxu0
  %v3077 = vadd.f32 %v2879, %v3076
  %3078 = vmatmul.bf16.gmra.mxu0 %v2128
  %v3079 = vpop.f32.mrf.mxu0
  %v3080 = vadd.f32 %v2882, %v3079
  %v3081 = vpop.f32.mrf.mxu0
  %v3082 = vadd.f32 %v2884, %v3081
  %3083 = vmatmul.bf16.gmra.mxu0 %v2130
  %v3084 = vpop.f32.mrf.mxu0
  %v3085 = vadd.f32 %v2887, %v3084
  %v3086 = vpop.f32.mrf.mxu0
  %v3087 = vadd.f32 %v2889, %v3086
  %3088 = vmatmul.bf16.gmra.mxu0 %v2132
  %v3089 = vpop.f32.mrf.mxu0
  %v3090 = vadd.f32 %v2892, %v3089
  %v3091 = vpop.f32.mrf.mxu0
  %v3092 = vadd.f32 %v2894, %v3091
  %3093 = vmatmul.bf16.gmra.mxu0 %v2134
  %v3094 = vpop.f32.mrf.mxu0
  %v3095 = vadd.f32 %v2897, %v3094
  %v3096 = vpop.f32.mrf.mxu0
  %v3097 = vadd.f32 %v2899, %v3096
  %3098 = vmatmul.bf16.gmra.mxu0 %v2136
  %v3099 = vpop.f32.mrf.mxu0
  %v3100 = vadd.f32 %v2902, %v3099
  %v3101 = vpop.f32.mrf.mxu0
  %v3102 = vadd.f32 %v2904, %v3101
  %3103 = vmatmul.bf16.gmra.mxu0 %v2138
  %v3104 = vpop.f32.mrf.mxu0
  %v3105 = vadd.f32 %v2907, %v3104
  %v3106 = vpop.f32.mrf.mxu0
  %v3107 = vadd.f32 %v2909, %v3106
  %3108 = vmatmul.bf16.gmra.mxu0 %v2140
  %v3109 = vpop.f32.mrf.mxu0
  %v3110 = vadd.f32 %v2912, %v3109
  %v3111 = vpop.f32.mrf.mxu0
  %v3112 = vadd.f32 %v2914, %v3111
  %3113 = vmatmul.bf16.gmra.mxu0 %v2142
  %v3114 = vpop.f32.mrf.mxu0
  %v3115 = vadd.f32 %v2917, %v3114
  %v3116 = vpop.f32.mrf.mxu0
  %v3117 = vadd.f32 %v2919, %v3116
  %3118 = vmatmul.bf16.gmra.mxu0 %v2144
  %v3119 = vpop.f32.mrf.mxu0
  %v3120 = vadd.f32 %v2922, %v3119
  %v3121 = vpop.f32.mrf.mxu0
  %v3122 = vadd.f32 %v2924, %v3121
  %3123 = vmatmul.bf16.gmra.mxu0 %v2146
  %v3124 = vpop.f32.mrf.mxu0
  %v3125 = vadd.f32 %v2927, %v3124
  %v3126 = vpop.f32.mrf.mxu0
  %v3127 = vadd.f32 %v2929, %v3126
  %3128 = vmatmul.bf16.gmra.mxu0 %v2148
  %v3129 = vpop.f32.mrf.mxu0
  %v3130 = vadd.f32 %v2932, %v3129
  %v3131 = vpop.f32.mrf.mxu0
  %v3132 = vadd.f32 %v2934, %v3131
  %3133 = vmatmul.bf16.gmra.mxu0 %v2150
  %v3134 = vpop.f32.mrf.mxu0
  %v3135 = vadd.f32 %v2937, %v3134
  %v3136 = vpop.f32.mrf.mxu0
  %v3137 = vadd.f32 %v2939, %v3136
  %3138 = vmatmul.bf16.gmra.mxu0 %v2152
  %v3139 = vpop.f32.mrf.mxu0
  %v3140 = vadd.f32 %v2942, %v3139
  %v3141 = vpop.f32.mrf.mxu0
  %3142 = vdwg.mxu0
  %v3143 = vmax.f32 %v2559, 0.0
  %v3144 = vmax.f32 %v2955, 0.0
  %v3145 = vmax.f32 %v2561, 0.0
  %v3146 = vmax.f32 %v2957, 0.0
  %v3147 = vmax.f32 %v2564, 0.0
  %v3148 = vmax.f32 %v2960, 0.0
  %v3149 = vmax.f32 %v2566, 0.0
  %v3150 = vmax.f32 %v2962, 0.0
  %v3151 = vmax.f32 %v2569, 0.0
  %v3152 = vmax.f32 %v2965, 0.0
  %v3153 = vmax.f32 %v2571, 0.0
  %v3154 = vmax.f32 %v2967, 0.0
  %v3155 = vmax.f32 %v2574, 0.0
  %v3156 = vmax.f32 %v2970, 0.0
  %v3157 = vmax.f32 %v2576, 0.0
  %v3158 = vmax.f32 %v2972, 0.0
  %v3159 = vmax.f32 %v2579, 0.0
  %v3160 = vmax.f32 %v2975, 0.0
  %v3161 = vmax.f32 %v2581, 0.0
  %v3162 = vmax.f32 %v2977, 0.0
  %v3163 = vmax.f32 %v2584, 0.0
  %v3164 = vmax.f32 %v2980, 0.0
  %v3165 = vmax.f32 %v2586, 0.0
  %v3166 = vmax.f32 %v2982, 0.0
  %v3167 = vmax.f32 %v2589, 0.0
  %v3168 = vmax.f32 %v2985, 0.0
  %v3169 = vmax.f32 %v2591, 0.0
  %v3170 = vmax.f32 %v2987, 0.0
  %v3171 = vmax.f32 %v2594, 0.0
  %v3172 = vmax.f32 %v2990, 0.0
  %v3173 = vmax.f32 %v2596, 0.0
  %v3174 = vmax.f32 %v2992, 0.0
  %v3175 = vmax.f32 %v2599, 0.0
  %v3176 = vmax.f32 %v2995, 0.0
  %v3177 = vmax.f32 %v2601, 0.0
  %v3178 = vmax.f32 %v2997, 0.0
  %v3179 = vmax.f32 %v2604, 0.0
  %v3180 = vmax.f32 %v3000, 0.0
  %v3181 = vmax.f32 %v2606, 0.0
  %v3182 = vmax.f32 %v3002, 0.0
  %v3183 = vmax.f32 %v2609, 0.0
  %v3184 = vmax.f32 %v3005, 0.0
  %v3185 = vmax.f32 %v2611, 0.0
  %v3186 = vmax.f32 %v3007, 0.0
  %v3187 = vmax.f32 %v2614, 0.0
  %v3188 = vmax.f32 %v3010, 0.0
  %v3189 = vmax.f32 %v2616, 0.0
  %v3190 = vmax.f32 %v3012, 0.0
  %v3191 = vmax.f32 %v2619, 0.0
  %v3192 = vmax.f32 %v3015, 0.0
  %v3193 = vmax.f32 %v2621, 0.0
  %v3194 = vmax.f32 %v3017, 0.0
  %v3195 = vmax.f32 %v2624, 0.0
  %v3196 = vmax.f32 %v3020, 0.0
  %v3197 = vmax.f32 %v2626, 0.0
  %v3198 = vmax.f32 %v3022, 0.0
  %v3199 = vmax.f32 %v2629, 0.0
  %v3200 = vmax.f32 %v3025, 0.0
  %v3201 = vmax.f32 %v2631, 0.0
  %v3202 = vmax.f32 %v3027, 0.0
  %v3203 = vmax.f32 %v2634, 0.0
  %v3204 = vmax.f32 %v3030, 0.0
  %v3205 = vmax.f32 %v2636, 0.0
  %v3206 = vmax.f32 %v3032, 0.0
  %v3207 = vmax.f32 %v2639, 0.0
  %v3208 = vmax.f32 %v3035, 0.0
  %v3209 = vmax.f32 %v2641, 0.0
  %v3210 = vmax.f32 %v3037, 0.0
  %v3211 = vmax.f32 %v2644, 0.0
  %v3212 = vmax.f32 %v3040, 0.0
  %v3213 = vmax.f32 %v2646, 0.0
  %v3214 = vmax.f32 %v3042, 0.0
  %v3215 = vmax.f32 %v2649, 0.0
  %v3216 = vmax.f32 %v3045, 0.0
  %v3217 = vmax.f32 %v2651, 0.0
  %v3218 = vmax.f32 %v3047, 0.0
  %v3219 = vmax.f32 %v2654, 0.0
  %v3220 = vmax.f32 %v3050, 0.0
  %v3221 = vmax.f32 %v2656, 0.0
  %v3222 = vmax.f32 %v3052, 0.0
  %v3223 = vmax.f32 %v2659, 0.0
  %v3224 = vmax.f32 %v3055, 0.0
  %v3225 = vmax.f32 %v2661, 0.0
  %v3226 = vmax.f32 %v3057, 0.0
  %v3227 = vmax.f32 %v2664, 0.0
  %v3228 = vmax.f32 %v3060, 0.0
  %v3229 = vmax.f32 %v2666, 0.0
  %v3230 = vmax.f32 %v3062, 0.0
  %v3231 = vmax.f32 %v2669, 0.0
  %v3232 = vmax.f32 %v3065, 0.0
  %v3233 = vmax.f32 %v2671, 0.0
  %v3234 = vmax.f32 %v3067, 0.0
  %v3235 = vmax.f32 %v2674, 0.0
  %v3236 = vmax.f32 %v3070, 0.0
  %v3237 = vmax.f32 %v2676, 0.0
  %v3238 = vmax.f32 %v3072, 0.0
  %v3239 = vmax.f32 %v2679, 0.0
  %v3240 = vmax.f32 %v3075, 0.0
  %v3241 = vmax.f32 %v2681, 0.0
  %v3242 = vmax.f32 %v3077, 0.0
  %v3243 = vmax.f32 %v2684, 0.0
  %v3244 = vmax.f32 %v3080, 0.0
  %v3245 = vmax.f32 %v2686, 0.0
  %v3246 = vmax.f32 %v3082, 0.0
  %v3247 = vmax.f32 %v2689, 0.0
  %v3248 = vmax.f32 %v3085, 0.0
  %v3249 = vmax.f32 %v2691, 0.0
  %v3250 = vmax.f32 %v3087, 0.0
  %v3251 = vmax.f32 %v2694, 0.0
  %v3252 = vmax.f32 %v3090, 0.0
  %v3253 = vmax.f32 %v2696, 0.0
  %v3254 = vmax.f32 %v3092, 0.0
  %v3255 = vmax.f32 %v2699, 0.0
  %v3256 = vmax.f32 %v3095, 0.0
  %v3257 = vmax.f32 %v2701, 0.0
  %v3258 = vmax.f32 %v3097, 0.0
  %v3259 = vmax.f32 %v2704, 0.0
  %v3260 = vmax.f32 %v3100, 0.0
  %v3261 = vmax.f32 %v2706, 0.0
  %v3262 = vmax.f32 %v3102, 0.0
  %v3263 = vmax.f32 %v2709, 0.0
  %v3264 = vmax.f32 %v3105, 0.0
  %v3265 = vmax.f32 %v2711, 0.0
  %v3266 = vmax.f32 %v3107, 0.0
  %v3267 = vmax.f32 %v2714, 0.0
  %v3268 = vmax.f32 %v3110, 0.0
  %v3269 = vmax.f32 %v2716, 0.0
  %v3270 = vmax.f32 %v3112, 0.0
  %v3271 = vmax.f32 %v2719, 0.0
  %v3272 = vmax.f32 %v3115, 0.0
  %v3273 = vmax.f32 %v2721, 0.0
  %v3274 = vmax.f32 %v3117, 0.0
  %v3275 = vmax.f32 %v2724, 0.0
  %v3276 = vmax.f32 %v3120, 0.0
  %v3277 = vmax.f32 %v2726, 0.0
  %v3278 = vmax.f32 %v3122, 0.0
  %v3279 = vmax.f32 %v2729, 0.0
  %v3280 = vmax.f32 %v3125, 0.0
  %v3281 = vmax.f32 %v2731, 0.0
  %v3282 = vmax.f32 %v3127, 0.0
  %v3283 = vmax.f32 %v2734, 0.0
  %v3284 = vmax.f32 %v3130, 0.0
  %v3285 = vmax.f32 %v2736, 0.0
  %v3286 = vmax.f32 %v3132, 0.0
  %v3287 = vmax.f32 %v2739, 0.0
  %v3288 = vmax.f32 %v3135, 0.0
  %v3289 = vmax.f32 %v2741, 0.0
  %v3290 = vmax.f32 %v3137, 0.0
  %v3291 = vmax.f32 %v2744, 0.0
  %v3292 = vmax.f32 %v3140, 0.0
  %v3293 = vpack.c.bf16 %v3145, %v3143
  %v3294 = vpack.c.bf16 %v3146, %v3144
  %v3295 = vpack.c.bf16 %v3149, %v3147
  %v3296 = vpack.c.bf16 %v3150, %v3148
  %v3297 = vpack.c.bf16 %v3153, %v3151
  %v3298 = vpack.c.bf16 %v3154, %v3152
  %v3299 = vpack.c.bf16 %v3157, %v3155
  %v3300 = vpack.c.bf16 %v3158, %v3156
  %v3301 = vpack.c.bf16 %v3161, %v3159
  %v3302 = vpack.c.bf16 %v3162, %v3160
  %v3303 = vpack.c.bf16 %v3165, %v3163
  %v3304 = vpack.c.bf16 %v3166, %v3164
  %v3305 = vpack.c.bf16 %v3169, %v3167
  %v3306 = vpack.c.bf16 %v3170, %v3168
  %v3307 = vpack.c.bf16 %v3173, %v3171
  %v3308 = vpack.c.bf16 %v3174, %v3172
  %v3309 = vpack.c.bf16 %v3177, %v3175
  %v3310 = vpack.c.bf16 %v3178, %v3176
  %v3311 = vpack.c.bf16 %v3181, %v3179
  %v3312 = vpack.c.bf16 %v3182, %v3180
  %v3313 = vpack.c.bf16 %v3185, %v3183
  %v3314 = vpack.c.bf16 %v3186, %v3184
  %v3315 = vpack.c.bf16 %v3189, %v3187
  %v3316 = vpack.c.bf16 %v3190, %v3188
  %v3317 = vpack.c.bf16 %v3193, %v3191
  %v3318 = vpack.c.bf16 %v3194, %v3192
  %v3319 = vpack.c.bf16 %v3197, %v3195
  %v3320 = vpack.c.bf16 %v3198, %v3196
  %v3321 = vpack.c.bf16 %v3201, %v3199
  %v3322 = vpack.c.bf16 %v3202, %v3200
  %v3323 = vpack.c.bf16 %v3205, %v3203
  %v3324 = vpack.c.bf16 %v3206, %v3204
  %v3325 = vpack.c.bf16 %v3209, %v3207
  %v3326 = vpack.c.bf16 %v3210, %v3208
  %v3327 = vpack.c.bf16 %v3213, %v3211
  %v3328 = vpack.c.bf16 %v3214, %v3212
  %v3329 = vpack.c.bf16 %v3217, %v3215
  %v3330 = vpack.c.bf16 %v3218, %v3216
  %v3331 = vpack.c.bf16 %v3221, %v3219
  %v3332 = vpack.c.bf16 %v3222, %v3220
  %v3333 = vpack.c.bf16 %v3225, %v3223
  %v3334 = vpack.c.bf16 %v3226, %v3224
  %v3335 = vpack.c.bf16 %v3229, %v3227
  %v3336 = vpack.c.bf16 %v3230, %v3228
  %v3337 = vpack.c.bf16 %v3233, %v3231
  %v3338 = vpack.c.bf16 %v3234, %v3232
  %v3339 = vpack.c.bf16 %v3237, %v3235
  %v3340 = vpack.c.bf16 %v3238, %v3236
  %v3341 = vpack.c.bf16 %v3241, %v3239
  %v3342 = vpack.c.bf16 %v3242, %v3240
  %v3343 = vpack.c.bf16 %v3245, %v3243
  %v3344 = vpack.c.bf16 %v3246, %v3244
  %v3345 = vpack.c.bf16 %v3249, %v3247
  %v3346 = vpack.c.bf16 %v3250, %v3248
  %v3347 = vpack.c.bf16 %v3253, %v3251
  %v3348 = vpack.c.bf16 %v3254, %v3252
  %v3349 = vpack.c.bf16 %v3257, %v3255
  %v3350 = vpack.c.bf16 %v3258, %v3256
  %v3351 = vpack.c.bf16 %v3261, %v3259
  %v3352 = vpack.c.bf16 %v3262, %v3260
  %v3353 = vpack.c.bf16 %v3265, %v3263
  %v3354 = vpack.c.bf16 %v3266, %v3264
  %v3355 = vpack.c.bf16 %v3269, %v3267
  %v3356 = vpack.c.bf16 %v3270, %v3268
  %v3357 = vpack.c.bf16 %v3273, %v3271
  %v3358 = vpack.c.bf16 %v3274, %v3272
  %v3359 = vpack.c.bf16 %v3277, %v3275
  %v3360 = vpack.c.bf16 %v3278, %v3276
  %v3361 = vpack.c.bf16 %v3281, %v3279
  %v3362 = vpack.c.bf16 %v3282, %v3280
  %v3363 = vpack.c.bf16 %v3285, %v3283
  %v3364 = vpack.c.bf16 %v3286, %v3284
  %v3365 = vpack.c.bf16 %v3289, %v3287
  %v3366 = vpack.c.bf16 %v3290, %v3288
  %v3367 = vpack.c.bf16 %v3291, %v3291
  %v3368 = vpack.c.bf16 %v3292, %v3292
  %v3369 = vld [vmem:[%s7] sm:$0xf]
  %v3370 = vld [vmem:[%s7 + $0x4] sm:$0xf]
  %v3371 = vld [vmem:[%s7 + $0x8] sm:$0xf]
  %v3372 = vld [vmem:[%s7 + $0xc] sm:$0xf]
  %v3373 = vld [vmem:[%s7 + $0x10] sm:$0xf]
  %v3374 = vld [vmem:[%s7 + $0x14] sm:$0xf]
  %v3375 = vld [vmem:[%s7 + $0x18] sm:$0xf]
  %v3376 = vld [vmem:[%s7 + $0x1c] sm:$0xf]
  %v3377 = vld [vmem:[%s7 + $0x20] sm:$0xf]
  %v3378 = vld [vmem:[%s7 + $0x24] sm:$0xf]
  %v3379 = vld [vmem:[%s7 + $0x28] sm:$0xf]
  %v3380 = vld [vmem:[%s7 + $0x2c] sm:$0xf]
  %v3381 = vld [vmem:[%s7 + $0x30] sm:$0xf]
  %v3382 = vld [vmem:[%s7 + $0x34] sm:$0xf]
  %v3383 = vld [vmem:[%s7 + $0x38] sm:$0xf]
  %v3384 = vld [vmem:[%s7 + $0x3c] sm:$0xf]
  %v3385 = vld [vmem:[%s7 + $0x40] sm:$0xf]
  %v3386 = vld [vmem:[%s7 + $0x44] sm:$0xf]
  %v3387 = vld [vmem:[%s7 + $0x48] sm:$0xf]
  %v3388 = vld [vmem:[%s7 + $0x4c] sm:$0xf]
  %v3389 = vld [vmem:[%s7 + $0x50] sm:$0xf]
  %v3390 = vld [vmem:[%s7 + $0x54] sm:$0xf]
  %v3391 = vld [vmem:[%s7 + $0x58] sm:$0xf]
  %v3392 = vld [vmem:[%s7 + $0x5c] sm:$0xf]
  %v3393 = vld [vmem:[%s7 + $0x60] sm:$0xf]
  %v3394 = vld [vmem:[%s7 + $0x64] sm:$0xf]
  %v3395 = vld [vmem:[%s7 + $0x68] sm:$0xf]
  %v3396 = vld [vmem:[%s7 + $0x6c] sm:$0xf]
  %v3397 = vld [vmem:[%s7 + $0x70] sm:$0xf]
  %v3398 = vld [vmem:[%s7 + $0x74] sm:$0xf]
  %v3399 = vld [vmem:[%s7 + $0x78] sm:$0xf]
  %v3400 = vld [vmem:[%s7 + $0x7c] sm:$0xf]
  %v3401 = vld [vmem:[%s8] sm:$0x1]
  %v3403 = vperm.slane %v3401, 0
  %v3437 = vunpack.c.l.b16 %v3369
  %v3438 = vunpack.c.l.b16 %v3370
  %v3439 = vunpack.c.l.b16 %v3371
  %v3440 = vunpack.c.l.b16 %v3372
  %v3441 = vunpack.c.l.b16 %v3373
  %v3442 = vunpack.c.l.b16 %v3374
  %v3443 = vunpack.c.l.b16 %v3375
  %v3444 = vunpack.c.l.b16 %v3376
  %v3445 = vunpack.c.l.b16 %v3377
  %v3446 = vunpack.c.l.b16 %v3378
  %v3447 = vunpack.c.l.b16 %v3379
  %v3448 = vunpack.c.l.b16 %v3380
  %v3449 = vunpack.c.l.b16 %v3381
  %v3450 = vunpack.c.l.b16 %v3382
  %v3451 = vunpack.c.l.b16 %v3383
  %v3452 = vunpack.c.l.b16 %v3384
  %v3453 = vunpack.c.l.b16 %v3385
  %v3454 = vunpack.c.l.b16 %v3386
  %v3455 = vunpack.c.l.b16 %v3387
  %v3456 = vunpack.c.l.b16 %v3388
  %v3457 = vunpack.c.l.b16 %v3389
  %v3458 = vunpack.c.l.b16 %v3390
  %v3459 = vunpack.c.l.b16 %v3391
  %v3460 = vunpack.c.l.b16 %v3392
  %v3461 = vunpack.c.l.b16 %v3393
  %v3462 = vunpack.c.l.b16 %v3394
  %v3463 = vunpack.c.l.b16 %v3395
  %v3464 = vunpack.c.l.b16 %v3396
  %v3465 = vunpack.c.l.b16 %v3397
  %v3466 = vunpack.c.l.b16 %v3398
  %v3467 = vunpack.c.l.b16 %v3399
  %v3468 = vunpack.c.l.b16 %v3400
  %v3469 = vpack.c.b16 %v3438, %v3437
  %v3470 = vpack.c.b16 %v3440, %v3439
  %v3471 = vpack.c.b16 %v3442, %v3441
  %v3472 = vpack.c.b16 %v3444, %v3443
  %v3473 = vpack.c.b16 %v3446, %v3445
  %v3474 = vpack.c.b16 %v3448, %v3447
  %v3475 = vpack.c.b16 %v3450, %v3449
  %v3476 = vpack.c.b16 %v3452, %v3451
  %v3477 = vpack.c.b16 %v3454, %v3453
  %v3478 = vpack.c.b16 %v3456, %v3455
  %v3479 = vpack.c.b16 %v3458, %v3457
  %v3480 = vpack.c.b16 %v3460, %v3459
  %v3481 = vpack.c.b16 %v3462, %v3461
  %v3482 = vpack.c.b16 %v3464, %v3463
  %v3483 = vpack.c.b16 %v3466, %v3465
  %v3484 = vpack.c.b16 %v3468, %v3467
  %3501 = vmatpush.bf16.msra.mxu0 %v3476
  %3502 = vmatpush.bf16.msra.mxu0 %v3475
  %3503 = vmatpush.bf16.msra.mxu0 %v3474
  %3504 = vmatpush.bf16.msra.mxu0 %v3473
  %3505 = vmatpush.bf16.msra.mxu0 %v3472
  %3506 = vmatpush.bf16.msra.mxu0 %v3471
  %3507 = vmatpush.bf16.msra.mxu0 %v3470
  %3508 = vmatpush.bf16.msra.mxu0 %v3469
  %3509 = vmatmul.bf16.gmra.mxu0 %v3293
  %v3510 = vpop.f32.mrf.mxu0
  %v3511 = vadd.f32 %v3403, %v3510
  %v3512 = vpop.f32.mrf.mxu0
  %v3513 = vadd.f32 %v3403, %v3512
  %3514 = vmatmul.bf16.gmra.mxu0 %v3295
  %v3515 = vpop.f32.mrf.mxu0
  %v3516 = vadd.f32 %v3403, %v3515
  %v3517 = vpop.f32.mrf.mxu0
  %v3518 = vadd.f32 %v3403, %v3517
  %3519 = vmatmul.bf16.gmra.mxu0 %v3297
  %v3520 = vpop.f32.mrf.mxu0
  %v3521 = vadd.f32 %v3403, %v3520
  %v3522 = vpop.f32.mrf.mxu0
  %v3523 = vadd.f32 %v3403, %v3522
  %3524 = vmatmul.bf16.gmra.mxu0 %v3299
  %v3525 = vpop.f32.mrf.mxu0
  %v3526 = vadd.f32 %v3403, %v3525
  %v3527 = vpop.f32.mrf.mxu0
  %v3528 = vadd.f32 %v3403, %v3527
  %3529 = vmatmul.bf16.gmra.mxu0 %v3301
  %v3530 = vpop.f32.mrf.mxu0
  %v3531 = vadd.f32 %v3403, %v3530
  %v3532 = vpop.f32.mrf.mxu0
  %v3533 = vadd.f32 %v3403, %v3532
  %3534 = vmatmul.bf16.gmra.mxu0 %v3303
  %v3535 = vpop.f32.mrf.mxu0
  %v3536 = vadd.f32 %v3403, %v3535
  %v3537 = vpop.f32.mrf.mxu0
  %v3538 = vadd.f32 %v3403, %v3537
  %3539 = vmatmul.bf16.gmra.mxu0 %v3305
  %v3540 = vpop.f32.mrf.mxu0
  %v3541 = vadd.f32 %v3403, %v3540
  %v3542 = vpop.f32.mrf.mxu0
  %v3543 = vadd.f32 %v3403, %v3542
  %3544 = vmatmul.bf16.gmra.mxu0 %v3307
  %v3545 = vpop.f32.mrf.mxu0
  %v3546 = vadd.f32 %v3403, %v3545
  %v3547 = vpop.f32.mrf.mxu0
  %v3548 = vadd.f32 %v3403, %v3547
  %3549 = vmatmul.bf16.gmra.mxu0 %v3309
  %v3550 = vpop.f32.mrf.mxu0
  %v3551 = vadd.f32 %v3403, %v3550
  %v3552 = vpop.f32.mrf.mxu0
  %v3553 = vadd.f32 %v3403, %v3552
  %3554 = vmatmul.bf16.gmra.mxu0 %v3311
  %v3555 = vpop.f32.mrf.mxu0
  %v3556 = vadd.f32 %v3403, %v3555
  %v3557 = vpop.f32.mrf.mxu0
  %v3558 = vadd.f32 %v3403, %v3557
  %3559 = vmatmul.bf16.gmra.mxu0 %v3313
  %v3560 = vpop.f32.mrf.mxu0
  %v3561 = vadd.f32 %v3403, %v3560
  %v3562 = vpop.f32.mrf.mxu0
  %v3563 = vadd.f32 %v3403, %v3562
  %3564 = vmatmul.bf16.gmra.mxu0 %v3315
  %v3565 = vpop.f32.mrf.mxu0
  %v3566 = vadd.f32 %v3403, %v3565
  %v3567 = vpop.f32.mrf.mxu0
  %v3568 = vadd.f32 %v3403, %v3567
  %3569 = vmatmul.bf16.gmra.mxu0 %v3317
  %v3570 = vpop.f32.mrf.mxu0
  %v3571 = vadd.f32 %v3403, %v3570
  %v3572 = vpop.f32.mrf.mxu0
  %v3573 = vadd.f32 %v3403, %v3572
  %3574 = vmatmul.bf16.gmra.mxu0 %v3319
  %v3575 = vpop.f32.mrf.mxu0
  %v3576 = vadd.f32 %v3403, %v3575
  %v3577 = vpop.f32.mrf.mxu0
  %v3578 = vadd.f32 %v3403, %v3577
  %3579 = vmatmul.bf16.gmra.mxu0 %v3321
  %v3580 = vpop.f32.mrf.mxu0
  %v3581 = vadd.f32 %v3403, %v3580
  %v3582 = vpop.f32.mrf.mxu0
  %v3583 = vadd.f32 %v3403, %v3582
  %3584 = vmatmul.bf16.gmra.mxu0 %v3323
  %v3585 = vpop.f32.mrf.mxu0
  %v3586 = vadd.f32 %v3403, %v3585
  %v3587 = vpop.f32.mrf.mxu0
  %v3588 = vadd.f32 %v3403, %v3587
  %3589 = vmatmul.bf16.gmra.mxu0 %v3325
  %v3590 = vpop.f32.mrf.mxu0
  %v3591 = vadd.f32 %v3403, %v3590
  %v3592 = vpop.f32.mrf.mxu0
  %v3593 = vadd.f32 %v3403, %v3592
  %3594 = vmatmul.bf16.gmra.mxu0 %v3327
  %v3595 = vpop.f32.mrf.mxu0
  %v3596 = vadd.f32 %v3403, %v3595
  %v3597 = vpop.f32.mrf.mxu0
  %v3598 = vadd.f32 %v3403, %v3597
  %3599 = vmatmul.bf16.gmra.mxu0 %v3329
  %v3600 = vpop.f32.mrf.mxu0
  %v3601 = vadd.f32 %v3403, %v3600
  %v3602 = vpop.f32.mrf.mxu0
  %v3603 = vadd.f32 %v3403, %v3602
  %3604 = vmatmul.bf16.gmra.mxu0 %v3331
  %v3605 = vpop.f32.mrf.mxu0
  %v3606 = vadd.f32 %v3403, %v3605
  %v3607 = vpop.f32.mrf.mxu0
  %v3608 = vadd.f32 %v3403, %v3607
  %3609 = vmatmul.bf16.gmra.mxu0 %v3333
  %v3610 = vpop.f32.mrf.mxu0
  %v3611 = vadd.f32 %v3403, %v3610
  %v3612 = vpop.f32.mrf.mxu0
  %v3613 = vadd.f32 %v3403, %v3612
  %3614 = vmatmul.bf16.gmra.mxu0 %v3335
  %v3615 = vpop.f32.mrf.mxu0
  %v3616 = vadd.f32 %v3403, %v3615
  %v3617 = vpop.f32.mrf.mxu0
  %v3618 = vadd.f32 %v3403, %v3617
  %3619 = vmatmul.bf16.gmra.mxu0 %v3337
  %v3620 = vpop.f32.mrf.mxu0
  %v3621 = vadd.f32 %v3403, %v3620
  %v3622 = vpop.f32.mrf.mxu0
  %v3623 = vadd.f32 %v3403, %v3622
  %3624 = vmatmul.bf16.gmra.mxu0 %v3339
  %v3625 = vpop.f32.mrf.mxu0
  %v3626 = vadd.f32 %v3403, %v3625
  %v3627 = vpop.f32.mrf.mxu0
  %v3628 = vadd.f32 %v3403, %v3627
  %3629 = vmatmul.bf16.gmra.mxu0 %v3341
  %v3630 = vpop.f32.mrf.mxu0
  %v3631 = vadd.f32 %v3403, %v3630
  %v3632 = vpop.f32.mrf.mxu0
  %v3633 = vadd.f32 %v3403, %v3632
  %3634 = vmatmul.bf16.gmra.mxu0 %v3343
  %v3635 = vpop.f32.mrf.mxu0
  %v3636 = vadd.f32 %v3403, %v3635
  %v3637 = vpop.f32.mrf.mxu0
  %v3638 = vadd.f32 %v3403, %v3637
  %3639 = vmatmul.bf16.gmra.mxu0 %v3345
  %v3640 = vpop.f32.mrf.mxu0
  %v3641 = vadd.f32 %v3403, %v3640
  %v3642 = vpop.f32.mrf.mxu0
  %v3643 = vadd.f32 %v3403, %v3642
  %3644 = vmatmul.bf16.gmra.mxu0 %v3347
  %v3645 = vpop.f32.mrf.mxu0
  %v3646 = vadd.f32 %v3403, %v3645
  %v3647 = vpop.f32.mrf.mxu0
  %v3648 = vadd.f32 %v3403, %v3647
  %3649 = vmatmul.bf16.gmra.mxu0 %v3349
  %v3650 = vpop.f32.mrf.mxu0
  %v3651 = vadd.f32 %v3403, %v3650
  %v3652 = vpop.f32.mrf.mxu0
  %v3653 = vadd.f32 %v3403, %v3652
  %3654 = vmatmul.bf16.gmra.mxu0 %v3351
  %v3655 = vpop.f32.mrf.mxu0
  %v3656 = vadd.f32 %v3403, %v3655
  %v3657 = vpop.f32.mrf.mxu0
  %v3658 = vadd.f32 %v3403, %v3657
  %3659 = vmatmul.bf16.gmra.mxu0 %v3353
  %v3660 = vpop.f32.mrf.mxu0
  %v3661 = vadd.f32 %v3403, %v3660
  %v3662 = vpop.f32.mrf.mxu0
  %v3663 = vadd.f32 %v3403, %v3662
  %3664 = vmatmul.bf16.gmra.mxu0 %v3355
  %v3665 = vpop.f32.mrf.mxu0
  %v3666 = vadd.f32 %v3403, %v3665
  %v3667 = vpop.f32.mrf.mxu0
  %v3668 = vadd.f32 %v3403, %v3667
  %3669 = vmatmul.bf16.gmra.mxu0 %v3357
  %v3670 = vpop.f32.mrf.mxu0
  %v3671 = vadd.f32 %v3403, %v3670
  %v3672 = vpop.f32.mrf.mxu0
  %v3673 = vadd.f32 %v3403, %v3672
  %3674 = vmatmul.bf16.gmra.mxu0 %v3359
  %v3675 = vpop.f32.mrf.mxu0
  %v3676 = vadd.f32 %v3403, %v3675
  %v3677 = vpop.f32.mrf.mxu0
  %v3678 = vadd.f32 %v3403, %v3677
  %3679 = vmatmul.bf16.gmra.mxu0 %v3361
  %v3680 = vpop.f32.mrf.mxu0
  %v3681 = vadd.f32 %v3403, %v3680
  %v3682 = vpop.f32.mrf.mxu0
  %v3683 = vadd.f32 %v3403, %v3682
  %3684 = vmatmul.bf16.gmra.mxu0 %v3363
  %v3685 = vpop.f32.mrf.mxu0
  %v3686 = vadd.f32 %v3403, %v3685
  %v3687 = vpop.f32.mrf.mxu0
  %v3688 = vadd.f32 %v3403, %v3687
  %3689 = vmatmul.bf16.gmra.mxu0 %v3365
  %v3690 = vpop.f32.mrf.mxu0
  %v3691 = vadd.f32 %v3403, %v3690
  %v3692 = vpop.f32.mrf.mxu0
  %v3693 = vadd.f32 %v3403, %v3692
  %3694 = vmatmul.bf16.gmra.mxu0 %v3367
  %v3695 = vpop.f32.mrf.mxu0
  %v3696 = vadd.f32 %v3403, %v3695
  %v3697 = vpop.f32.mrf.mxu0
  %3698 = vdwg.mxu0
  %3699 = vmatpush.bf16.msra.mxu0 %v3484
  %3700 = vmatpush.bf16.msra.mxu0 %v3483
  %3701 = vmatpush.bf16.msra.mxu0 %v3482
  %3702 = vmatpush.bf16.msra.mxu0 %v3481
  %3703 = vmatpush.bf16.msra.mxu0 %v3480
  %3704 = vmatpush.bf16.msra.mxu0 %v3479
  %3705 = vmatpush.bf16.msra.mxu0 %v3478
  %3706 = vmatpush.bf16.msra.mxu0 %v3477
  %3707 = vmatmul.bf16.gmra.mxu0 %v3294
  %v3708 = vpop.f32.mrf.mxu0
  %v3709 = vadd.f32 %v3511, %v3708
  %v3710 = vpop.f32.mrf.mxu0
  %v3711 = vadd.f32 %v3513, %v3710
  %3712 = vmatmul.bf16.gmra.mxu0 %v3296
  %v3713 = vpop.f32.mrf.mxu0
  %v3714 = vadd.f32 %v3516, %v3713
  %v3715 = vpop.f32.mrf.mxu0
  %v3716 = vadd.f32 %v3518, %v3715
  %3717 = vmatmul.bf16.gmra.mxu0 %v3298
  %v3718 = vpop.f32.mrf.mxu0
  %v3719 = vadd.f32 %v3521, %v3718
  %v3720 = vpop.f32.mrf.mxu0
  %v3721 = vadd.f32 %v3523, %v3720
  %3722 = vmatmul.bf16.gmra.mxu0 %v3300
  %v3723 = vpop.f32.mrf.mxu0
  %v3724 = vadd.f32 %v3526, %v3723
  %v3725 = vpop.f32.mrf.mxu0
  %v3726 = vadd.f32 %v3528, %v3725
  %3727 = vmatmul.bf16.gmra.mxu0 %v3302
  %v3728 = vpop.f32.mrf.mxu0
  %v3729 = vadd.f32 %v3531, %v3728
  %v3730 = vpop.f32.mrf.mxu0
  %v3731 = vadd.f32 %v3533, %v3730
  %3732 = vmatmul.bf16.gmra.mxu0 %v3304
  %v3733 = vpop.f32.mrf.mxu0
  %v3734 = vadd.f32 %v3536, %v3733
  %v3735 = vpop.f32.mrf.mxu0
  %v3736 = vadd.f32 %v3538, %v3735
  %3737 = vmatmul.bf16.gmra.mxu0 %v3306
  %v3738 = vpop.f32.mrf.mxu0
  %v3739 = vadd.f32 %v3541, %v3738
  %v3740 = vpop.f32.mrf.mxu0
  %v3741 = vadd.f32 %v3543, %v3740
  %3742 = vmatmul.bf16.gmra.mxu0 %v3308
  %v3743 = vpop.f32.mrf.mxu0
  %v3744 = vadd.f32 %v3546, %v3743
  %v3745 = vpop.f32.mrf.mxu0
  %v3746 = vadd.f32 %v3548, %v3745
  %3747 = vmatmul.bf16.gmra.mxu0 %v3310
  %v3748 = vpop.f32.mrf.mxu0
  %v3749 = vadd.f32 %v3551, %v3748
  %v3750 = vpop.f32.mrf.mxu0
  %v3751 = vadd.f32 %v3553, %v3750
  %3752 = vmatmul.bf16.gmra.mxu0 %v3312
  %v3753 = vpop.f32.mrf.mxu0
  %v3754 = vadd.f32 %v3556, %v3753
  %v3755 = vpop.f32.mrf.mxu0
  %v3756 = vadd.f32 %v3558, %v3755
  %3757 = vmatmul.bf16.gmra.mxu0 %v3314
  %v3758 = vpop.f32.mrf.mxu0
  %v3759 = vadd.f32 %v3561, %v3758
  %v3760 = vpop.f32.mrf.mxu0
  %v3761 = vadd.f32 %v3563, %v3760
  %3762 = vmatmul.bf16.gmra.mxu0 %v3316
  %v3763 = vpop.f32.mrf.mxu0
  %v3764 = vadd.f32 %v3566, %v3763
  %v3765 = vpop.f32.mrf.mxu0
  %v3766 = vadd.f32 %v3568, %v3765
  %3767 = vmatmul.bf16.gmra.mxu0 %v3318
  %v3768 = vpop.f32.mrf.mxu0
  %v3769 = vadd.f32 %v3571, %v3768
  %v3770 = vpop.f32.mrf.mxu0
  %v3771 = vadd.f32 %v3573, %v3770
  %3772 = vmatmul.bf16.gmra.mxu0 %v3320
  %v3773 = vpop.f32.mrf.mxu0
  %v3774 = vadd.f32 %v3576, %v3773
  %v3775 = vpop.f32.mrf.mxu0
  %v3776 = vadd.f32 %v3578, %v3775
  %3777 = vmatmul.bf16.gmra.mxu0 %v3322
  %v3778 = vpop.f32.mrf.mxu0
  %v3779 = vadd.f32 %v3581, %v3778
  %v3780 = vpop.f32.mrf.mxu0
  %v3781 = vadd.f32 %v3583, %v3780
  %3782 = vmatmul.bf16.gmra.mxu0 %v3324
  %v3783 = vpop.f32.mrf.mxu0
  %v3784 = vadd.f32 %v3586, %v3783
  %v3785 = vpop.f32.mrf.mxu0
  %v3786 = vadd.f32 %v3588, %v3785
  %3787 = vmatmul.bf16.gmra.mxu0 %v3326
  %v3788 = vpop.f32.mrf.mxu0
  %v3789 = vadd.f32 %v3591, %v3788
  %v3790 = vpop.f32.mrf.mxu0
  %v3791 = vadd.f32 %v3593, %v3790
  %3792 = vmatmul.bf16.gmra.mxu0 %v3328
  %v3793 = vpop.f32.mrf.mxu0
  %v3794 = vadd.f32 %v3596, %v3793
  %v3795 = vpop.f32.mrf.mxu0
  %v3796 = vadd.f32 %v3598, %v3795
  %3797 = vmatmul.bf16.gmra.mxu0 %v3330
  %v3798 = vpop.f32.mrf.mxu0
  %v3799 = vadd.f32 %v3601, %v3798
  %v3800 = vpop.f32.mrf.mxu0
  %v3801 = vadd.f32 %v3603, %v3800
  %3802 = vmatmul.bf16.gmra.mxu0 %v3332
  %v3803 = vpop.f32.mrf.mxu0
  %v3804 = vadd.f32 %v3606, %v3803
  %v3805 = vpop.f32.mrf.mxu0
  %v3806 = vadd.f32 %v3608, %v3805
  %3807 = vmatmul.bf16.gmra.mxu0 %v3334
  %v3808 = vpop.f32.mrf.mxu0
  %v3809 = vadd.f32 %v3611, %v3808
  %v3810 = vpop.f32.mrf.mxu0
  %v3811 = vadd.f32 %v3613, %v3810
  %3812 = vmatmul.bf16.gmra.mxu0 %v3336
  %v3813 = vpop.f32.mrf.mxu0
  %v3814 = vadd.f32 %v3616, %v3813
  %v3815 = vpop.f32.mrf.mxu0
  %v3816 = vadd.f32 %v3618, %v3815
  %3817 = vmatmul.bf16.gmra.mxu0 %v3338
  %v3818 = vpop.f32.mrf.mxu0
  %v3819 = vadd.f32 %v3621, %v3818
  %v3820 = vpop.f32.mrf.mxu0
  %v3821 = vadd.f32 %v3623, %v3820
  %3822 = vmatmul.bf16.gmra.mxu0 %v3340
  %v3823 = vpop.f32.mrf.mxu0
  %v3824 = vadd.f32 %v3626, %v3823
  %v3825 = vpop.f32.mrf.mxu0
  %v3826 = vadd.f32 %v3628, %v3825
  %3827 = vmatmul.bf16.gmra.mxu0 %v3342
  %v3828 = vpop.f32.mrf.mxu0
  %v3829 = vadd.f32 %v3631, %v3828
  %v3830 = vpop.f32.mrf.mxu0
  %v3831 = vadd.f32 %v3633, %v3830
  %3832 = vmatmul.bf16.gmra.mxu0 %v3344
  %v3833 = vpop.f32.mrf.mxu0
  %v3834 = vadd.f32 %v3636, %v3833
  %v3835 = vpop.f32.mrf.mxu0
  %v3836 = vadd.f32 %v3638, %v3835
  %3837 = vmatmul.bf16.gmra.mxu0 %v3346
  %v3838 = vpop.f32.mrf.mxu0
  %v3839 = vadd.f32 %v3641, %v3838
  %v3840 = vpop.f32.mrf.mxu0
  %v3841 = vadd.f32 %v3643, %v3840
  %3842 = vmatmul.bf16.gmra.mxu0 %v3348
  %v3843 = vpop.f32.mrf.mxu0
  %v3844 = vadd.f32 %v3646, %v3843
  %v3845 = vpop.f32.mrf.mxu0
  %v3846 = vadd.f32 %v3648, %v3845
  %3847 = vmatmul.bf16.gmra.mxu0 %v3350
  %v3848 = vpop.f32.mrf.mxu0
  %v3849 = vadd.f32 %v3651, %v3848
  %v3850 = vpop.f32.mrf.mxu0
  %v3851 = vadd.f32 %v3653, %v3850
  %3852 = vmatmul.bf16.gmra.mxu0 %v3352
  %v3853 = vpop.f32.mrf.mxu0
  %v3854 = vadd.f32 %v3656, %v3853
  %v3855 = vpop.f32.mrf.mxu0
  %v3856 = vadd.f32 %v3658, %v3855
  %3857 = vmatmul.bf16.gmra.mxu0 %v3354
  %v3858 = vpop.f32.mrf.mxu0
  %v3859 = vadd.f32 %v3661, %v3858
  %v3860 = vpop.f32.mrf.mxu0
  %v3861 = vadd.f32 %v3663, %v3860
  %3862 = vmatmul.bf16.gmra.mxu0 %v3356
  %v3863 = vpop.f32.mrf.mxu0
  %v3864 = vadd.f32 %v3666, %v3863
  %v3865 = vpop.f32.mrf.mxu0
  %v3866 = vadd.f32 %v3668, %v3865
  %3867 = vmatmul.bf16.gmra.mxu0 %v3358
  %v3868 = vpop.f32.mrf.mxu0
  %v3869 = vadd.f32 %v3671, %v3868
  %v3870 = vpop.f32.mrf.mxu0
  %v3871 = vadd.f32 %v3673, %v3870
  %3872 = vmatmul.bf16.gmra.mxu0 %v3360
  %v3873 = vpop.f32.mrf.mxu0
  %v3874 = vadd.f32 %v3676, %v3873
  %v3875 = vpop.f32.mrf.mxu0
  %v3876 = vadd.f32 %v3678, %v3875
  %3877 = vmatmul.bf16.gmra.mxu0 %v3362
  %v3878 = vpop.f32.mrf.mxu0
  %v3879 = vadd.f32 %v3681, %v3878
  %v3880 = vpop.f32.mrf.mxu0
  %v3881 = vadd.f32 %v3683, %v3880
  %3882 = vmatmul.bf16.gmra.mxu0 %v3364
  %v3883 = vpop.f32.mrf.mxu0
  %v3884 = vadd.f32 %v3686, %v3883
  %v3885 = vpop.f32.mrf.mxu0
  %v3886 = vadd.f32 %v3688, %v3885
  %3887 = vmatmul.bf16.gmra.mxu0 %v3366
  %v3888 = vpop.f32.mrf.mxu0
  %v3889 = vadd.f32 %v3691, %v3888
  %v3890 = vpop.f32.mrf.mxu0
  %v3891 = vadd.f32 %v3693, %v3890
  %3892 = vmatmul.bf16.gmra.mxu0 %v3368
  %v3893 = vpop.f32.mrf.mxu0
  %v3894 = vadd.f32 %v3696, %v3893
  %v3895 = vpop.f32.mrf.mxu0
  %3896 = vdwg.mxu0
  %vm3897 = vcmask 31744
  %3898 = vst.msk [vmem:[%s9] sm:$0xff] %vm3897, %v3709
  %3899 = vst.msk [vmem:[%s9 + $0x8] sm:$0xff] %vm3897, %v3711
  %3900 = vst.msk [vmem:[%s9 + $0x10] sm:$0xff] %vm3897, %v3714
  %3901 = vst.msk [vmem:[%s9 + $0x18] sm:$0xff] %vm3897, %v3716
  %3902 = vst.msk [vmem:[%s9 + $0x20] sm:$0xff] %vm3897, %v3719
  %3903 = vst.msk [vmem:[%s9 + $0x28] sm:$0xff] %vm3897, %v3721
  %3904 = vst.msk [vmem:[%s9 + $0x30] sm:$0xff] %vm3897, %v3724
  %3905 = vst.msk [vmem:[%s9 + $0x38] sm:$0xff] %vm3897, %v3726
  %3906 = vst.msk [vmem:[%s9 + $0x40] sm:$0xff] %vm3897, %v3729
  %3907 = vst.msk [vmem:[%s9 + $0x48] sm:$0xff] %vm3897, %v3731
  %3908 = vst.msk [vmem:[%s9 + $0x50] sm:$0xff] %vm3897, %v3734
  %3909 = vst.msk [vmem:[%s9 + $0x58] sm:$0xff] %vm3897, %v3736
  %3910 = vst.msk [vmem:[%s9 + $0x60] sm:$0xff] %vm3897, %v3739
  %3911 = vst.msk [vmem:[%s9 + $0x68] sm:$0xff] %vm3897, %v3741
  %3912 = vst.msk [vmem:[%s9 + $0x70] sm:$0xff] %vm3897, %v3744
  %3913 = vst.msk [vmem:[%s9 + $0x78] sm:$0xff] %vm3897, %v3746
  %3914 = vst.msk [vmem:[%s9 + $0x80] sm:$0xff] %vm3897, %v3749
  %3915 = vst.msk [vmem:[%s9 + $0x88] sm:$0xff] %vm3897, %v3751
  %3916 = vst.msk [vmem:[%s9 + $0x90] sm:$0xff] %vm3897, %v3754
  %3917 = vst.msk [vmem:[%s9 + $0x98] sm:$0xff] %vm3897, %v3756
  %3918 = vst.msk [vmem:[%s9 + $0xa0] sm:$0xff] %vm3897, %v3759
  %3919 = vst.msk [vmem:[%s9 + $0xa8] sm:$0xff] %vm3897, %v3761
  %3920 = vst.msk [vmem:[%s9 + $0xb0] sm:$0xff] %vm3897, %v3764
  %3921 = vst.msk [vmem:[%s9 + $0xb8] sm:$0xff] %vm3897, %v3766
  %3922 = vst.msk [vmem:[%s9 + $0xc0] sm:$0xff] %vm3897, %v3769
  %3923 = vst.msk [vmem:[%s9 + $0xc8] sm:$0xff] %vm3897, %v3771
  %3924 = vst.msk [vmem:[%s9 + $0xd0] sm:$0xff] %vm3897, %v3774
  %3925 = vst.msk [vmem:[%s9 + $0xd8] sm:$0xff] %vm3897, %v3776
  %3926 = vst.msk [vmem:[%s9 + $0xe0] sm:$0xff] %vm3897, %v3779
  %3927 = vst.msk [vmem:[%s9 + $0xe8] sm:$0xff] %vm3897, %v3781
  %3928 = vst.msk [vmem:[%s9 + $0xf0] sm:$0xff] %vm3897, %v3784
  %3929 = vst.msk [vmem:[%s9 + $0xf8] sm:$0xff] %vm3897, %v3786
  %3930 = vst.msk [vmem:[%s9 + $0x100] sm:$0xff] %vm3897, %v3789
  %3931 = vst.msk [vmem:[%s9 + $0x108] sm:$0xff] %vm3897, %v3791
  %3932 = vst.msk [vmem:[%s9 + $0x110] sm:$0xff] %vm3897, %v3794
  %3933 = vst.msk [vmem:[%s9 + $0x118] sm:$0xff] %vm3897, %v3796
  %3934 = vst.msk [vmem:[%s9 + $0x120] sm:$0xff] %vm3897, %v3799
  %3935 = vst.msk [vmem:[%s9 + $0x128] sm:$0xff] %vm3897, %v3801
  %3936 = vst.msk [vmem:[%s9 + $0x130] sm:$0xff] %vm3897, %v3804
  %3937 = vst.msk [vmem:[%s9 + $0x138] sm:$0xff] %vm3897, %v3806
  %3938 = vst.msk [vmem:[%s9 + $0x140] sm:$0xff] %vm3897, %v3809
  %3939 = vst.msk [vmem:[%s9 + $0x148] sm:$0xff] %vm3897, %v3811
  %3940 = vst.msk [vmem:[%s9 + $0x150] sm:$0xff] %vm3897, %v3814
  %3941 = vst.msk [vmem:[%s9 + $0x158] sm:$0xff] %vm3897, %v3816
  %3942 = vst.msk [vmem:[%s9 + $0x160] sm:$0xff] %vm3897, %v3819
  %3943 = vst.msk [vmem:[%s9 + $0x168] sm:$0xff] %vm3897, %v3821
  %3944 = vst.msk [vmem:[%s9 + $0x170] sm:$0xff] %vm3897, %v3824
  %3945 = vst.msk [vmem:[%s9 + $0x178] sm:$0xff] %vm3897, %v3826
  %3946 = vst.msk [vmem:[%s9 + $0x180] sm:$0xff] %vm3897, %v3829
  %3947 = vst.msk [vmem:[%s9 + $0x188] sm:$0xff] %vm3897, %v3831
  %3948 = vst.msk [vmem:[%s9 + $0x190] sm:$0xff] %vm3897, %v3834
  %3949 = vst.msk [vmem:[%s9 + $0x198] sm:$0xff] %vm3897, %v3836
  %3950 = vst.msk [vmem:[%s9 + $0x1a0] sm:$0xff] %vm3897, %v3839
  %3951 = vst.msk [vmem:[%s9 + $0x1a8] sm:$0xff] %vm3897, %v3841
  %3952 = vst.msk [vmem:[%s9 + $0x1b0] sm:$0xff] %vm3897, %v3844
  %3953 = vst.msk [vmem:[%s9 + $0x1b8] sm:$0xff] %vm3897, %v3846
  %3954 = vst.msk [vmem:[%s9 + $0x1c0] sm:$0xff] %vm3897, %v3849
  %3955 = vst.msk [vmem:[%s9 + $0x1c8] sm:$0xff] %vm3897, %v3851
  %3956 = vst.msk [vmem:[%s9 + $0x1d0] sm:$0xff] %vm3897, %v3854
  %3957 = vst.msk [vmem:[%s9 + $0x1d8] sm:$0xff] %vm3897, %v3856
  %3958 = vst.msk [vmem:[%s9 + $0x1e0] sm:$0xff] %vm3897, %v3859
  %3959 = vst.msk [vmem:[%s9 + $0x1e8] sm:$0xff] %vm3897, %v3861
  %3960 = vst.msk [vmem:[%s9 + $0x1f0] sm:$0xff] %vm3897, %v3864
  %3961 = vst.msk [vmem:[%s9 + $0x1f8] sm:$0xff] %vm3897, %v3866
  %3962 = vst.msk [vmem:[%s9 + $0x200] sm:$0xff] %vm3897, %v3869
  %3963 = vst.msk [vmem:[%s9 + $0x208] sm:$0xff] %vm3897, %v3871
  %3964 = vst.msk [vmem:[%s9 + $0x210] sm:$0xff] %vm3897, %v3874
  %3965 = vst.msk [vmem:[%s9 + $0x218] sm:$0xff] %vm3897, %v3876
  %3966 = vst.msk [vmem:[%s9 + $0x220] sm:$0xff] %vm3897, %v3879
  %3967 = vst.msk [vmem:[%s9 + $0x228] sm:$0xff] %vm3897, %v3881
  %3968 = vst.msk [vmem:[%s9 + $0x230] sm:$0xff] %vm3897, %v3884
  %3969 = vst.msk [vmem:[%s9 + $0x238] sm:$0xff] %vm3897, %v3886
  %3970 = vst.msk [vmem:[%s9 + $0x240] sm:$0xff] %vm3897, %v3889
  %3971 = vst.msk [vmem:[%s9 + $0x248] sm:$0xff] %vm3897, %v3891
  %3972 = vst.msk [vmem:[%s9 + $0x250] sm:$0xff] %vm3897, %v3894
  // Predicated region
  $region38: #{tpu_custom_call.1} parent=0 // pred_check
    _
  $region39: #{tpu_custom_call.1} parent=0 // pred_check_branch
    %3974 = sbr.rel (0) target = $region41
  $region40: #{tpu_custom_call.1} parent=0 // pred_region
    _
  $region41: #{tpu_custom_call.1} parent=0 // pred_fallthru
    _
  // Predicated region
  $region42: #{tpu_custom_call.1} parent=0 // pred_check
    _
  $region43: #{tpu_custom_call.1} parent=0 // pred_check_branch
    %3976 = sbr.rel (0) target = $region45
  $region44: #{tpu_custom_call.1} parent=0 // pred_region
    _
  $region45: #{tpu_custom_call.1} parent=0 // pred_fallthru
    _

</llo_original>
